<compile_context>
chip_gen: v7x
topology: tpu7x:2x2x1
jax: 0.10.0
libtpu: 0.0.40
codegen_flags: <defaults>
</compile_context>

<pallas_src>
import jax
import jax.numpy as jnp
from jax import lax
from jax.experimental import pallas as pl
from jax.experimental.pallas import tpu as pltpu

COUT_PAD = 128   # lane-dense conv output channels
NOUT_PAD = 128   # lane-dense logits


def _row_tiling(m, max_tile=128):
    """Pick (padded_rows, row_tile) for a 1-D 'parallel' grid over rows.

    Rows are padded to a multiple of 8 (sublane alignment).  Small problems get a
    single (or two, if free) grid step(s) with minimal padding; large problems tile
    at `max_tile` so the pipeline / v7x dual-TC have work."""
    m8 = -(-m // 8) * 8
    if m8 > max_tile:
        m_pad = -(-m8 // max_tile) * max_tile
        return m_pad, max_tile
    if m8 >= 16 and m8 % 16 == 0:
        return m8, m8 // 2          # two aligned steps, no extra padding
    return m8, m8                   # single step


def _pack_conv_weights(w_oihw, cout_p):
    """Pack OIHW 3x3 conv weights into the (2, 8*Cin, 4*cout_p) GEMM matrix used by the
    fused conv+pool kernel.

    Activation view r (0 -> rows m, 1 -> rows m+Wh), lane k = oc*4*Cin + (pr*2+pc)*Cin + ci
    holds xpad[n, 2*(hh+r)+pr, 2*(wh+oc)+pc, ci]; output column p*cout_p+co is the
    (pre-bias) conv value at pool position p = ph*2+pw.  Each 3x3 tap lands in exactly
    one (r, k) slot; unused slots stay zero."""
    cout, cin = w_oihw.shape[0], w_oihw.shape[1]
    wb = jnp.zeros((2, 8 * cin, 4 * cout_p), w_oihw.dtype)
    for ph in range(2):
        for pw in range(2):
            p = ph * 2 + pw
            for dh in range(3):
                for dw in range(3):
                    oh, pr = divmod(ph + dh, 2)
                    oc, pc = divmod(pw + dw, 2)
                    k0 = oc * 4 * cin + (pr * 2 + pc) * cin
                    j0 = p * cout_p
                    blk = w_oihw[:, :, dh, dw].T              # (Cin, Cout)
                    wb = wb.at[oh, k0:k0 + cin, j0:j0 + cout].set(blk)
    return wb


# ---------------------------------------------------------------------------
# Fused conv3x3('same') + bias + relu + maxpool(2,2)
# ---------------------------------------------------------------------------
def conv_relu_pool(x_nhwc, w_oihw, b):
    """x_nhwc: (N,H,W,Cin) -> (N,H//2,W//2,Cout)."""
    N, H, W, Cin = x_nhwc.shape
    Cout = w_oihw.shape[0]
    Ho, Wo = H // 2, W // 2
    Hh = (H + 3) // 2                                 # ceil((H+2)/2)
    Wh = -(-((W + 3) // 2) // 8) * 8                  # ceil((W+2)/2), rounded to mult of 8
    Hp, Wp = 2 * Hh, 2 * Wh
    C4, C8 = 4 * Cin, 8 * Cin

    # ---- glue: pad + parity regroup (~1x the activation) ----
    xpad = jnp.pad(x_nhwc, ((0, 0), (1, Hp - H - 1), (1, Wp - W - 1), (0, 0)))
    xps = xpad.reshape(N, Hh, 2, Wh, 2, Cin).transpose(0, 1, 3, 2, 4, 5)
    a = xps.reshape(N * Hh * Wh, C4)                               # row m <-> (n, hh, wh)
    a_next = jnp.concatenate([a[1:], jnp.zeros((1, C4), a.dtype)], axis=0)
    xs = jnp.concatenate([a, a_next], axis=-1)                     # (m_full, 8*Cin)

    m_full = N * Hh * Wh
    m_pad, tile = _row_tiling(m_full)
    xs = jnp.pad(xs, ((0, m_pad + Wh - m_full), (0, 0)))
    xa = xs[:m_pad]                    # pooled row hh     (streamed in row tiles)
    xb = xs[Wh:Wh + m_pad]             # pooled row hh + 1 (same array, shifted by Wh)

    wbig = _pack_conv_weights(w_oihw, COUT_PAD)                    # (2, 8*Cin, 4*128)
    bpad = jnp.zeros((1, COUT_PAD), b.dtype).at[0, :Cout].set(b)

    def kernel(xa_ref, xb_ref, w_ref, b_ref, o_ref):
        # Single logical GEMM (tile, 16*Cin) @ (16*Cin, 4*128) as two accumulated dots.
        acc = jnp.dot(xa_ref[...], w_ref[0], preferred_element_type=jnp.float32)
        acc = acc + jnp.dot(xb_ref[...], w_ref[1], preferred_element_type=jnp.float32)
        # 2x2 max-pool over the 4 pool-position lane groups, then bias + ReLU once
        # (bias is position-invariant and max is monotone, so post-pool is exact).
        pooled = jnp.maximum(
            jnp.maximum(acc[:, 0:COUT_PAD], acc[:, COUT_PAD:2 * COUT_PAD]),
            jnp.maximum(acc[:, 2 * COUT_PAD:3 * COUT_PAD],
                        acc[:, 3 * COUT_PAD:4 * COUT_PAD]))
        o_ref[...] = jnp.maximum(pooled + b_ref[...], 0.0).astype(o_ref.dtype)

    out = pl.pallas_call(
        kernel,
        out_shape=jax.ShapeDtypeStruct((m_pad, COUT_PAD), jnp.float32),
        grid=(m_pad // tile,),
        in_specs=[
            pl.BlockSpec((tile, C8), lambda i: (i, 0)),            # streamed row tiles
            pl.BlockSpec((tile, C8), lambda i: (i, 0)),            # (+Wh shifted view)
            pl.BlockSpec((2, C8, 4 * COUT_PAD), lambda i: (0, 0, 0)),  # resident weights
            pl.BlockSpec((1, COUT_PAD), lambda i: (0, 0)),
        ],
        out_specs=pl.BlockSpec((tile, COUT_PAD), lambda i: (i, 0)),  # lane-dense stores
        compiler_params=pltpu.CompilerParams(
            dimension_semantics=("parallel",)),
    )(xa, xb, wbig, bpad)

    # Drop the padded rows / channels (valid pooled outputs only).
    return out[:m_full].reshape(N, Hh, Wh, COUT_PAD)[:, :Ho, :Wo, :Cout]


# ---------------------------------------------------------------------------
# Fused fc1 -> relu -> fc2, tiled over batch rows (resident weights)
# ---------------------------------------------------------------------------
def mlp(x, w1_kd, b1, fc2_w, b2):
    """x: (N, K) NHWC-flat activations, w1_kd: (K, 128) already permuted to match."""
    N, K = x.shape
    H1 = w1_kd.shape[1]
    NOUT = fc2_w.shape[0]
    w2 = jnp.zeros((H1, NOUT_PAD), fc2_w.dtype).at[:, :NOUT].set(fc2_w.T)
    b2p = jnp.zeros((1, NOUT_PAD), b2.dtype).at[0, :NOUT].set(b2)
    b1p = b1.reshape(1, H1)

    n_pad, tile = _row_tiling(N)
    xp = jnp.pad(x, ((0, n_pad - N), (0, 0)))

    def kernel(x_ref, w1_ref, b1_ref, w2_ref, b2_ref, o_ref):
        h = jnp.dot(x_ref[...], w1_ref[...], preferred_element_type=jnp.float32)
        h = jnp.maximum(h + b1_ref[...], 0.0)
        o = jnp.dot(h, w2_ref[...], preferred_element_type=jnp.float32)
        o_ref[...] = (o + b2_ref[...]).astype(o_ref.dtype)

    out = pl.pallas_call(
        kernel,
        out_shape=jax.ShapeDtypeStruct((n_pad, NOUT_PAD), jnp.float32),
        grid=(n_pad // tile,),
        in_specs=[
            pl.BlockSpec((tile, K), lambda i: (i, 0)),     # batch-row tiles (pipelined)
            pl.BlockSpec((K, H1), lambda i: (0, 0)),       # resident weights
            pl.BlockSpec((1, H1), lambda i: (0, 0)),
            pl.BlockSpec((H1, NOUT_PAD), lambda i: (0, 0)),
            pl.BlockSpec((1, NOUT_PAD), lambda i: (0, 0)),
        ],
        out_specs=pl.BlockSpec((tile, NOUT_PAD), lambda i: (i, 0)),
        compiler_params=pltpu.CompilerParams(
            dimension_semantics=("parallel",)),
    )(xp, w1_kd, b1p, w2, b2p)
    return out[:N, :NOUT]


def mnist_cnn_forward(x_nchw, params):
    """Matches MNIST_CNN.forward exactly (NCHW input, [N,10] logits)."""
    x = jnp.transpose(x_nchw, (0, 2, 3, 1))                         # NCHW -> NHWC (glue)
    x = conv_relu_pool(x, params["conv1_w"], params["conv1_b"])     # (N,14,14,32)
    x = conv_relu_pool(x, params["conv2_w"], params["conv2_b"])     # (N, 7, 7,64)
    N, Ho, Wo, C = x.shape
    x = x.reshape(N, Ho * Wo * C)                                   # NHWC flatten (free)
    # Permute fc1's input rows to NHWC-flat order (weight transform instead of an
    # activation transpose).
    w1 = params["fc1_w"].reshape(-1, C, Ho, Wo).transpose(2, 3, 1, 0).reshape(Ho * Wo * C, -1)
    return mlp(x, w1, params["fc1_b"], params["fc2_w"], params["fc2_b"])


# ---------------------------------------------------------------------------
# Deterministic parameter init (PyTorch shapes: conv OIHW, linear (out,in))
# ---------------------------------------------------------------------------
def init_params(key):
    ks = jax.random.split(key, 8)

    def u(k, shape, fan_in):
        bound = 1.0 / jnp.sqrt(jnp.float32(fan_in))
        return jax.random.uniform(k, shape, jnp.float32, -bound, bound)

    return {
        "conv1_w": u(ks[0], (32, 1, 3, 3), 1 * 9),
        "conv1_b": u(ks[1], (32,), 1 * 9),
        "conv2_w": u(ks[2], (64, 32, 3, 3), 32 * 9),
        "conv2_b": u(ks[3], (64,), 32 * 9),
        "fc1_w": u(ks[4], (128, 64 * 7 * 7), 64 * 7 * 7),
        "fc1_b": u(ks[5], (128,), 64 * 7 * 7),
        "fc2_w": u(ks[6], (10, 128), 128),
        "fc2_b": u(ks[7], (10,), 128),
    }


# Pure-JAX reference (mirrors the PyTorch forward) for a correctness check.
def reference_forward(x_nchw, p):
    def conv(x, w, b):
        y = lax.conv_general_dilated(
            x, w, window_strides=(1, 1), padding=((1, 1), (1, 1)),
            dimension_numbers=("NCHW", "OIHW", "NCHW"))
        return y + b[None, :, None, None]

    def pool(x):
        return lax.reduce_window(x, -jnp.inf, lax.max,
                                 (1, 1, 2, 2), (1, 1, 2, 2), "VALID")

    x = pool(jnp.maximum(conv(x_nchw, p["conv1_w"], p["conv1_b"]), 0.0))
    x = pool(jnp.maximum(conv(x, p["conv2_w"], p["conv2_b"]), 0.0))
    x = x.reshape(x.shape[0], -1)
    x = jnp.maximum(x @ p["fc1_w"].T + p["fc1_b"], 0.0)
    return x @ p["fc2_w"].T + p["fc2_b"]


if __name__ == "__main__":
    key = jax.random.PRNGKey(0)
    pkey, xkey = jax.random.split(key)
    params = init_params(pkey)
    # MNIST-shaped input (28x28 is required by fc1 = 64*7*7); small batch=2.
    x = jax.random.normal(xkey, (2, 1, 28, 28), jnp.float32)

    out = jax.jit(mnist_cnn_forward)(x, params)
    out = jax.block_until_ready(out)
    assert out.shape == (2, 10), out.shape

    ref = reference_forward(x, params)
    if not jnp.allclose(out, ref, rtol=1e-3, atol=1e-3):
        raise AssertionError(
            f"mismatch vs reference, max abs err {jnp.max(jnp.abs(out - ref))}")

    print("KERNEL_OK")
</pallas_src>

<mosaic_0001>
module attributes {stable_mosaic.version = 11 : i64} {
  func.func @kernel(%arg0: i32, %arg1: memref<128x8xf32, #tpu.memory_space<vmem>>, %arg2: memref<128x8xf32, #tpu.memory_space<vmem>>, %arg3: memref<2x8x512xf32, #tpu.memory_space<vmem>>, %arg4: memref<1x128xf32, #tpu.memory_space<vmem>>, %arg5: memref<128x128xf32, #tpu.memory_space<vmem>>) attributes {dimension_semantics = [#tpu.dimension_semantics<parallel>], iteration_bounds = array<i64: 4>, scalar_prefetch = 0 : i64, scratch_operands = 0 : i64, tpu.core_type = #tpu.core_type<tc>, window_params = [{transform_indices = @transform_0, window_bounds = array<i64: 128, 8>}, {transform_indices = @transform_1, window_bounds = array<i64: 128, 8>}, {pipeline_mode = #tpu.pipeline_mode<synchronous>, transform_indices = @transform_2, window_bounds = array<i64: 2, 8, 512>}, {pipeline_mode = #tpu.pipeline_mode<synchronous>, transform_indices = @transform_3, window_bounds = array<i64: 1, 128>}, {transform_indices = @transform_4, window_bounds = array<i64: 128, 128>}]} {
    %c0 = arith.constant 0 : index
    %c0_0 = arith.constant 0 : index
    %0 = vector.load %arg1[%c0, %c0_0] : memref<128x8xf32, #tpu.memory_space<vmem>>, vector<128x8xf32>
    %c0_1 = arith.constant 0 : index
    %c0_2 = arith.constant 0 : index
    %c0_3 = arith.constant 0 : index
    %1 = vector.load %arg3[%c0_1, %c0_2, %c0_3] : memref<2x8x512xf32, #tpu.memory_space<vmem>>, vector<1x8x512xf32>
    %2 = vector.shape_cast %1 : vector<1x8x512xf32> to vector<8x512xf32>
    %cst = arith.constant dense<0.000000e+00> : vector<128x512xf32>
    %3 = tpu.matmul %0, %2, %cst {dimension_numbers = #tpu.dot_dimension_numbers<[1], [0], [0], [1], [0, 0, 1, 1], [], []>} : vector<128x8xf32>, vector<8x512xf32>, vector<128x512xf32> -> vector<128x512xf32>
    %c0_4 = arith.constant 0 : index
    %c0_5 = arith.constant 0 : index
    %4 = vector.load %arg2[%c0_4, %c0_5] : memref<128x8xf32, #tpu.memory_space<vmem>>, vector<128x8xf32>
    %c1 = arith.constant 1 : index
    %c0_6 = arith.constant 0 : index
    %c0_7 = arith.constant 0 : index
    %5 = vector.load %arg3[%c1, %c0_6, %c0_7] : memref<2x8x512xf32, #tpu.memory_space<vmem>>, vector<1x8x512xf32>
    %6 = vector.shape_cast %5 : vector<1x8x512xf32> to vector<8x512xf32>
    %cst_8 = arith.constant dense<0.000000e+00> : vector<128x512xf32>
    %7 = tpu.matmul %4, %6, %cst_8 {dimension_numbers = #tpu.dot_dimension_numbers<[1], [0], [0], [1], [0, 0, 1, 1], [], []>} : vector<128x8xf32>, vector<8x512xf32>, vector<128x512xf32> -> vector<128x512xf32>
    %8 = arith.addf %3, %7 : vector<128x512xf32>
    %9 = vector.extract_strided_slice %8 {offsets = [0, 0], sizes = [128, 128], strides = [1, 1]} : vector<128x512xf32> to vector<128x128xf32>
    %10 = vector.extract_strided_slice %8 {offsets = [0, 128], sizes = [128, 128], strides = [1, 1]} : vector<128x512xf32> to vector<128x128xf32>
    %11 = arith.maximumf %9, %10 : vector<128x128xf32>
    %12 = vector.extract_strided_slice %8 {offsets = [0, 256], sizes = [128, 128], strides = [1, 1]} : vector<128x512xf32> to vector<128x128xf32>
    %13 = vector.extract_strided_slice %8 {offsets = [0, 384], sizes = [128, 128], strides = [1, 1]} : vector<128x512xf32> to vector<128x128xf32>
    %14 = arith.maximumf %12, %13 : vector<128x128xf32>
    %15 = arith.maximumf %11, %14 : vector<128x128xf32>
    %c0_9 = arith.constant 0 : index
    %c0_10 = arith.constant 0 : index
    %16 = vector.load %arg4[%c0_9, %c0_10] : memref<1x128xf32, #tpu.memory_space<vmem>>, vector<1x128xf32>
    %17 = vector.broadcast %16 : vector<1x128xf32> to vector<128x128xf32>
    %18 = arith.addf %15, %17 : vector<128x128xf32>
    %cst_11 = arith.constant 0.000000e+00 : f32
    %19 = vector.broadcast %cst_11 : f32 to vector<128x128xf32>
    %20 = arith.maximumf %18, %19 : vector<128x128xf32>
    %c0_12 = arith.constant 0 : index
    %c0_13 = arith.constant 0 : index
    %21 = vector.load %arg5[%c0_12, %c0_13] : memref<128x128xf32, #tpu.memory_space<vmem>>, vector<128x128xf32>
    tpu.vector_store %arg5[%c0_12, %c0_13], %20 {strides = array<i32>} : memref<128x128xf32, #tpu.memory_space<vmem>>, vector<128x128xf32>,
    return
  }
  func.func @transform_0(%arg0: i32) -> (i32, i32) {
    %c0_i32 = arith.constant 0 : i32
    %c0_i32_0 = arith.constant 0 : i32
    return %arg0, %c0_i32 : i32, i32
  }
  func.func @transform_1(%arg0: i32) -> (i32, i32) {
    %c0_i32 = arith.constant 0 : i32
    %c0_i32_0 = arith.constant 0 : i32
    return %arg0, %c0_i32 : i32, i32
  }
  func.func @transform_2(%arg0: i32) -> (i32, i32, i32) {
    %c0_i32 = arith.constant 0 : i32
    %c0_i32_0 = arith.constant 0 : i32
    %c0_i32_1 = arith.constant 0 : i32
    %c0_i32_2 = arith.constant 0 : i32
    return %c0_i32, %c0_i32_0, %c0_i32_1 : i32, i32, i32
  }
  func.func @transform_3(%arg0: i32) -> (i32, i32) {
    %c0_i32 = arith.constant 0 : i32
    %c0_i32_0 = arith.constant 0 : i32
    %c0_i32_1 = arith.constant 0 : i32
    return %c0_i32, %c0_i32_0 : i32, i32
  }
  func.func @transform_4(%arg0: i32) -> (i32, i32) {
    %c0_i32 = arith.constant 0 : i32
    %c0_i32_0 = arith.constant 0 : i32
    return %arg0, %c0_i32 : i32, i32
  }
}

module attributes {stable_mosaic.version = 11 : i64} {
  func.func @kernel(%arg0: i32, %arg1: memref<64x256xf32, #tpu.memory_space<vmem>>, %arg2: memref<64x256xf32, #tpu.memory_space<vmem>>, %arg3: memref<2x256x512xf32, #tpu.memory_space<vmem>>, %arg4: memref<1x128xf32, #tpu.memory_space<vmem>>, %arg5: memref<64x128xf32, #tpu.memory_space<vmem>>) attributes {dimension_semantics = [#tpu.dimension_semantics<parallel>], iteration_bounds = array<i64: 2>, scalar_prefetch = 0 : i64, scratch_operands = 0 : i64, tpu.core_type = #tpu.core_type<tc>, window_params = [{transform_indices = @transform_0, window_bounds = array<i64: 64, 256>}, {transform_indices = @transform_1, window_bounds = array<i64: 64, 256>}, {pipeline_mode = #tpu.pipeline_mode<synchronous>, transform_indices = @transform_2, window_bounds = array<i64: 2, 256, 512>}, {pipeline_mode = #tpu.pipeline_mode<synchronous>, transform_indices = @transform_3, window_bounds = array<i64: 1, 128>}, {transform_indices = @transform_4, window_bounds = array<i64: 64, 128>}]} {
    %c0 = arith.constant 0 : index
    %c0_0 = arith.constant 0 : index
    %0 = vector.load %arg1[%c0, %c0_0] : memref<64x256xf32, #tpu.memory_space<vmem>>, vector<64x256xf32>
    %c0_1 = arith.constant 0 : index
    %c0_2 = arith.constant 0 : index
    %c0_3 = arith.constant 0 : index
    %1 = vector.load %arg3[%c0_1, %c0_2, %c0_3] : memref<2x256x512xf32, #tpu.memory_space<vmem>>, vector<1x256x512xf32>
    %2 = vector.shape_cast %1 : vector<1x256x512xf32> to vector<256x512xf32>
    %cst = arith.constant dense<0.000000e+00> : vector<64x512xf32>
    %3 = tpu.matmul %0, %2, %cst {dimension_numbers = #tpu.dot_dimension_numbers<[1], [0], [0], [1], [0, 0, 1, 1], [], []>} : vector<64x256xf32>, vector<256x512xf32>, vector<64x512xf32> -> vector<64x512xf32>
    %c0_4 = arith.constant 0 : index
    %c0_5 = arith.constant 0 : index
    %4 = vector.load %arg2[%c0_4, %c0_5] : memref<64x256xf32, #tpu.memory_space<vmem>>, vector<64x256xf32>
    %c1 = arith.constant 1 : index
    %c0_6 = arith.constant 0 : index
    %c0_7 = arith.constant 0 : index
    %5 = vector.load %arg3[%c1, %c0_6, %c0_7] : memref<2x256x512xf32, #tpu.memory_space<vmem>>, vector<1x256x512xf32>
    %6 = vector.shape_cast %5 : vector<1x256x512xf32> to vector<256x512xf32>
    %cst_8 = arith.constant dense<0.000000e+00> : vector<64x512xf32>
    %7 = tpu.matmul %4, %6, %cst_8 {dimension_numbers = #tpu.dot_dimension_numbers<[1], [0], [0], [1], [0, 0, 1, 1], [], []>} : vector<64x256xf32>, vector<256x512xf32>, vector<64x512xf32> -> vector<64x512xf32>
    %8 = arith.addf %3, %7 : vector<64x512xf32>
    %9 = vector.extract_strided_slice %8 {offsets = [0, 0], sizes = [64, 128], strides = [1, 1]} : vector<64x512xf32> to vector<64x128xf32>
    %10 = vector.extract_strided_slice %8 {offsets = [0, 128], sizes = [64, 128], strides = [1, 1]} : vector<64x512xf32> to vector<64x128xf32>
    %11 = arith.maximumf %9, %10 : vector<64x128xf32>
    %12 = vector.extract_strided_slice %8 {offsets = [0, 256], sizes = [64, 128], strides = [1, 1]} : vector<64x512xf32> to vector<64x128xf32>
    %13 = vector.extract_strided_slice %8 {offsets = [0, 384], sizes = [64, 128], strides = [1, 1]} : vector<64x512xf32> to vector<64x128xf32>
    %14 = arith.maximumf %12, %13 : vector<64x128xf32>
    %15 = arith.maximumf %11, %14 : vector<64x128xf32>
    %c0_9 = arith.constant 0 : index
    %c0_10 = arith.constant 0 : index
    %16 = vector.load %arg4[%c0_9, %c0_10] : memref<1x128xf32, #tpu.memory_space<vmem>>, vector<1x128xf32>
    %17 = vector.broadcast %16 : vector<1x128xf32> to vector<64x128xf32>
    %18 = arith.addf %15, %17 : vector<64x128xf32>
    %cst_11 = arith.constant 0.000000e+00 : f32
    %19 = vector.broadcast %cst_11 : f32 to vector<64x128xf32>
    %20 = arith.maximumf %18, %19 : vector<64x128xf32>
    %c0_12 = arith.constant 0 : index
    %c0_13 = arith.constant 0 : index
    %21 = vector.load %arg5[%c0_12, %c0_13] : memref<64x128xf32, #tpu.memory_space<vmem>>, vector<64x128xf32>
    tpu.vector_store %arg5[%c0_12, %c0_13], %20 {strides = array<i32>} : memref<64x128xf32, #tpu.memory_space<vmem>>, vector<64x128xf32>,
    return
  }
  func.func @transform_0(%arg0: i32) -> (i32, i32) {
    %c0_i32 = arith.constant 0 : i32
    %c0_i32_0 = arith.constant 0 : i32
    return %arg0, %c0_i32 : i32, i32
  }
  func.func @transform_1(%arg0: i32) -> (i32, i32) {
    %c0_i32 = arith.constant 0 : i32
    %c0_i32_0 = arith.constant 0 : i32
    return %arg0, %c0_i32 : i32, i32
  }
  func.func @transform_2(%arg0: i32) -> (i32, i32, i32) {
    %c0_i32 = arith.constant 0 : i32
    %c0_i32_0 = arith.constant 0 : i32
    %c0_i32_1 = arith.constant 0 : i32
    %c0_i32_2 = arith.constant 0 : i32
    return %c0_i32, %c0_i32_0, %c0_i32_1 : i32, i32, i32
  }
  func.func @transform_3(%arg0: i32) -> (i32, i32) {
    %c0_i32 = arith.constant 0 : i32
    %c0_i32_0 = arith.constant 0 : i32
    %c0_i32_1 = arith.constant 0 : i32
    return %c0_i32, %c0_i32_0 : i32, i32
  }
  func.func @transform_4(%arg0: i32) -> (i32, i32) {
    %c0_i32 = arith.constant 0 : i32
    %c0_i32_0 = arith.constant 0 : i32
    return %arg0, %c0_i32 : i32, i32
  }
}

module attributes {stable_mosaic.version = 11 : i64} {
  func.func @kernel(%arg0: i32, %arg1: memref<8x3136xf32, #tpu.memory_space<vmem>>, %arg2: memref<3136x128xf32, #tpu.memory_space<vmem>>, %arg3: memref<1x128xf32, #tpu.memory_space<vmem>>, %arg4: memref<128x128xf32, #tpu.memory_space<vmem>>, %arg5: memref<1x128xf32, #tpu.memory_space<vmem>>, %arg6: memref<8x128xf32, #tpu.memory_space<vmem>>) attributes {dimension_semantics = [#tpu.dimension_semantics<parallel>], iteration_bounds = array<i64: 1>, scalar_prefetch = 0 : i64, scratch_operands = 0 : i64, tpu.core_type = #tpu.core_type<tc>, window_params = [{transform_indices = @transform_0, window_bounds = array<i64: 8, 3136>}, {pipeline_mode = #tpu.pipeline_mode<synchronous>, transform_indices = @transform_1, window_bounds = array<i64: 3136, 128>}, {pipeline_mode = #tpu.pipeline_mode<synchronous>, transform_indices = @transform_2, window_bounds = array<i64: 1, 128>}, {pipeline_mode = #tpu.pipeline_mode<synchronous>, transform_indices = @transform_3, window_bounds = array<i64: 128, 128>}, {pipeline_mode = #tpu.pipeline_mode<synchronous>, transform_indices = @transform_4, window_bounds = array<i64: 1, 128>}, {transform_indices = @transform_5, window_bounds = array<i64: 8, 128>}]} {
    %c0 = arith.constant 0 : index
    %c0_0 = arith.constant 0 : index
    %0 = vector.load %arg1[%c0, %c0_0] : memref<8x3136xf32, #tpu.memory_space<vmem>>, vector<8x3136xf32>
    %c0_1 = arith.constant 0 : index
    %c0_2 = arith.constant 0 : index
    %1 = vector.load %arg2[%c0_1, %c0_2] : memref<3136x128xf32, #tpu.memory_space<vmem>>, vector<3136x128xf32>
    %cst = arith.constant dense<0.000000e+00> : vector<8x128xf32>
    %2 = tpu.matmul %0, %1, %cst {dimension_numbers = #tpu.dot_dimension_numbers<[1], [0], [0], [1], [0, 0, 1, 1], [], []>} : vector<8x3136xf32>, vector<3136x128xf32>, vector<8x128xf32> -> vector<8x128xf32>
    %c0_3 = arith.constant 0 : index
    %c0_4 = arith.constant 0 : index
    %3 = vector.load %arg3[%c0_3, %c0_4] : memref<1x128xf32, #tpu.memory_space<vmem>>, vector<1x128xf32>
    %4 = vector.broadcast %3 : vector<1x128xf32> to vector<8x128xf32>
    %5 = arith.addf %2, %4 : vector<8x128xf32>
    %cst_5 = arith.constant 0.000000e+00 : f32
    %6 = vector.broadcast %cst_5 : f32 to vector<8x128xf32>
    %7 = arith.maximumf %5, %6 : vector<8x128xf32>
    %c0_6 = arith.constant 0 : index
    %c0_7 = arith.constant 0 : index
    %8 = vector.load %arg4[%c0_6, %c0_7] : memref<128x128xf32, #tpu.memory_space<vmem>>, vector<128x128xf32>
    %cst_8 = arith.constant dense<0.000000e+00> : vector<8x128xf32>
    %9 = tpu.matmul %7, %8, %cst_8 {dimension_numbers = #tpu.dot_dimension_numbers<[1], [0], [0], [1], [0, 0, 1, 1], [], []>} : vector<8x128xf32>, vector<128x128xf32>, vector<8x128xf32> -> vector<8x128xf32>
    %c0_9 = arith.constant 0 : index
    %c0_10 = arith.constant 0 : index
    %10 = vector.load %arg5[%c0_9, %c0_10] : memref<1x128xf32, #tpu.memory_space<vmem>>, vector<1x128xf32>
    %11 = vector.broadcast %10 : vector<1x128xf32> to vector<8x128xf32>
    %12 = arith.addf %9, %11 : vector<8x128xf32>
    %c0_11 = arith.constant 0 : index
    %c0_12 = arith.constant 0 : index
    %13 = vector.load %arg6[%c0_11, %c0_12] : memref<8x128xf32, #tpu.memory_space<vmem>>, vector<8x128xf32>
    tpu.vector_store %arg6[%c0_11, %c0_12], %12 {strides = array<i32>} : memref<8x128xf32, #tpu.memory_space<vmem>>, vector<8x128xf32>,
    return
  }
  func.func @transform_0(%arg0: i32) -> (i32, i32) {
    %c0_i32 = arith.constant 0 : i32
    %c0_i32_0 = arith.constant 0 : i32
    return %arg0, %c0_i32 : i32, i32
  }
  func.func @transform_1(%arg0: i32) -> (i32, i32) {
    %c0_i32 = arith.constant 0 : i32
    %c0_i32_0 = arith.constant 0 : i32
    %c0_i32_1 = arith.constant 0 : i32
    return %c0_i32, %c0_i32_0 : i32, i32
  }
  func.func @transform_2(%arg0: i32) -> (i32, i32) {
    %c0_i32 = arith.constant 0 : i32
    %c0_i32_0 = arith.constant 0 : i32
    %c0_i32_1 = arith.constant 0 : i32
    return %c0_i32, %c0_i32_0 : i32, i32
  }
  func.func @transform_3(%arg0: i32) -> (i32, i32) {
    %c0_i32 = arith.constant 0 : i32
    %c0_i32_0 = arith.constant 0 : i32
    %c0_i32_1 = arith.constant 0 : i32
    return %c0_i32, %c0_i32_0 : i32, i32
  }
  func.func @transform_4(%arg0: i32) -> (i32, i32) {
    %c0_i32 = arith.constant 0 : i32
    %c0_i32_0 = arith.constant 0 : i32
    %c0_i32_1 = arith.constant 0 : i32
    return %c0_i32, %c0_i32_0 : i32, i32
  }
  func.func @transform_5(%arg0: i32) -> (i32, i32) {
    %c0_i32 = arith.constant 0 : i32
    %c0_i32_0 = arith.constant 0 : i32
    return %arg0, %c0_i32 : i32, i32
  }
}

</mosaic_0001>

<llo_original>
// kernel: mnist_cnn_forward.3
$region0: #{mnist_cnn_forward.3}
  #allocation0 [shape = 'u32[]', space=smem, size = 0x4, offset = 0x4, fixed_abs, tag = 'smem constant byte address 0x4 - core index']
  #allocation1 [shape = 'u32[144,128]{1,0:T(1,128)}', space=vmem, size = 0x12000, scoped, tag = 'internal scratch']
  %s0 = inlined_call_operand.vmem [shape: f32[512,8], index: 0, kind: input, shape index: {}]
  %s1 = inlined_call_operand.vmem [shape: f32[512,8], index: 1, kind: input, shape index: {}]
  %s2 = inlined_call_operand.vmem [shape: f32[2,8,512], index: 2, kind: input, shape index: {}]
  %s3 = inlined_call_operand.vmem [shape: f32[1,128], index: 3, kind: input, shape index: {}]
  %s4 = inlined_call_operand.vmem [shape: f32[512,128], index: 4, kind: output, shape index: {}]
  %s5 = sld [smem:[#allocation0]]
  $region49: #{mnist_cnn_forward.3} parent=0
    _
  %s7 = ssub.s32 1, %s5
  %s8 = scalar_select 0, %s7, %s5
  loop: start=0, step=1, limit=6
  $region2: #{mnist_cnn_forward.3} parent=0 // loop_pre_header
    _
  $region3: #{mnist_cnn_forward.3} parent=0 // loop_header
    %s10 = sphi 0, %s14
    %p11 = scmp.ge.s32.totalorder %s10, 6
    %s20 = sphi 0, %s22
    %s23 = sphi 0, %s20
    %s24 = sphi 0, %s23
    %s40 = sphi 0, %s24
    %s46 = sphi 0, %s48
    %s49 = sphi 0, %s46
    %s50 = sphi 0, %s49
    %s66 = sphi 0, %s50
    %s70 = sphi 0, %s70
    %s72 = sphi 0, %s70
    %s73 = sphi 0, %s72
    %s87 = sphi 0, %s73
    %s91 = sphi 0, %s91
    %s93 = sphi 0, %s91
    %s94 = sphi 0, %s93
    %s108 = sphi 0, %s94
    %s114 = sphi 0, %s116
    %s117 = sphi 0, %s114
    %s118 = sphi 0, %s117
    %s134 = sphi 0, %s118
  $region4: #{mnist_cnn_forward.3} parent=0 // loop_header_branch
    %13 = sbr.rel (%p11) target = $region8
  $region5: #{mnist_cnn_forward.3} parent=0 // loop_body
    %s15 = ssub.s32 %s10, 1
    %s16 = ssub.s32 %s10, 2
    %s17 = sadd.s32 %s10, 1
    %s18 = ssub.s32 %s10, %s17
    %p19 = scmp.eq.s32.totalorder %s18, 0
    %s21 = sadd.s32 %s20, 1
    %s22 = scalar_select %p19, %s20, %s21
    %p25 = pneg %p19
    %p26 = scmp.eq.s32.totalorder %s10, 3
    %p27 = por %p25, %p26
    %p28 = scmp.ne.s32.totalorder %s20, %s23
    %p29 = scmp.eq.s32.totalorder %s10, 0
    %p30 = por %p28, %p29
    %p31 = scmp.ne.s32.totalorder %s20, %s23
    %p32 = scmp.eq.s32.totalorder %s15, 3
    %p33 = por %p31, %p32
    %p34 = scmp.ne.s32.totalorder %s23, %s24
    %p35 = scmp.eq.s32.totalorder %s15, 0
    %p36 = por %p34, %p35
    %p37 = scmp.ne.s32.totalorder %s23, %s24
    %p38 = scmp.eq.s32.totalorder %s16, 3
    %p39 = por %p37, %p38
    %p41 = scmp.ne.s32.totalorder %s24, %s40
    %p42 = scmp.eq.s32.totalorder %s16, 0
    %p43 = por %p41, %p42
    %s44 = ssub.s32 %s10, %s17
    %p45 = scmp.eq.s32.totalorder %s44, 0
    %s47 = sadd.s32 %s46, 1
    %s48 = scalar_select %p45, %s46, %s47
    %p51 = pneg %p45
    %p52 = scmp.eq.s32.totalorder %s10, 3
    %p53 = por %p51, %p52
    %p54 = scmp.ne.s32.totalorder %s46, %s49
    %p55 = scmp.eq.s32.totalorder %s10, 0
    %p56 = por %p54, %p55
    %p57 = scmp.ne.s32.totalorder %s46, %s49
    %p58 = scmp.eq.s32.totalorder %s15, 3
    %p59 = por %p57, %p58
    %p60 = scmp.ne.s32.totalorder %s49, %s50
    %p61 = scmp.eq.s32.totalorder %s15, 0
    %p62 = por %p60, %p61
    %p63 = scmp.ne.s32.totalorder %s49, %s50
    %p64 = scmp.eq.s32.totalorder %s16, 3
    %p65 = por %p63, %p64
    %p67 = scmp.ne.s32.totalorder %s50, %s66
    %p68 = scmp.eq.s32.totalorder %s16, 0
    %p69 = por %p67, %p68
    %s71 = sadd.s32 %s70, 1
    %p74 = scmp.eq.s32.totalorder %s10, 3
    %p75 = scmp.ne.s32.totalorder %s70, %s72
    %p76 = scmp.eq.s32.totalorder %s10, 0
    %p77 = por %p75, %p76
    %p78 = scmp.ne.s32.totalorder %s70, %s72
    %p79 = scmp.eq.s32.totalorder %s15, 3
    %p80 = por %p78, %p79
    %p81 = scmp.ne.s32.totalorder %s72, %s73
    %p82 = scmp.eq.s32.totalorder %s15, 0
    %p83 = por %p81, %p82
    %p84 = scmp.ne.s32.totalorder %s72, %s73
    %p85 = scmp.eq.s32.totalorder %s16, 3
    %p86 = por %p84, %p85
    %p88 = scmp.ne.s32.totalorder %s73, %s87
    %p89 = scmp.eq.s32.totalorder %s16, 0
    %p90 = por %p88, %p89
    %s92 = sadd.s32 %s91, 1
    %p95 = scmp.eq.s32.totalorder %s10, 3
    %p96 = scmp.ne.s32.totalorder %s91, %s93
    %p97 = scmp.eq.s32.totalorder %s10, 0
    %p98 = por %p96, %p97
    %p99 = scmp.ne.s32.totalorder %s91, %s93
    %p100 = scmp.eq.s32.totalorder %s15, 3
    %p101 = por %p99, %p100
    %p102 = scmp.ne.s32.totalorder %s93, %s94
    %p103 = scmp.eq.s32.totalorder %s15, 0
    %p104 = por %p102, %p103
    %p105 = scmp.ne.s32.totalorder %s93, %s94
    %p106 = scmp.eq.s32.totalorder %s16, 3
    %p107 = por %p105, %p106
    %p109 = scmp.ne.s32.totalorder %s94, %s108
    %p110 = scmp.eq.s32.totalorder %s16, 0
    %p111 = por %p109, %p110
    %s112 = ssub.s32 %s10, %s17
    %p113 = scmp.eq.s32.totalorder %s112, 0
    %s115 = sadd.s32 %s114, 1
    %s116 = scalar_select %p113, %s114, %s115
    %p119 = pneg %p113
    %p120 = scmp.eq.s32.totalorder %s10, 3
    %p121 = por %p119, %p120
    %p122 = scmp.ne.s32.totalorder %s114, %s117
    %p123 = scmp.eq.s32.totalorder %s10, 0
    %p124 = por %p122, %p123
    %p125 = scmp.ne.s32.totalorder %s114, %s117
    %p126 = scmp.eq.s32.totalorder %s15, 3
    %p127 = por %p125, %p126
    %p128 = scmp.ne.s32.totalorder %s117, %s118
    %p129 = scmp.eq.s32.totalorder %s15, 0
    %p130 = por %p128, %p129
    %p131 = scmp.ne.s32.totalorder %s117, %s118
    %p132 = scmp.eq.s32.totalorder %s16, 3
    %p133 = por %p131, %p132
    %p135 = scmp.ne.s32.totalorder %s118, %s134
    %p136 = scmp.eq.s32.totalorder %s16, 0
    %p137 = por %p135, %p136
    %p138 = scmp.le.s32.totalorder 1, %s10
    %p139 = scmp.lt.s32.totalorder %s10, 5
    %p140 = pnand %p138, %p139
    %p141 = pneg %p140
    // Predicated region
    $region9: #{mnist_cnn_forward.3} parent=5 // pred_check
      _
    $region10: #{mnist_cnn_forward.3} parent=5 // pred_check_branch
      %143 = sbr.rel (%p140) target = $region12
    $region11: #{mnist_cnn_forward.3} parent=5 // pred_region
      %s144 = ssub.s32 %s10, 1
      // Predicated region
      $region13: #{mnist_cnn_forward.3} parent=11 // pred_check
        %p145 = pneg %p83
      $region14: #{mnist_cnn_forward.3} parent=11 // pred_check_branch
        %147 = sbr.rel (%p145) target = $region16
      $region15: #{mnist_cnn_forward.3} parent=11 // pred_region
        _
      $region16: #{mnist_cnn_forward.3} parent=11 // pred_fallthru
        _
      // Predicated region
      $region17: #{mnist_cnn_forward.3} parent=11 // pred_check
        %p148 = pneg %p104
      $region18: #{mnist_cnn_forward.3} parent=11 // pred_check_branch
        %150 = sbr.rel (%p148) target = $region20
      $region19: #{mnist_cnn_forward.3} parent=11 // pred_region
        _
      $region20: #{mnist_cnn_forward.3} parent=11 // pred_fallthru
        _
    $region12: #{mnist_cnn_forward.3} parent=5 // pred_fallthru
      _
    %p151 = scmp.lt.s32.totalorder %s10, 4
    // Predicated region
    $region21: #{mnist_cnn_forward.3} parent=5 // pred_check
      %p152 = pneg %p151
    $region22: #{mnist_cnn_forward.3} parent=5 // pred_check_branch
      %154 = sbr.rel (%p152) target = $region24
    $region23: #{mnist_cnn_forward.3} parent=5 // pred_region
      // Predicated region
      $region25: #{mnist_cnn_forward.3} parent=23 // pred_check
        %p155 = pneg %p30
      $region26: #{mnist_cnn_forward.3} parent=23 // pred_check_branch
        %157 = sbr.rel (%p155) target = $region28
      $region27: #{mnist_cnn_forward.3} parent=23 // pred_region
        %s158 = smul.u32 16, %s10
        %p159 = scmp.lt.s32.totalorder %s158, 63
        %s160 = scalar_select %p159, %s158, 63
        %s161 = smul.addr %s160, 8
        %s162 = scalar_lea.vmem %s0, %s161
        %s163 = smul.u32 16, %s10
      $region28: #{mnist_cnn_forward.3} parent=23 // pred_fallthru
        _
      // Predicated region
      $region29: #{mnist_cnn_forward.3} parent=23 // pred_check
        %p164 = pneg %p56
      $region30: #{mnist_cnn_forward.3} parent=23 // pred_check_branch
        %166 = sbr.rel (%p164) target = $region32
      $region31: #{mnist_cnn_forward.3} parent=23 // pred_region
        %s167 = smul.u32 16, %s10
        %p168 = scmp.lt.s32.totalorder %s167, 63
        %s169 = scalar_select %p168, %s167, 63
        %s170 = smul.addr %s169, 8
        %s171 = scalar_lea.vmem %s1, %s170
        %s172 = smul.u32 16, %s10
      $region32: #{mnist_cnn_forward.3} parent=23 // pred_fallthru
        _
    $region24: #{mnist_cnn_forward.3} parent=5 // pred_fallthru
      _
    %p173 = scmp.le.s32.totalorder 1, %s10
    %p174 = scmp.lt.s32.totalorder %s10, 5
    %p175 = pnand %p173, %p174
    %p176 = pneg %p175
    // Predicated region
    $region33: #{mnist_cnn_forward.3} parent=5 // pred_check
      _
    $region34: #{mnist_cnn_forward.3} parent=5 // pred_check_branch
      %178 = sbr.rel (%p175) target = $region36
    $region35: #{mnist_cnn_forward.3} parent=5 // pred_region
      %s179 = ssub.s32 %s10, 1
      %s180 = smul.u32 16, %s15
      %p181 = scmp.lt.s32.totalorder %s180, 63
      %s182 = scalar_select %p181, %s180, 63
      %s183 = smul.addr %s182, 8
      %s184 = scalar_lea.vmem %s0, %s183
      %p185 = pneg %p36
      %p186 = pneg %p33
      %s187 = smul.u32 16, %s15
      %p188 = scmp.lt.s32.totalorder %s187, 63
      %s189 = scalar_select %p188, %s187, 63
      %s190 = smul.addr %s189, 8
      %s191 = scalar_lea.vmem %s1, %s190
      %p192 = pneg %p62
      %p193 = pneg %p59
      %p194 = pneg %p83
      %p195 = pneg %p80
      %p196 = pneg %p104
      %p197 = pneg %p101
      %p198 = pneg %p130
      %p199 = pneg %p127
      %s200 = smul.u32 16, %s15
      %p201 = scmp.lt.s32.totalorder %s200, 63
      %s202 = scalar_select %p201, %s200, 63
      %s203 = smul.addr %s202, 8
      %s204 = scalar_lea.vmem %s4, %s203
      %s205 = smul.u32 16, %s15
      %p206 = scmp.lt.s32.totalorder %s205, 63
      %s207 = scalar_select %p206, %s205, 63
      %s208 = smul.addr %s207, 8
      %s209 = scalar_lea.vmem %s0, %s208
      %s210 = smul.u32 16, %s15
      %s211 = smul.u32 16, %s15
      %p212 = scmp.lt.s32.totalorder %s211, 63
      %s213 = scalar_select %p212, %s211, 63
      %s214 = smul.addr %s213, 8
      %s215 = scalar_lea.vmem %s1, %s214
      %s216 = smul.u32 16, %s15
      %s217 = smul.u32 16, %s15
      %p218 = scmp.lt.s32.totalorder %s217, 63
      %s219 = scalar_select %p218, %s217, 63
      %s220 = smul.addr %s219, 8
      %s221 = scalar_lea.vmem %s4, %s220
      %s222 = smul.u32 16, %s15
      %v223 = vld [vmem:[%s209] sm:$0xff]
      %v224 = vld [vmem:[%s209 + $0x8] sm:$0xff]
      %v225 = vld [vmem:[%s209 + $0x10] sm:$0xff]
      %v226 = vld [vmem:[%s209 + $0x18] sm:$0xff]
      %v227 = vld [vmem:[%s209 + $0x20] sm:$0xff]
      %v228 = vld [vmem:[%s209 + $0x28] sm:$0xff]
      %v229 = vld [vmem:[%s209 + $0x30] sm:$0xff]
      %v230 = vld [vmem:[%s209 + $0x38] sm:$0xff]
      %v231 = vld [vmem:[%s209 + $0x40] sm:$0xff]
      %v232 = vld [vmem:[%s209 + $0x48] sm:$0xff]
      %v233 = vld [vmem:[%s209 + $0x50] sm:$0xff]
      %v234 = vld [vmem:[%s209 + $0x58] sm:$0xff]
      %v235 = vld [vmem:[%s209 + $0x60] sm:$0xff]
      %v236 = vld [vmem:[%s209 + $0x68] sm:$0xff]
      %v237 = vld [vmem:[%s209 + $0x70] sm:$0xff]
      %v238 = vld [vmem:[%s209 + $0x78] sm:$0xff]
      %v239 = vld [vmem:[%s2] sm:$0xff]
      %v240 = vld [vmem:[%s2 + $0x8] sm:$0xff]
      %v241 = vld [vmem:[%s2 + $0x10] sm:$0xff]
      %v242 = vld [vmem:[%s2 + $0x18] sm:$0xff]
      %v243 = vld [vmem:[%s215] sm:$0xff]
      %v244 = vld [vmem:[%s215 + $0x8] sm:$0xff]
      %v245 = vld [vmem:[%s215 + $0x10] sm:$0xff]
      %v246 = vld [vmem:[%s215 + $0x18] sm:$0xff]
      %v247 = vld [vmem:[%s215 + $0x20] sm:$0xff]
      %v248 = vld [vmem:[%s215 + $0x28] sm:$0xff]
      %v249 = vld [vmem:[%s215 + $0x30] sm:$0xff]
      %v250 = vld [vmem:[%s215 + $0x38] sm:$0xff]
      %v251 = vld [vmem:[%s215 + $0x40] sm:$0xff]
      %v252 = vld [vmem:[%s215 + $0x48] sm:$0xff]
      %v253 = vld [vmem:[%s215 + $0x50] sm:$0xff]
      %v254 = vld [vmem:[%s215 + $0x58] sm:$0xff]
      %v255 = vld [vmem:[%s215 + $0x60] sm:$0xff]
      %v256 = vld [vmem:[%s215 + $0x68] sm:$0xff]
      %v257 = vld [vmem:[%s215 + $0x70] sm:$0xff]
      %v258 = vld [vmem:[%s215 + $0x78] sm:$0xff]
      %s259 = scalar_lea.vmem %s2, 32
      %v260 = vld [vmem:[%s259] sm:$0xff]
      %v261 = vld [vmem:[%s259 + $0x8] sm:$0xff]
      %v262 = vld [vmem:[%s259 + $0x10] sm:$0xff]
      %v263 = vld [vmem:[%s259 + $0x18] sm:$0xff]
      %vm264 = vcmask 64512
      %v266 = vsel %vm264, %v243, 0
      %v269 = vsel %vm264, %v244, 0
      %v272 = vsel %vm264, %v245, 0
      %v275 = vsel %vm264, %v246, 0
      %v278 = vsel %vm264, %v247, 0
      %v281 = vsel %vm264, %v248, 0
      %v284 = vsel %vm264, %v249, 0
      %v287 = vsel %vm264, %v250, 0
      %v290 = vsel %vm264, %v251, 0
      %v293 = vsel %vm264, %v252, 0
      %v296 = vsel %vm264, %v253, 0
      %v299 = vsel %vm264, %v254, 0
      %v302 = vsel %vm264, %v255, 0
      %v305 = vsel %vm264, %v256, 0
      %v308 = vsel %vm264, %v257, 0
      %v311 = vsel %vm264, %v258, 0
      %313 = vmatprep.subr.mxu0 %v261
      %314 = vmatpush1.msra.mxu0 %v260
      %315 = vmatprep.subr.mxu0 0.0
      %316 = vmatpush1.msra.mxu0 0.0
      %317 = vmatprep.subr.mxu0 0.0
      %318 = vmatpush1.msra.mxu0 0.0
      %319 = vmatprep.subr.mxu0 0.0
      %320 = vmatpush1.msra.mxu0 0.0
      %321 = vmatprep.subr.mxu0 0.0
      %322 = vmatpush1.msra.mxu0 0.0
      %323 = vmatprep.subr.mxu0 0.0
      %324 = vmatpush1.msra.mxu0 0.0
      %325 = vmatprep.subr.mxu0 0.0
      %326 = vmatpush1.msra.mxu0 0.0
      %327 = vmatprep.subr.mxu0 0.0
      %328 = vmatpush1.msra.mxu0 0.0
      %329 = vmatprep.subr.mxu0 0.0
      %330 = vmatpush1.msra.mxu0 0.0
      %331 = vmatprep.subr.mxu0 0.0
      %332 = vmatpush1.msra.mxu0 0.0
      %333 = vmatprep.subr.mxu0 0.0
      %334 = vmatpush1.msra.mxu0 0.0
      %335 = vmatprep.subr.mxu0 0.0
      %336 = vmatpush1.msra.mxu0 0.0
      %337 = vmatprep.subr.mxu0 0.0
      %338 = vmatpush1.msra.mxu0 0.0
      %339 = vmatprep.subr.mxu0 0.0
      %340 = vmatpush1.msra.mxu0 0.0
      %341 = vmatprep.subr.mxu0 0.0
      %342 = vmatpush1.msra.mxu0 0.0
      %343 = vmatprep.subr.mxu0 0.0
      %344 = vmatpush1.msra.mxu0 0.0
      %345 = vmatprep.subr.mxu0 0.0
      %346 = vmatpush1.msra.mxu0 0.0
      %347 = vmatprep.subr.mxu0 0.0
      %348 = vmatpush1.msra.mxu0 0.0
      %349 = vmatprep.subr.mxu0 0.0
      %350 = vmatpush1.msra.mxu0 0.0
      %351 = vmatprep.subr.mxu0 0.0
      %352 = vmatpush1.msra.mxu0 0.0
      %353 = vmatprep.subr.mxu0 0.0
      %354 = vmatpush1.msra.mxu0 0.0
      %355 = vmatprep.subr.mxu0 0.0
      %356 = vmatpush1.msra.mxu0 0.0
      %357 = vmatprep.subr.mxu0 0.0
      %358 = vmatpush1.msra.mxu0 0.0
      %359 = vmatprep.subr.mxu0 0.0
      %360 = vmatpush1.msra.mxu0 0.0
      %361 = vmatprep.subr.mxu0 0.0
      %362 = vmatpush1.msra.mxu0 0.0
      %363 = vmatprep.subr.mxu0 0.0
      %364 = vmatpush1.msra.mxu0 0.0
      %365 = vmatprep.subr.mxu0 0.0
      %366 = vmatpush1.msra.mxu0 0.0
      %367 = vmatprep.subr.mxu0 0.0
      %368 = vmatpush1.msra.mxu0 0.0
      %369 = vmatprep.subr.mxu0 0.0
      %370 = vmatpush1.msra.mxu0 0.0
      %371 = vmatprep.subr.mxu0 0.0
      %372 = vmatpush1.msra.mxu0 0.0
      %373 = vmatprep.subr.mxu0 0.0
      %374 = vmatpush1.msra.mxu0 0.0
      %375 = vmatprep.subr.mxu0 0.0
      %376 = vmatpush1.msra.mxu0 0.0
      %377 = vmatprep.mubr.f32.mxu0 0.0
      %378 = vmatmul.mubr.f32.gmra.mrb[0].mxu0 %v266
      %v379 = vpop.f32.mrb[0].mxu0
      %v380 = vadd.f32 0.0, %v379
      %v381 = vpop.f32.mrb[0].mxu0
      %v382 = vadd.f32 0.0, %v381
      %383 = vmatprep.mubr.f32.mxu0 0.0
      %384 = vmatmul.mubr.f32.gmra.mrb[0].mxu0 %v269
      %v385 = vpop.f32.mrb[0].mxu0
      %v386 = vadd.f32 0.0, %v385
      %v387 = vpop.f32.mrb[0].mxu0
      %v388 = vadd.f32 0.0, %v387
      %389 = vmatprep.mubr.f32.mxu0 0.0
      %390 = vmatmul.mubr.f32.gmra.mrb[0].mxu0 %v272
      %v391 = vpop.f32.mrb[0].mxu0
      %v392 = vadd.f32 0.0, %v391
      %v393 = vpop.f32.mrb[0].mxu0
      %v394 = vadd.f32 0.0, %v393
      %395 = vmatprep.mubr.f32.mxu0 0.0
      %396 = vmatmul.mubr.f32.gmra.mrb[0].mxu0 %v275
      %v397 = vpop.f32.mrb[0].mxu0
      %v398 = vadd.f32 0.0, %v397
      %v399 = vpop.f32.mrb[0].mxu0
      %v400 = vadd.f32 0.0, %v399
      %401 = vmatprep.mubr.f32.mxu0 0.0
      %402 = vmatmul.mubr.f32.gmra.mrb[0].mxu0 %v278
      %v403 = vpop.f32.mrb[0].mxu0
      %v404 = vadd.f32 0.0, %v403
      %v405 = vpop.f32.mrb[0].mxu0
      %v406 = vadd.f32 0.0, %v405
      %407 = vmatprep.mubr.f32.mxu0 0.0
      %408 = vmatmul.mubr.f32.gmra.mrb[0].mxu0 %v281
      %v409 = vpop.f32.mrb[0].mxu0
      %v410 = vadd.f32 0.0, %v409
      %v411 = vpop.f32.mrb[0].mxu0
      %v412 = vadd.f32 0.0, %v411
      %413 = vmatprep.mubr.f32.mxu0 0.0
      %414 = vmatmul.mubr.f32.gmra.mrb[0].mxu0 %v284
      %v415 = vpop.f32.mrb[0].mxu0
      %v416 = vadd.f32 0.0, %v415
      %v417 = vpop.f32.mrb[0].mxu0
      %v418 = vadd.f32 0.0, %v417
      %419 = vmatprep.mubr.f32.mxu0 0.0
      %420 = vmatmul.mubr.f32.gmra.mrb[0].mxu0 %v287
      %v421 = vpop.f32.mrb[0].mxu0
      %v422 = vadd.f32 0.0, %v421
      %v423 = vpop.f32.mrb[0].mxu0
      %v424 = vadd.f32 0.0, %v423
      %425 = vmatprep.mubr.f32.mxu0 0.0
      %426 = vmatmul.mubr.f32.gmra.mrb[0].mxu0 %v290
      %v427 = vpop.f32.mrb[0].mxu0
      %v428 = vadd.f32 0.0, %v427
      %v429 = vpop.f32.mrb[0].mxu0
      %v430 = vadd.f32 0.0, %v429
      %431 = vmatprep.mubr.f32.mxu0 0.0
      %432 = vmatmul.mubr.f32.gmra.mrb[0].mxu0 %v293
      %v433 = vpop.f32.mrb[0].mxu0
      %v434 = vadd.f32 0.0, %v433
      %v435 = vpop.f32.mrb[0].mxu0
      %v436 = vadd.f32 0.0, %v435
      %437 = vmatprep.mubr.f32.mxu0 0.0
      %438 = vmatmul.mubr.f32.gmra.mrb[0].mxu0 %v296
      %v439 = vpop.f32.mrb[0].mxu0
      %v440 = vadd.f32 0.0, %v439
      %v441 = vpop.f32.mrb[0].mxu0
      %v442 = vadd.f32 0.0, %v441
      %443 = vmatprep.mubr.f32.mxu0 0.0
      %444 = vmatmul.mubr.f32.gmra.mrb[0].mxu0 %v299
      %v445 = vpop.f32.mrb[0].mxu0
      %v446 = vadd.f32 0.0, %v445
      %v447 = vpop.f32.mrb[0].mxu0
      %v448 = vadd.f32 0.0, %v447
      %449 = vmatprep.mubr.f32.mxu0 0.0
      %450 = vmatmul.mubr.f32.gmra.mrb[0].mxu0 %v302
      %v451 = vpop.f32.mrb[0].mxu0
      %v452 = vadd.f32 0.0, %v451
      %v453 = vpop.f32.mrb[0].mxu0
      %v454 = vadd.f32 0.0, %v453
      %455 = vmatprep.mubr.f32.mxu0 0.0
      %456 = vmatmul.mubr.f32.gmra.mrb[0].mxu0 %v305
      %v457 = vpop.f32.mrb[0].mxu0
      %v458 = vadd.f32 0.0, %v457
      %v459 = vpop.f32.mrb[0].mxu0
      %v460 = vadd.f32 0.0, %v459
      %461 = vmatprep.mubr.f32.mxu0 0.0
      %462 = vmatmul.mubr.f32.gmra.mrb[0].mxu0 %v308
      %v463 = vpop.f32.mrb[0].mxu0
      %v464 = vadd.f32 0.0, %v463
      %v465 = vpop.f32.mrb[0].mxu0
      %v466 = vadd.f32 0.0, %v465
      %467 = vmatprep.mubr.f32.mxu0 0.0
      %468 = vmatmul.mubr.f32.gmra.mrb[0].mxu0 %v311
      %v469 = vpop.f32.mrb[0].mxu0
      %v470 = vadd.f32 0.0, %v469
      %v471 = vpop.f32.mrb[0].mxu0
      %v472 = vadd.f32 0.0, %v471
      %473 = vdwg.mxu0
      %474 = vmatprep.subr.mxu0 %v263
      %475 = vmatpush1.msra.mxu0 %v262
      %476 = vmatprep.subr.mxu0 0.0
      %477 = vmatpush1.msra.mxu0 0.0
      %478 = vmatprep.subr.mxu0 0.0
      %479 = vmatpush1.msra.mxu0 0.0
      %480 = vmatprep.subr.mxu0 0.0
      %481 = vmatpush1.msra.mxu0 0.0
      %482 = vmatprep.subr.mxu0 0.0
      %483 = vmatpush1.msra.mxu0 0.0
      %484 = vmatprep.subr.mxu0 0.0
      %485 = vmatpush1.msra.mxu0 0.0
      %486 = vmatprep.subr.mxu0 0.0
      %487 = vmatpush1.msra.mxu0 0.0
      %488 = vmatprep.subr.mxu0 0.0
      %489 = vmatpush1.msra.mxu0 0.0
      %490 = vmatprep.subr.mxu0 0.0
      %491 = vmatpush1.msra.mxu0 0.0
      %492 = vmatprep.subr.mxu0 0.0
      %493 = vmatpush1.msra.mxu0 0.0
      %494 = vmatprep.subr.mxu0 0.0
      %495 = vmatpush1.msra.mxu0 0.0
      %496 = vmatprep.subr.mxu0 0.0
      %497 = vmatpush1.msra.mxu0 0.0
      %498 = vmatprep.subr.mxu0 0.0
      %499 = vmatpush1.msra.mxu0 0.0
      %500 = vmatprep.subr.mxu0 0.0
      %501 = vmatpush1.msra.mxu0 0.0
      %502 = vmatprep.subr.mxu0 0.0
      %503 = vmatpush1.msra.mxu0 0.0
      %504 = vmatprep.subr.mxu0 0.0
      %505 = vmatpush1.msra.mxu0 0.0
      %506 = vmatprep.subr.mxu0 0.0
      %507 = vmatpush1.msra.mxu0 0.0
      %508 = vmatprep.subr.mxu0 0.0
      %509 = vmatpush1.msra.mxu0 0.0
      %510 = vmatprep.subr.mxu0 0.0
      %511 = vmatpush1.msra.mxu0 0.0
      %512 = vmatprep.subr.mxu0 0.0
      %513 = vmatpush1.msra.mxu0 0.0
      %514 = vmatprep.subr.mxu0 0.0
      %515 = vmatpush1.msra.mxu0 0.0
      %516 = vmatprep.subr.mxu0 0.0
      %517 = vmatpush1.msra.mxu0 0.0
      %518 = vmatprep.subr.mxu0 0.0
      %519 = vmatpush1.msra.mxu0 0.0
      %520 = vmatprep.subr.mxu0 0.0
      %521 = vmatpush1.msra.mxu0 0.0
      %522 = vmatprep.subr.mxu0 0.0
      %523 = vmatpush1.msra.mxu0 0.0
      %524 = vmatprep.subr.mxu0 0.0
      %525 = vmatpush1.msra.mxu0 0.0
      %526 = vmatprep.subr.mxu0 0.0
      %527 = vmatpush1.msra.mxu0 0.0
      %528 = vmatprep.subr.mxu0 0.0
      %529 = vmatpush1.msra.mxu0 0.0
      %530 = vmatprep.subr.mxu0 0.0
      %531 = vmatpush1.msra.mxu0 0.0
      %532 = vmatprep.subr.mxu0 0.0
      %533 = vmatpush1.msra.mxu0 0.0
      %534 = vmatprep.subr.mxu0 0.0
      %535 = vmatpush1.msra.mxu0 0.0
      %536 = vmatprep.subr.mxu0 0.0
      %537 = vmatpush1.msra.mxu0 0.0
      %538 = vmatprep.mubr.f32.mxu0 0.0
      %539 = vmatmul.mubr.f32.gmra.mrb[0].mxu0 %v266
      %v540 = vpop.f32.mrb[0].mxu0
      %v541 = vadd.f32 0.0, %v540
      %v542 = vpop.f32.mrb[0].mxu0
      %v543 = vadd.f32 0.0, %v542
      %544 = vmatprep.mubr.f32.mxu0 0.0
      %545 = vmatmul.mubr.f32.gmra.mrb[0].mxu0 %v269
      %v546 = vpop.f32.mrb[0].mxu0
      %v547 = vadd.f32 0.0, %v546
      %v548 = vpop.f32.mrb[0].mxu0
      %v549 = vadd.f32 0.0, %v548
      %550 = vmatprep.mubr.f32.mxu0 0.0
      %551 = vmatmul.mubr.f32.gmra.mrb[0].mxu0 %v272
      %v552 = vpop.f32.mrb[0].mxu0
      %v553 = vadd.f32 0.0, %v552
      %v554 = vpop.f32.mrb[0].mxu0
      %v555 = vadd.f32 0.0, %v554
      %556 = vmatprep.mubr.f32.mxu0 0.0
      %557 = vmatmul.mubr.f32.gmra.mrb[0].mxu0 %v275
      %v558 = vpop.f32.mrb[0].mxu0
      %v559 = vadd.f32 0.0, %v558
      %v560 = vpop.f32.mrb[0].mxu0
      %v561 = vadd.f32 0.0, %v560
      %562 = vmatprep.mubr.f32.mxu0 0.0
      %563 = vmatmul.mubr.f32.gmra.mrb[0].mxu0 %v278
      %v564 = vpop.f32.mrb[0].mxu0
      %v565 = vadd.f32 0.0, %v564
      %v566 = vpop.f32.mrb[0].mxu0
      %v567 = vadd.f32 0.0, %v566
      %568 = vmatprep.mubr.f32.mxu0 0.0
      %569 = vmatmul.mubr.f32.gmra.mrb[0].mxu0 %v281
      %v570 = vpop.f32.mrb[0].mxu0
      %v571 = vadd.f32 0.0, %v570
      %v572 = vpop.f32.mrb[0].mxu0
      %v573 = vadd.f32 0.0, %v572
      %574 = vmatprep.mubr.f32.mxu0 0.0
      %575 = vmatmul.mubr.f32.gmra.mrb[0].mxu0 %v284
      %v576 = vpop.f32.mrb[0].mxu0
      %v577 = vadd.f32 0.0, %v576
      %v578 = vpop.f32.mrb[0].mxu0
      %v579 = vadd.f32 0.0, %v578
      %580 = vmatprep.mubr.f32.mxu0 0.0
      %581 = vmatmul.mubr.f32.gmra.mrb[0].mxu0 %v287
      %v582 = vpop.f32.mrb[0].mxu0
      %v583 = vadd.f32 0.0, %v582
      %v584 = vpop.f32.mrb[0].mxu0
      %v585 = vadd.f32 0.0, %v584
      %586 = vmatprep.mubr.f32.mxu0 0.0
      %587 = vmatmul.mubr.f32.gmra.mrb[0].mxu0 %v290
      %v588 = vpop.f32.mrb[0].mxu0
      %v589 = vadd.f32 0.0, %v588
      %v590 = vpop.f32.mrb[0].mxu0
      %v591 = vadd.f32 0.0, %v590
      %592 = vmatprep.mubr.f32.mxu0 0.0
      %593 = vmatmul.mubr.f32.gmra.mrb[0].mxu0 %v293
      %v594 = vpop.f32.mrb[0].mxu0
      %v595 = vadd.f32 0.0, %v594
      %v596 = vpop.f32.mrb[0].mxu0
      %v597 = vadd.f32 0.0, %v596
      %598 = vmatprep.mubr.f32.mxu0 0.0
      %599 = vmatmul.mubr.f32.gmra.mrb[0].mxu0 %v296
      %v600 = vpop.f32.mrb[0].mxu0
      %v601 = vadd.f32 0.0, %v600
      %v602 = vpop.f32.mrb[0].mxu0
      %v603 = vadd.f32 0.0, %v602
      %604 = vmatprep.mubr.f32.mxu0 0.0
      %605 = vmatmul.mubr.f32.gmra.mrb[0].mxu0 %v299
      %v606 = vpop.f32.mrb[0].mxu0
      %v607 = vadd.f32 0.0, %v606
      %v608 = vpop.f32.mrb[0].mxu0
      %v609 = vadd.f32 0.0, %v608
      %610 = vmatprep.mubr.f32.mxu0 0.0
      %611 = vmatmul.mubr.f32.gmra.mrb[0].mxu0 %v302
      %v612 = vpop.f32.mrb[0].mxu0
      %v613 = vadd.f32 0.0, %v612
      %v614 = vpop.f32.mrb[0].mxu0
      %v615 = vadd.f32 0.0, %v614
      %616 = vmatprep.mubr.f32.mxu0 0.0
      %617 = vmatmul.mubr.f32.gmra.mrb[0].mxu0 %v305
      %v618 = vpop.f32.mrb[0].mxu0
      %v619 = vadd.f32 0.0, %v618
      %v620 = vpop.f32.mrb[0].mxu0
      %v621 = vadd.f32 0.0, %v620
      %622 = vmatprep.mubr.f32.mxu0 0.0
      %623 = vmatmul.mubr.f32.gmra.mrb[0].mxu0 %v308
      %v624 = vpop.f32.mrb[0].mxu0
      %v625 = vadd.f32 0.0, %v624
      %v626 = vpop.f32.mrb[0].mxu0
      %v627 = vadd.f32 0.0, %v626
      %628 = vmatprep.mubr.f32.mxu0 0.0
      %629 = vmatmul.mubr.f32.gmra.mrb[0].mxu0 %v311
      %v630 = vpop.f32.mrb[0].mxu0
      %v631 = vadd.f32 0.0, %v630
      %v632 = vpop.f32.mrb[0].mxu0
      %v633 = vadd.f32 0.0, %v632
      %634 = vdwg.mxu0
      %v636 = vsel %vm264, %v223, 0
      %v639 = vsel %vm264, %v224, 0
      %v642 = vsel %vm264, %v225, 0
      %v645 = vsel %vm264, %v226, 0
      %v648 = vsel %vm264, %v227, 0
      %v651 = vsel %vm264, %v228, 0
      %v654 = vsel %vm264, %v229, 0
      %v657 = vsel %vm264, %v230, 0
      %v660 = vsel %vm264, %v231, 0
      %v663 = vsel %vm264, %v232, 0
      %v666 = vsel %vm264, %v233, 0
      %v669 = vsel %vm264, %v234, 0
      %v672 = vsel %vm264, %v235, 0
      %v675 = vsel %vm264, %v236, 0
      %v678 = vsel %vm264, %v237, 0
      %v681 = vsel %vm264, %v238, 0
      %683 = vmatprep.subr.mxu0 %v240
      %684 = vmatpush1.msra.mxu0 %v239
      %685 = vmatprep.subr.mxu0 0.0
      %686 = vmatpush1.msra.mxu0 0.0
      %687 = vmatprep.subr.mxu0 0.0
      %688 = vmatpush1.msra.mxu0 0.0
      %689 = vmatprep.subr.mxu0 0.0
      %690 = vmatpush1.msra.mxu0 0.0
      %691 = vmatprep.subr.mxu0 0.0
      %692 = vmatpush1.msra.mxu0 0.0
      %693 = vmatprep.subr.mxu0 0.0
      %694 = vmatpush1.msra.mxu0 0.0
      %695 = vmatprep.subr.mxu0 0.0
      %696 = vmatpush1.msra.mxu0 0.0
      %697 = vmatprep.subr.mxu0 0.0
      %698 = vmatpush1.msra.mxu0 0.0
      %699 = vmatprep.subr.mxu0 0.0
      %700 = vmatpush1.msra.mxu0 0.0
      %701 = vmatprep.subr.mxu0 0.0
      %702 = vmatpush1.msra.mxu0 0.0
      %703 = vmatprep.subr.mxu0 0.0
      %704 = vmatpush1.msra.mxu0 0.0
      %705 = vmatprep.subr.mxu0 0.0
      %706 = vmatpush1.msra.mxu0 0.0
      %707 = vmatprep.subr.mxu0 0.0
      %708 = vmatpush1.msra.mxu0 0.0
      %709 = vmatprep.subr.mxu0 0.0
      %710 = vmatpush1.msra.mxu0 0.0
      %711 = vmatprep.subr.mxu0 0.0
      %712 = vmatpush1.msra.mxu0 0.0
      %713 = vmatprep.subr.mxu0 0.0
      %714 = vmatpush1.msra.mxu0 0.0
      %715 = vmatprep.subr.mxu0 0.0
      %716 = vmatpush1.msra.mxu0 0.0
      %717 = vmatprep.subr.mxu0 0.0
      %718 = vmatpush1.msra.mxu0 0.0
      %719 = vmatprep.subr.mxu0 0.0
      %720 = vmatpush1.msra.mxu0 0.0
      %721 = vmatprep.subr.mxu0 0.0
      %722 = vmatpush1.msra.mxu0 0.0
      %723 = vmatprep.subr.mxu0 0.0
      %724 = vmatpush1.msra.mxu0 0.0
      %725 = vmatprep.subr.mxu0 0.0
      %726 = vmatpush1.msra.mxu0 0.0
      %727 = vmatprep.subr.mxu0 0.0
      %728 = vmatpush1.msra.mxu0 0.0
      %729 = vmatprep.subr.mxu0 0.0
      %730 = vmatpush1.msra.mxu0 0.0
      %731 = vmatprep.subr.mxu0 0.0
      %732 = vmatpush1.msra.mxu0 0.0
      %733 = vmatprep.subr.mxu0 0.0
      %734 = vmatpush1.msra.mxu0 0.0
      %735 = vmatprep.subr.mxu0 0.0
      %736 = vmatpush1.msra.mxu0 0.0
      %737 = vmatprep.subr.mxu0 0.0
      %738 = vmatpush1.msra.mxu0 0.0
      %739 = vmatprep.subr.mxu0 0.0
      %740 = vmatpush1.msra.mxu0 0.0
      %741 = vmatprep.subr.mxu0 0.0
      %742 = vmatpush1.msra.mxu0 0.0
      %743 = vmatprep.subr.mxu0 0.0
      %744 = vmatpush1.msra.mxu0 0.0
      %745 = vmatprep.subr.mxu0 0.0
      %746 = vmatpush1.msra.mxu0 0.0
      %747 = vmatprep.mubr.f32.mxu0 0.0
      %748 = vmatmul.mubr.f32.gmra.mrb[0].mxu0 %v636
      %v749 = vpop.f32.mrb[0].mxu0
      %v750 = vadd.f32 %v380, %v749
      %v751 = vpop.f32.mrb[0].mxu0
      %v752 = vadd.f32 %v382, %v751
      %753 = vmatprep.mubr.f32.mxu0 0.0
      %754 = vmatmul.mubr.f32.gmra.mrb[0].mxu0 %v639
      %v755 = vpop.f32.mrb[0].mxu0
      %v756 = vadd.f32 %v386, %v755
      %v757 = vpop.f32.mrb[0].mxu0
      %v758 = vadd.f32 %v388, %v757
      %759 = vmatprep.mubr.f32.mxu0 0.0
      %760 = vmatmul.mubr.f32.gmra.mrb[0].mxu0 %v642
      %v761 = vpop.f32.mrb[0].mxu0
      %v762 = vadd.f32 %v392, %v761
      %v763 = vpop.f32.mrb[0].mxu0
      %v764 = vadd.f32 %v394, %v763
      %765 = vmatprep.mubr.f32.mxu0 0.0
      %766 = vmatmul.mubr.f32.gmra.mrb[0].mxu0 %v645
      %v767 = vpop.f32.mrb[0].mxu0
      %v768 = vadd.f32 %v398, %v767
      %v769 = vpop.f32.mrb[0].mxu0
      %v770 = vadd.f32 %v400, %v769
      %771 = vmatprep.mubr.f32.mxu0 0.0
      %772 = vmatmul.mubr.f32.gmra.mrb[0].mxu0 %v648
      %v773 = vpop.f32.mrb[0].mxu0
      %v774 = vadd.f32 %v404, %v773
      %v775 = vpop.f32.mrb[0].mxu0
      %v776 = vadd.f32 %v406, %v775
      %777 = vmatprep.mubr.f32.mxu0 0.0
      %778 = vmatmul.mubr.f32.gmra.mrb[0].mxu0 %v651
      %v779 = vpop.f32.mrb[0].mxu0
      %v780 = vadd.f32 %v410, %v779
      %v781 = vpop.f32.mrb[0].mxu0
      %v782 = vadd.f32 %v412, %v781
      %783 = vmatprep.mubr.f32.mxu0 0.0
      %784 = vmatmul.mubr.f32.gmra.mrb[0].mxu0 %v654
      %v785 = vpop.f32.mrb[0].mxu0
      %v786 = vadd.f32 %v416, %v785
      %v787 = vpop.f32.mrb[0].mxu0
      %v788 = vadd.f32 %v418, %v787
      %789 = vmatprep.mubr.f32.mxu0 0.0
      %790 = vmatmul.mubr.f32.gmra.mrb[0].mxu0 %v657
      %v791 = vpop.f32.mrb[0].mxu0
      %v792 = vadd.f32 %v422, %v791
      %v793 = vpop.f32.mrb[0].mxu0
      %v794 = vadd.f32 %v424, %v793
      %795 = vmatprep.mubr.f32.mxu0 0.0
      %796 = vmatmul.mubr.f32.gmra.mrb[0].mxu0 %v660
      %v797 = vpop.f32.mrb[0].mxu0
      %v798 = vadd.f32 %v428, %v797
      %v799 = vpop.f32.mrb[0].mxu0
      %v800 = vadd.f32 %v430, %v799
      %801 = vmatprep.mubr.f32.mxu0 0.0
      %802 = vmatmul.mubr.f32.gmra.mrb[0].mxu0 %v663
      %v803 = vpop.f32.mrb[0].mxu0
      %v804 = vadd.f32 %v434, %v803
      %v805 = vpop.f32.mrb[0].mxu0
      %v806 = vadd.f32 %v436, %v805
      %807 = vmatprep.mubr.f32.mxu0 0.0
      %808 = vmatmul.mubr.f32.gmra.mrb[0].mxu0 %v666
      %v809 = vpop.f32.mrb[0].mxu0
      %v810 = vadd.f32 %v440, %v809
      %v811 = vpop.f32.mrb[0].mxu0
      %v812 = vadd.f32 %v442, %v811
      %813 = vmatprep.mubr.f32.mxu0 0.0
      %814 = vmatmul.mubr.f32.gmra.mrb[0].mxu0 %v669
      %v815 = vpop.f32.mrb[0].mxu0
      %v816 = vadd.f32 %v446, %v815
      %v817 = vpop.f32.mrb[0].mxu0
      %v818 = vadd.f32 %v448, %v817
      %819 = vmatprep.mubr.f32.mxu0 0.0
      %820 = vmatmul.mubr.f32.gmra.mrb[0].mxu0 %v672
      %v821 = vpop.f32.mrb[0].mxu0
      %v822 = vadd.f32 %v452, %v821
      %v823 = vpop.f32.mrb[0].mxu0
      %v824 = vadd.f32 %v454, %v823
      %825 = vmatprep.mubr.f32.mxu0 0.0
      %826 = vmatmul.mubr.f32.gmra.mrb[0].mxu0 %v675
      %v827 = vpop.f32.mrb[0].mxu0
      %v828 = vadd.f32 %v458, %v827
      %v829 = vpop.f32.mrb[0].mxu0
      %v830 = vadd.f32 %v460, %v829
      %831 = vmatprep.mubr.f32.mxu0 0.0
      %832 = vmatmul.mubr.f32.gmra.mrb[0].mxu0 %v678
      %v833 = vpop.f32.mrb[0].mxu0
      %v834 = vadd.f32 %v464, %v833
      %v835 = vpop.f32.mrb[0].mxu0
      %v836 = vadd.f32 %v466, %v835
      %837 = vmatprep.mubr.f32.mxu0 0.0
      %838 = vmatmul.mubr.f32.gmra.mrb[0].mxu0 %v681
      %v839 = vpop.f32.mrb[0].mxu0
      %v840 = vadd.f32 %v470, %v839
      %v841 = vpop.f32.mrb[0].mxu0
      %v842 = vadd.f32 %v472, %v841
      %843 = vdwg.mxu0
      %844 = vmatprep.subr.mxu0 %v242
      %845 = vmatpush1.msra.mxu0 %v241
      %846 = vmatprep.subr.mxu0 0.0
      %847 = vmatpush1.msra.mxu0 0.0
      %848 = vmatprep.subr.mxu0 0.0
      %849 = vmatpush1.msra.mxu0 0.0
      %850 = vmatprep.subr.mxu0 0.0
      %851 = vmatpush1.msra.mxu0 0.0
      %852 = vmatprep.subr.mxu0 0.0
      %853 = vmatpush1.msra.mxu0 0.0
      %854 = vmatprep.subr.mxu0 0.0
      %855 = vmatpush1.msra.mxu0 0.0
      %856 = vmatprep.subr.mxu0 0.0
      %857 = vmatpush1.msra.mxu0 0.0
      %858 = vmatprep.subr.mxu0 0.0
      %859 = vmatpush1.msra.mxu0 0.0
      %860 = vmatprep.subr.mxu0 0.0
      %861 = vmatpush1.msra.mxu0 0.0
      %862 = vmatprep.subr.mxu0 0.0
      %863 = vmatpush1.msra.mxu0 0.0
      %864 = vmatprep.subr.mxu0 0.0
      %865 = vmatpush1.msra.mxu0 0.0
      %866 = vmatprep.subr.mxu0 0.0
      %867 = vmatpush1.msra.mxu0 0.0
      %868 = vmatprep.subr.mxu0 0.0
      %869 = vmatpush1.msra.mxu0 0.0
      %870 = vmatprep.subr.mxu0 0.0
      %871 = vmatpush1.msra.mxu0 0.0
      %872 = vmatprep.subr.mxu0 0.0
      %873 = vmatpush1.msra.mxu0 0.0
      %874 = vmatprep.subr.mxu0 0.0
      %875 = vmatpush1.msra.mxu0 0.0
      %876 = vmatprep.subr.mxu0 0.0
      %877 = vmatpush1.msra.mxu0 0.0
      %878 = vmatprep.subr.mxu0 0.0
      %879 = vmatpush1.msra.mxu0 0.0
      %880 = vmatprep.subr.mxu0 0.0
      %881 = vmatpush1.msra.mxu0 0.0
      %882 = vmatprep.subr.mxu0 0.0
      %883 = vmatpush1.msra.mxu0 0.0
      %884 = vmatprep.subr.mxu0 0.0
      %885 = vmatpush1.msra.mxu0 0.0
      %886 = vmatprep.subr.mxu0 0.0
      %887 = vmatpush1.msra.mxu0 0.0
      %888 = vmatprep.subr.mxu0 0.0
      %889 = vmatpush1.msra.mxu0 0.0
      %890 = vmatprep.subr.mxu0 0.0
      %891 = vmatpush1.msra.mxu0 0.0
      %892 = vmatprep.subr.mxu0 0.0
      %893 = vmatpush1.msra.mxu0 0.0
      %894 = vmatprep.subr.mxu0 0.0
      %895 = vmatpush1.msra.mxu0 0.0
      %896 = vmatprep.subr.mxu0 0.0
      %897 = vmatpush1.msra.mxu0 0.0
      %898 = vmatprep.subr.mxu0 0.0
      %899 = vmatpush1.msra.mxu0 0.0
      %900 = vmatprep.subr.mxu0 0.0
      %901 = vmatpush1.msra.mxu0 0.0
      %902 = vmatprep.subr.mxu0 0.0
      %903 = vmatpush1.msra.mxu0 0.0
      %904 = vmatprep.subr.mxu0 0.0
      %905 = vmatpush1.msra.mxu0 0.0
      %906 = vmatprep.subr.mxu0 0.0
      %907 = vmatpush1.msra.mxu0 0.0
      %908 = vmatprep.mubr.f32.mxu0 0.0
      %909 = vmatmul.mubr.f32.gmra.mrb[0].mxu0 %v636
      %v910 = vpop.f32.mrb[0].mxu0
      %v911 = vadd.f32 %v541, %v910
      %v912 = vpop.f32.mrb[0].mxu0
      %v913 = vadd.f32 %v543, %v912
      %914 = vmatprep.mubr.f32.mxu0 0.0
      %915 = vmatmul.mubr.f32.gmra.mrb[0].mxu0 %v639
      %v916 = vpop.f32.mrb[0].mxu0
      %v917 = vadd.f32 %v547, %v916
      %v918 = vpop.f32.mrb[0].mxu0
      %v919 = vadd.f32 %v549, %v918
      %920 = vmatprep.mubr.f32.mxu0 0.0
      %921 = vmatmul.mubr.f32.gmra.mrb[0].mxu0 %v642
      %v922 = vpop.f32.mrb[0].mxu0
      %v923 = vadd.f32 %v553, %v922
      %v924 = vpop.f32.mrb[0].mxu0
      %v925 = vadd.f32 %v555, %v924
      %926 = vmatprep.mubr.f32.mxu0 0.0
      %927 = vmatmul.mubr.f32.gmra.mrb[0].mxu0 %v645
      %v928 = vpop.f32.mrb[0].mxu0
      %v929 = vadd.f32 %v559, %v928
      %v930 = vpop.f32.mrb[0].mxu0
      %v931 = vadd.f32 %v561, %v930
      %932 = vmatprep.mubr.f32.mxu0 0.0
      %933 = vmatmul.mubr.f32.gmra.mrb[0].mxu0 %v648
      %v934 = vpop.f32.mrb[0].mxu0
      %v935 = vadd.f32 %v565, %v934
      %v936 = vpop.f32.mrb[0].mxu0
      %v937 = vadd.f32 %v567, %v936
      %938 = vmatprep.mubr.f32.mxu0 0.0
      %939 = vmatmul.mubr.f32.gmra.mrb[0].mxu0 %v651
      %v940 = vpop.f32.mrb[0].mxu0
      %v941 = vadd.f32 %v571, %v940
      %v942 = vpop.f32.mrb[0].mxu0
      %v943 = vadd.f32 %v573, %v942
      %944 = vmatprep.mubr.f32.mxu0 0.0
      %945 = vmatmul.mubr.f32.gmra.mrb[0].mxu0 %v654
      %v946 = vpop.f32.mrb[0].mxu0
      %v947 = vadd.f32 %v577, %v946
      %v948 = vpop.f32.mrb[0].mxu0
      %v949 = vadd.f32 %v579, %v948
      %950 = vmatprep.mubr.f32.mxu0 0.0
      %951 = vmatmul.mubr.f32.gmra.mrb[0].mxu0 %v657
      %v952 = vpop.f32.mrb[0].mxu0
      %v953 = vadd.f32 %v583, %v952
      %v954 = vpop.f32.mrb[0].mxu0
      %v955 = vadd.f32 %v585, %v954
      %956 = vmatprep.mubr.f32.mxu0 0.0
      %957 = vmatmul.mubr.f32.gmra.mrb[0].mxu0 %v660
      %v958 = vpop.f32.mrb[0].mxu0
      %v959 = vadd.f32 %v589, %v958
      %v960 = vpop.f32.mrb[0].mxu0
      %v961 = vadd.f32 %v591, %v960
      %962 = vmatprep.mubr.f32.mxu0 0.0
      %963 = vmatmul.mubr.f32.gmra.mrb[0].mxu0 %v663
      %v964 = vpop.f32.mrb[0].mxu0
      %v965 = vadd.f32 %v595, %v964
      %v966 = vpop.f32.mrb[0].mxu0
      %v967 = vadd.f32 %v597, %v966
      %968 = vmatprep.mubr.f32.mxu0 0.0
      %969 = vmatmul.mubr.f32.gmra.mrb[0].mxu0 %v666
      %v970 = vpop.f32.mrb[0].mxu0
      %v971 = vadd.f32 %v601, %v970
      %v972 = vpop.f32.mrb[0].mxu0
      %v973 = vadd.f32 %v603, %v972
      %974 = vmatprep.mubr.f32.mxu0 0.0
      %975 = vmatmul.mubr.f32.gmra.mrb[0].mxu0 %v669
      %v976 = vpop.f32.mrb[0].mxu0
      %v977 = vadd.f32 %v607, %v976
      %v978 = vpop.f32.mrb[0].mxu0
      %v979 = vadd.f32 %v609, %v978
      %980 = vmatprep.mubr.f32.mxu0 0.0
      %981 = vmatmul.mubr.f32.gmra.mrb[0].mxu0 %v672
      %v982 = vpop.f32.mrb[0].mxu0
      %v983 = vadd.f32 %v613, %v982
      %v984 = vpop.f32.mrb[0].mxu0
      %v985 = vadd.f32 %v615, %v984
      %986 = vmatprep.mubr.f32.mxu0 0.0
      %987 = vmatmul.mubr.f32.gmra.mrb[0].mxu0 %v675
      %v988 = vpop.f32.mrb[0].mxu0
      %v989 = vadd.f32 %v619, %v988
      %v990 = vpop.f32.mrb[0].mxu0
      %v991 = vadd.f32 %v621, %v990
      %992 = vmatprep.mubr.f32.mxu0 0.0
      %993 = vmatmul.mubr.f32.gmra.mrb[0].mxu0 %v678
      %v994 = vpop.f32.mrb[0].mxu0
      %v995 = vadd.f32 %v625, %v994
      %v996 = vpop.f32.mrb[0].mxu0
      %v997 = vadd.f32 %v627, %v996
      %998 = vmatprep.mubr.f32.mxu0 0.0
      %999 = vmatmul.mubr.f32.gmra.mrb[0].mxu0 %v681
      %v1000 = vpop.f32.mrb[0].mxu0
      %v1001 = vadd.f32 %v631, %v1000
      %v1002 = vpop.f32.mrb[0].mxu0
      %v1003 = vadd.f32 %v633, %v1002
      %1004 = vdwg.mxu0
      %v1005 = vmax.f32 %v750, %v752
      %v1006 = vmax.f32 %v756, %v758
      %v1007 = vmax.f32 %v762, %v764
      %v1008 = vmax.f32 %v768, %v770
      %v1009 = vmax.f32 %v774, %v776
      %v1010 = vmax.f32 %v780, %v782
      %v1011 = vmax.f32 %v786, %v788
      %v1012 = vmax.f32 %v792, %v794
      %v1013 = vmax.f32 %v798, %v800
      %v1014 = vmax.f32 %v804, %v806
      %v1015 = vmax.f32 %v810, %v812
      %v1016 = vmax.f32 %v816, %v818
      %v1017 = vmax.f32 %v822, %v824
      %v1018 = vmax.f32 %v828, %v830
      %v1019 = vmax.f32 %v834, %v836
      %v1020 = vmax.f32 %v840, %v842
      %v1021 = vmax.f32 %v911, %v913
      %v1022 = vmax.f32 %v917, %v919
      %v1023 = vmax.f32 %v923, %v925
      %v1024 = vmax.f32 %v929, %v931
      %v1025 = vmax.f32 %v935, %v937
      %v1026 = vmax.f32 %v941, %v943
      %v1027 = vmax.f32 %v947, %v949
      %v1028 = vmax.f32 %v953, %v955
      %v1029 = vmax.f32 %v959, %v961
      %v1030 = vmax.f32 %v965, %v967
      %v1031 = vmax.f32 %v971, %v973
      %v1032 = vmax.f32 %v977, %v979
      %v1033 = vmax.f32 %v983, %v985
      %v1034 = vmax.f32 %v989, %v991
      %v1035 = vmax.f32 %v995, %v997
      %v1036 = vmax.f32 %v1001, %v1003
      %v1037 = vmax.f32 %v1005, %v1021
      %v1038 = vmax.f32 %v1006, %v1022
      %v1039 = vmax.f32 %v1007, %v1023
      %v1040 = vmax.f32 %v1008, %v1024
      %v1041 = vmax.f32 %v1009, %v1025
      %v1042 = vmax.f32 %v1010, %v1026
      %v1043 = vmax.f32 %v1011, %v1027
      %v1044 = vmax.f32 %v1012, %v1028
      %v1045 = vmax.f32 %v1013, %v1029
      %v1046 = vmax.f32 %v1014, %v1030
      %v1047 = vmax.f32 %v1015, %v1031
      %v1048 = vmax.f32 %v1016, %v1032
      %v1049 = vmax.f32 %v1017, %v1033
      %v1050 = vmax.f32 %v1018, %v1034
      %v1051 = vmax.f32 %v1019, %v1035
      %v1052 = vmax.f32 %v1020, %v1036
      %v1053 = vld [vmem:[%s3] sm:$0x1]
      %v1055 = vlaneseq
      %v1056 = vshrl.u32 %v1055, 7
      %v1057 = vsub.s32 0, %v1056
      %v1058 = vrot.slane %v1053, %v1057
      %v1060 = vadd.f32 %v1037, %v1058
      %v1061 = vadd.f32 %v1038, %v1058
      %v1062 = vadd.f32 %v1039, %v1058
      %v1063 = vadd.f32 %v1040, %v1058
      %v1064 = vadd.f32 %v1041, %v1058
      %v1065 = vadd.f32 %v1042, %v1058
      %v1066 = vadd.f32 %v1043, %v1058
      %v1067 = vadd.f32 %v1044, %v1058
      %v1068 = vadd.f32 %v1045, %v1058
      %v1069 = vadd.f32 %v1046, %v1058
      %v1070 = vadd.f32 %v1047, %v1058
      %v1071 = vadd.f32 %v1048, %v1058
      %v1072 = vadd.f32 %v1049, %v1058
      %v1073 = vadd.f32 %v1050, %v1058
      %v1074 = vadd.f32 %v1051, %v1058
      %v1075 = vadd.f32 %v1052, %v1058
      %v1076 = vmax.f32 %v1060, 0.0
      %v1077 = vmax.f32 %v1061, 0.0
      %v1078 = vmax.f32 %v1062, 0.0
      %v1079 = vmax.f32 %v1063, 0.0
      %v1080 = vmax.f32 %v1064, 0.0
      %v1081 = vmax.f32 %v1065, 0.0
      %v1082 = vmax.f32 %v1066, 0.0
      %v1083 = vmax.f32 %v1067, 0.0
      %v1084 = vmax.f32 %v1068, 0.0
      %v1085 = vmax.f32 %v1069, 0.0
      %v1086 = vmax.f32 %v1070, 0.0
      %v1087 = vmax.f32 %v1071, 0.0
      %v1088 = vmax.f32 %v1072, 0.0
      %v1089 = vmax.f32 %v1073, 0.0
      %v1090 = vmax.f32 %v1074, 0.0
      %v1091 = vmax.f32 %v1075, 0.0
      %1092 = vst [vmem:[%s221] sm:$0xff] %v1076
      %1093 = vst [vmem:[%s221 + $0x8] sm:$0xff] %v1077
      %1094 = vst [vmem:[%s221 + $0x10] sm:$0xff] %v1078
      %1095 = vst [vmem:[%s221 + $0x18] sm:$0xff] %v1079
      %1096 = vst [vmem:[%s221 + $0x20] sm:$0xff] %v1080
      %1097 = vst [vmem:[%s221 + $0x28] sm:$0xff] %v1081
      %1098 = vst [vmem:[%s221 + $0x30] sm:$0xff] %v1082
      %1099 = vst [vmem:[%s221 + $0x38] sm:$0xff] %v1083
      %1100 = vst [vmem:[%s221 + $0x40] sm:$0xff] %v1084
      %1101 = vst [vmem:[%s221 + $0x48] sm:$0xff] %v1085
      %1102 = vst [vmem:[%s221 + $0x50] sm:$0xff] %v1086
      %1103 = vst [vmem:[%s221 + $0x58] sm:$0xff] %v1087
      %1104 = vst [vmem:[%s221 + $0x60] sm:$0xff] %v1088
      %1105 = vst [vmem:[%s221 + $0x68] sm:$0xff] %v1089
      %1106 = vst [vmem:[%s221 + $0x70] sm:$0xff] %v1090
      %1107 = vst [vmem:[%s221 + $0x78] sm:$0xff] %v1091
      %s1108 = smul.u32 16, %s15
      %p1109 = scmp.lt.s32.totalorder %s1108, 63
      %s1110 = scalar_select %p1109, %s1108, 63
      %s1111 = smul.addr %s1110, 8
      %s1112 = scalar_lea.vmem %s4, %s1111
      // Predicated region
      $region37: #{mnist_cnn_forward.3} parent=35 // pred_check
        %p1113 = pneg %p127
      $region38: #{mnist_cnn_forward.3} parent=35 // pred_check_branch
        %1115 = sbr.rel (%p1113) target = $region40
      $region39: #{mnist_cnn_forward.3} parent=35 // pred_region
        %s1116 = smul.u32 16, %s15
      $region40: #{mnist_cnn_forward.3} parent=35 // pred_fallthru
        _
    $region36: #{mnist_cnn_forward.3} parent=5 // pred_fallthru
      _
    %p1117 = scmp.le.s32.totalorder 2, %s10
    // Predicated region
    $region41: #{mnist_cnn_forward.3} parent=5 // pred_check
      %p1118 = pneg %p1117
    $region42: #{mnist_cnn_forward.3} parent=5 // pred_check_branch
      %1120 = sbr.rel (%p1118) target = $region44
    $region43: #{mnist_cnn_forward.3} parent=5 // pred_region
      %s1121 = ssub.s32 %s10, 2
      // Predicated region
      $region45: #{mnist_cnn_forward.3} parent=43 // pred_check
        %p1122 = pneg %p133
      $region46: #{mnist_cnn_forward.3} parent=43 // pred_check_branch
        %1124 = sbr.rel (%p1122) target = $region48
      $region47: #{mnist_cnn_forward.3} parent=43 // pred_region
        %s1125 = smul.u32 16, %s16
        %p1126 = scmp.lt.s32.totalorder %s1125, 63
        %s1127 = scalar_select %p1126, %s1125, 63
        %s1128 = smul.addr %s1127, 8
        %s1129 = scalar_lea.vmem %s4, %s1128
      $region48: #{mnist_cnn_forward.3} parent=43 // pred_fallthru
        _
    $region44: #{mnist_cnn_forward.3} parent=5 // pred_fallthru
      _
  $region6: #{mnist_cnn_forward.3} parent=0 // loop_footer
    %s14 = sadd.s32 1, %s10
  $region7: #{mnist_cnn_forward.3} parent=0 // loop_footer_branch
    %9 = sbr.rel target = $region3
  $region8: #{mnist_cnn_forward.3} parent=0 // loop_exit
    _

// kernel: mnist_cnn_forward.4
$region0: #{mnist_cnn_forward.4}
  #allocation0 [shape = 'u32[]', space=smem, size = 0x4, offset = 0x4, fixed_abs, tag = 'smem constant byte address 0x4 - core index']
  #allocation1 [shape = 'u32[144,128]{1,0:T(1,128)}', space=vmem, size = 0x12000, scoped, tag = 'internal scratch']
  %s0 = inlined_call_operand.vmem [shape: f32[128,256], index: 0, kind: input, shape index: {}]
  %s1 = inlined_call_operand.vmem [shape: f32[128,256], index: 1, kind: input, shape index: {}]
  %s2 = inlined_call_operand.vmem [shape: f32[2,256,512], index: 2, kind: input, shape index: {}]
  %s3 = inlined_call_operand.vmem [shape: f32[1,128], index: 3, kind: input, shape index: {}]
  %s4 = inlined_call_operand.vmem [shape: f32[128,128], index: 4, kind: output, shape index: {}]
  %s5 = sld [smem:[#allocation0]]
  $region49: #{mnist_cnn_forward.4} parent=0
    _
  %s7 = ssub.s32 1, %s5
  %s8 = scalar_select 0, %s7, %s5
  loop: start=0, step=1, limit=4
  $region2: #{mnist_cnn_forward.4} parent=0 // loop_pre_header
    _
  $region3: #{mnist_cnn_forward.4} parent=0 // loop_header
    %s10 = sphi 0, %s14
    %p11 = scmp.ge.s32.totalorder %s10, 4
    %s20 = sphi 0, %s22
    %s23 = sphi 0, %s20
    %s24 = sphi 0, %s23
    %s40 = sphi 0, %s24
    %s46 = sphi 0, %s48
    %s49 = sphi 0, %s46
    %s50 = sphi 0, %s49
    %s66 = sphi 0, %s50
    %s70 = sphi 0, %s70
    %s72 = sphi 0, %s70
    %s73 = sphi 0, %s72
    %s87 = sphi 0, %s73
    %s91 = sphi 0, %s91
    %s93 = sphi 0, %s91
    %s94 = sphi 0, %s93
    %s108 = sphi 0, %s94
    %s114 = sphi 0, %s116
    %s117 = sphi 0, %s114
    %s118 = sphi 0, %s117
    %s134 = sphi 0, %s118
  $region4: #{mnist_cnn_forward.4} parent=0 // loop_header_branch
    %13 = sbr.rel (%p11) target = $region8
  $region5: #{mnist_cnn_forward.4} parent=0 // loop_body
    %s15 = ssub.s32 %s10, 1
    %s16 = ssub.s32 %s10, 2
    %s17 = sadd.s32 %s10, 1
    %s18 = ssub.s32 %s10, %s17
    %p19 = scmp.eq.s32.totalorder %s18, 0
    %s21 = sadd.s32 %s20, 1
    %s22 = scalar_select %p19, %s20, %s21
    %p25 = pneg %p19
    %p26 = scmp.eq.s32.totalorder %s10, 1
    %p27 = por %p25, %p26
    %p28 = scmp.ne.s32.totalorder %s20, %s23
    %p29 = scmp.eq.s32.totalorder %s10, 0
    %p30 = por %p28, %p29
    %p31 = scmp.ne.s32.totalorder %s20, %s23
    %p32 = scmp.eq.s32.totalorder %s15, 1
    %p33 = por %p31, %p32
    %p34 = scmp.ne.s32.totalorder %s23, %s24
    %p35 = scmp.eq.s32.totalorder %s15, 0
    %p36 = por %p34, %p35
    %p37 = scmp.ne.s32.totalorder %s23, %s24
    %p38 = scmp.eq.s32.totalorder %s16, 1
    %p39 = por %p37, %p38
    %p41 = scmp.ne.s32.totalorder %s24, %s40
    %p42 = scmp.eq.s32.totalorder %s16, 0
    %p43 = por %p41, %p42
    %s44 = ssub.s32 %s10, %s17
    %p45 = scmp.eq.s32.totalorder %s44, 0
    %s47 = sadd.s32 %s46, 1
    %s48 = scalar_select %p45, %s46, %s47
    %p51 = pneg %p45
    %p52 = scmp.eq.s32.totalorder %s10, 1
    %p53 = por %p51, %p52
    %p54 = scmp.ne.s32.totalorder %s46, %s49
    %p55 = scmp.eq.s32.totalorder %s10, 0
    %p56 = por %p54, %p55
    %p57 = scmp.ne.s32.totalorder %s46, %s49
    %p58 = scmp.eq.s32.totalorder %s15, 1
    %p59 = por %p57, %p58
    %p60 = scmp.ne.s32.totalorder %s49, %s50
    %p61 = scmp.eq.s32.totalorder %s15, 0
    %p62 = por %p60, %p61
    %p63 = scmp.ne.s32.totalorder %s49, %s50
    %p64 = scmp.eq.s32.totalorder %s16, 1
    %p65 = por %p63, %p64
    %p67 = scmp.ne.s32.totalorder %s50, %s66
    %p68 = scmp.eq.s32.totalorder %s16, 0
    %p69 = por %p67, %p68
    %s71 = sadd.s32 %s70, 1
    %p74 = scmp.eq.s32.totalorder %s10, 1
    %p75 = scmp.ne.s32.totalorder %s70, %s72
    %p76 = scmp.eq.s32.totalorder %s10, 0
    %p77 = por %p75, %p76
    %p78 = scmp.ne.s32.totalorder %s70, %s72
    %p79 = scmp.eq.s32.totalorder %s15, 1
    %p80 = por %p78, %p79
    %p81 = scmp.ne.s32.totalorder %s72, %s73
    %p82 = scmp.eq.s32.totalorder %s15, 0
    %p83 = por %p81, %p82
    %p84 = scmp.ne.s32.totalorder %s72, %s73
    %p85 = scmp.eq.s32.totalorder %s16, 1
    %p86 = por %p84, %p85
    %p88 = scmp.ne.s32.totalorder %s73, %s87
    %p89 = scmp.eq.s32.totalorder %s16, 0
    %p90 = por %p88, %p89
    %s92 = sadd.s32 %s91, 1
    %p95 = scmp.eq.s32.totalorder %s10, 1
    %p96 = scmp.ne.s32.totalorder %s91, %s93
    %p97 = scmp.eq.s32.totalorder %s10, 0
    %p98 = por %p96, %p97
    %p99 = scmp.ne.s32.totalorder %s91, %s93
    %p100 = scmp.eq.s32.totalorder %s15, 1
    %p101 = por %p99, %p100
    %p102 = scmp.ne.s32.totalorder %s93, %s94
    %p103 = scmp.eq.s32.totalorder %s15, 0
    %p104 = por %p102, %p103
    %p105 = scmp.ne.s32.totalorder %s93, %s94
    %p106 = scmp.eq.s32.totalorder %s16, 1
    %p107 = por %p105, %p106
    %p109 = scmp.ne.s32.totalorder %s94, %s108
    %p110 = scmp.eq.s32.totalorder %s16, 0
    %p111 = por %p109, %p110
    %s112 = ssub.s32 %s10, %s17
    %p113 = scmp.eq.s32.totalorder %s112, 0
    %s115 = sadd.s32 %s114, 1
    %s116 = scalar_select %p113, %s114, %s115
    %p119 = pneg %p113
    %p120 = scmp.eq.s32.totalorder %s10, 1
    %p121 = por %p119, %p120
    %p122 = scmp.ne.s32.totalorder %s114, %s117
    %p123 = scmp.eq.s32.totalorder %s10, 0
    %p124 = por %p122, %p123
    %p125 = scmp.ne.s32.totalorder %s114, %s117
    %p126 = scmp.eq.s32.totalorder %s15, 1
    %p127 = por %p125, %p126
    %p128 = scmp.ne.s32.totalorder %s117, %s118
    %p129 = scmp.eq.s32.totalorder %s15, 0
    %p130 = por %p128, %p129
    %p131 = scmp.ne.s32.totalorder %s117, %s118
    %p132 = scmp.eq.s32.totalorder %s16, 1
    %p133 = por %p131, %p132
    %p135 = scmp.ne.s32.totalorder %s118, %s134
    %p136 = scmp.eq.s32.totalorder %s16, 0
    %p137 = por %p135, %p136
    %p138 = scmp.le.s32.totalorder 1, %s10
    %p139 = scmp.lt.s32.totalorder %s10, 3
    %p140 = pnand %p138, %p139
    %p141 = pneg %p140
    // Predicated region
    $region9: #{mnist_cnn_forward.4} parent=5 // pred_check
      _
    $region10: #{mnist_cnn_forward.4} parent=5 // pred_check_branch
      %143 = sbr.rel (%p140) target = $region12
    $region11: #{mnist_cnn_forward.4} parent=5 // pred_region
      %s144 = ssub.s32 %s10, 1
      // Predicated region
      $region13: #{mnist_cnn_forward.4} parent=11 // pred_check
        %p145 = pneg %p83
      $region14: #{mnist_cnn_forward.4} parent=11 // pred_check_branch
        %147 = sbr.rel (%p145) target = $region16
      $region15: #{mnist_cnn_forward.4} parent=11 // pred_region
        _
      $region16: #{mnist_cnn_forward.4} parent=11 // pred_fallthru
        _
      // Predicated region
      $region17: #{mnist_cnn_forward.4} parent=11 // pred_check
        %p148 = pneg %p104
      $region18: #{mnist_cnn_forward.4} parent=11 // pred_check_branch
        %150 = sbr.rel (%p148) target = $region20
      $region19: #{mnist_cnn_forward.4} parent=11 // pred_region
        _
      $region20: #{mnist_cnn_forward.4} parent=11 // pred_fallthru
        _
    $region12: #{mnist_cnn_forward.4} parent=5 // pred_fallthru
      _
    %p151 = scmp.lt.s32.totalorder %s10, 2
    // Predicated region
    $region21: #{mnist_cnn_forward.4} parent=5 // pred_check
      %p152 = pneg %p151
    $region22: #{mnist_cnn_forward.4} parent=5 // pred_check_branch
      %154 = sbr.rel (%p152) target = $region24
    $region23: #{mnist_cnn_forward.4} parent=5 // pred_region
      // Predicated region
      $region25: #{mnist_cnn_forward.4} parent=23 // pred_check
        %p155 = pneg %p30
      $region26: #{mnist_cnn_forward.4} parent=23 // pred_check_branch
        %157 = sbr.rel (%p155) target = $region28
      $region27: #{mnist_cnn_forward.4} parent=23 // pred_region
        %s158 = smul.u32 8, %s10
        %p159 = scmp.lt.s32.totalorder %s158, 15
        %s160 = scalar_select %p159, %s158, 15
        %s161 = smul.addr %s160, 2
        %s162 = smul.addr %s161, 8
        %s163 = scalar_lea.vmem %s0, %s162
        %s164 = smul.u32 8, %s10
      $region28: #{mnist_cnn_forward.4} parent=23 // pred_fallthru
        _
      // Predicated region
      $region29: #{mnist_cnn_forward.4} parent=23 // pred_check
        %p165 = pneg %p56
      $region30: #{mnist_cnn_forward.4} parent=23 // pred_check_branch
        %167 = sbr.rel (%p165) target = $region32
      $region31: #{mnist_cnn_forward.4} parent=23 // pred_region
        %s168 = smul.u32 8, %s10
        %p169 = scmp.lt.s32.totalorder %s168, 15
        %s170 = scalar_select %p169, %s168, 15
        %s171 = smul.addr %s170, 2
        %s172 = smul.addr %s171, 8
        %s173 = scalar_lea.vmem %s1, %s172
        %s174 = smul.u32 8, %s10
      $region32: #{mnist_cnn_forward.4} parent=23 // pred_fallthru
        _
    $region24: #{mnist_cnn_forward.4} parent=5 // pred_fallthru
      _
    %p175 = scmp.le.s32.totalorder 1, %s10
    %p176 = scmp.lt.s32.totalorder %s10, 3
    %p177 = pnand %p175, %p176
    %p178 = pneg %p177
    // Predicated region
    $region33: #{mnist_cnn_forward.4} parent=5 // pred_check
      _
    $region34: #{mnist_cnn_forward.4} parent=5 // pred_check_branch
      %180 = sbr.rel (%p177) target = $region36
    $region35: #{mnist_cnn_forward.4} parent=5 // pred_region
      %s181 = ssub.s32 %s10, 1
      %s182 = smul.u32 8, %s15
      %p183 = scmp.lt.s32.totalorder %s182, 15
      %s184 = scalar_select %p183, %s182, 15
      %s185 = smul.addr %s184, 2
      %s186 = smul.addr %s185, 8
      %s187 = scalar_lea.vmem %s0, %s186
      %p188 = pneg %p36
      %p189 = pneg %p33
      %s190 = smul.u32 8, %s15
      %p191 = scmp.lt.s32.totalorder %s190, 15
      %s192 = scalar_select %p191, %s190, 15
      %s193 = smul.addr %s192, 2
      %s194 = smul.addr %s193, 8
      %s195 = scalar_lea.vmem %s1, %s194
      %p196 = pneg %p62
      %p197 = pneg %p59
      %p198 = pneg %p83
      %p199 = pneg %p80
      %p200 = pneg %p104
      %p201 = pneg %p101
      %p202 = pneg %p130
      %p203 = pneg %p127
      %s204 = smul.u32 8, %s15
      %p205 = scmp.lt.s32.totalorder %s204, 15
      %s206 = scalar_select %p205, %s204, 15
      %s207 = smul.addr %s206, 8
      %s208 = scalar_lea.vmem %s4, %s207
      %s209 = smul.u32 8, %s15
      %p210 = scmp.lt.s32.totalorder %s209, 15
      %s211 = scalar_select %p210, %s209, 15
      %s212 = smul.addr %s211, 2
      %s213 = smul.addr %s212, 8
      %s214 = scalar_lea.vmem %s0, %s213
      %s215 = smul.u32 8, %s15
      %s216 = smul.u32 8, %s15
      %p217 = scmp.lt.s32.totalorder %s216, 15
      %s218 = scalar_select %p217, %s216, 15
      %s219 = smul.addr %s218, 2
      %s220 = smul.addr %s219, 8
      %s221 = scalar_lea.vmem %s1, %s220
      %s222 = smul.u32 8, %s15
      %s223 = smul.u32 8, %s15
      %p224 = scmp.lt.s32.totalorder %s223, 15
      %s225 = scalar_select %p224, %s223, 15
      %s226 = smul.addr %s225, 8
      %s227 = scalar_lea.vmem %s4, %s226
      %s228 = smul.u32 8, %s15
      %v229 = vld [vmem:[%s214] sm:$0xff]
      %v230 = vld [vmem:[%s214 + $0x8] sm:$0xff]
      %v231 = vld [vmem:[%s214 + $0x10] sm:$0xff]
      %v232 = vld [vmem:[%s214 + $0x18] sm:$0xff]
      %v233 = vld [vmem:[%s214 + $0x20] sm:$0xff]
      %v234 = vld [vmem:[%s214 + $0x28] sm:$0xff]
      %v235 = vld [vmem:[%s214 + $0x30] sm:$0xff]
      %v236 = vld [vmem:[%s214 + $0x38] sm:$0xff]
      %v237 = vld [vmem:[%s214 + $0x40] sm:$0xff]
      %v238 = vld [vmem:[%s214 + $0x48] sm:$0xff]
      %v239 = vld [vmem:[%s214 + $0x50] sm:$0xff]
      %v240 = vld [vmem:[%s214 + $0x58] sm:$0xff]
      %v241 = vld [vmem:[%s214 + $0x60] sm:$0xff]
      %v242 = vld [vmem:[%s214 + $0x68] sm:$0xff]
      %v243 = vld [vmem:[%s214 + $0x70] sm:$0xff]
      %v244 = vld [vmem:[%s214 + $0x78] sm:$0xff]
      %v245 = vld [vmem:[%s2] sm:$0xff]
      %v246 = vld [vmem:[%s2 + $0x8] sm:$0xff]
      %v247 = vld [vmem:[%s2 + $0x10] sm:$0xff]
      %v248 = vld [vmem:[%s2 + $0x18] sm:$0xff]
      %v249 = vld [vmem:[%s2 + $0x20] sm:$0xff]
      %v250 = vld [vmem:[%s2 + $0x28] sm:$0xff]
      %v251 = vld [vmem:[%s2 + $0x30] sm:$0xff]
      %v252 = vld [vmem:[%s2 + $0x38] sm:$0xff]
      %v253 = vld [vmem:[%s2 + $0x40] sm:$0xff]
      %v254 = vld [vmem:[%s2 + $0x48] sm:$0xff]
      %v255 = vld [vmem:[%s2 + $0x50] sm:$0xff]
      %v256 = vld [vmem:[%s2 + $0x58] sm:$0xff]
      %v257 = vld [vmem:[%s2 + $0x60] sm:$0xff]
      %v258 = vld [vmem:[%s2 + $0x68] sm:$0xff]
      %v259 = vld [vmem:[%s2 + $0x70] sm:$0xff]
      %v260 = vld [vmem:[%s2 + $0x78] sm:$0xff]
      %v261 = vld [vmem:[%s2 + $0x80] sm:$0xff]
      %v262 = vld [vmem:[%s2 + $0x88] sm:$0xff]
      %v263 = vld [vmem:[%s2 + $0x90] sm:$0xff]
      %v264 = vld [vmem:[%s2 + $0x98] sm:$0xff]
      %v265 = vld [vmem:[%s2 + $0xa0] sm:$0xff]
      %v266 = vld [vmem:[%s2 + $0xa8] sm:$0xff]
      %v267 = vld [vmem:[%s2 + $0xb0] sm:$0xff]
      %v268 = vld [vmem:[%s2 + $0xb8] sm:$0xff]
      %v269 = vld [vmem:[%s2 + $0xc0] sm:$0xff]
      %v270 = vld [vmem:[%s2 + $0xc8] sm:$0xff]
      %v271 = vld [vmem:[%s2 + $0xd0] sm:$0xff]
      %v272 = vld [vmem:[%s2 + $0xd8] sm:$0xff]
      %v273 = vld [vmem:[%s2 + $0xe0] sm:$0xff]
      %v274 = vld [vmem:[%s2 + $0xe8] sm:$0xff]
      %v275 = vld [vmem:[%s2 + $0xf0] sm:$0xff]
      %v276 = vld [vmem:[%s2 + $0xf8] sm:$0xff]
      %v277 = vld [vmem:[%s2 + $0x100] sm:$0xff]
      %v278 = vld [vmem:[%s2 + $0x108] sm:$0xff]
      %v279 = vld [vmem:[%s2 + $0x110] sm:$0xff]
      %v280 = vld [vmem:[%s2 + $0x118] sm:$0xff]
      %v281 = vld [vmem:[%s2 + $0x120] sm:$0xff]
      %v282 = vld [vmem:[%s2 + $0x128] sm:$0xff]
      %v283 = vld [vmem:[%s2 + $0x130] sm:$0xff]
      %v284 = vld [vmem:[%s2 + $0x138] sm:$0xff]
      %v285 = vld [vmem:[%s2 + $0x140] sm:$0xff]
      %v286 = vld [vmem:[%s2 + $0x148] sm:$0xff]
      %v287 = vld [vmem:[%s2 + $0x150] sm:$0xff]
      %v288 = vld [vmem:[%s2 + $0x158] sm:$0xff]
      %v289 = vld [vmem:[%s2 + $0x160] sm:$0xff]
      %v290 = vld [vmem:[%s2 + $0x168] sm:$0xff]
      %v291 = vld [vmem:[%s2 + $0x170] sm:$0xff]
      %v292 = vld [vmem:[%s2 + $0x178] sm:$0xff]
      %v293 = vld [vmem:[%s2 + $0x180] sm:$0xff]
      %v294 = vld [vmem:[%s2 + $0x188] sm:$0xff]
      %v295 = vld [vmem:[%s2 + $0x190] sm:$0xff]
      %v296 = vld [vmem:[%s2 + $0x198] sm:$0xff]
      %v297 = vld [vmem:[%s2 + $0x1a0] sm:$0xff]
      %v298 = vld [vmem:[%s2 + $0x1a8] sm:$0xff]
      %v299 = vld [vmem:[%s2 + $0x1b0] sm:$0xff]
      %v300 = vld [vmem:[%s2 + $0x1b8] sm:$0xff]
      %v301 = vld [vmem:[%s2 + $0x1c0] sm:$0xff]
      %v302 = vld [vmem:[%s2 + $0x1c8] sm:$0xff]
      %v303 = vld [vmem:[%s2 + $0x1d0] sm:$0xff]
      %v304 = vld [vmem:[%s2 + $0x1d8] sm:$0xff]
      %v305 = vld [vmem:[%s2 + $0x1e0] sm:$0xff]
      %v306 = vld [vmem:[%s2 + $0x1e8] sm:$0xff]
      %v307 = vld [vmem:[%s2 + $0x1f0] sm:$0xff]
      %v308 = vld [vmem:[%s2 + $0x1f8] sm:$0xff]
      %v309 = vld [vmem:[%s2 + $0x200] sm:$0xff]
      %v310 = vld [vmem:[%s2 + $0x208] sm:$0xff]
      %v311 = vld [vmem:[%s2 + $0x210] sm:$0xff]
      %v312 = vld [vmem:[%s2 + $0x218] sm:$0xff]
      %v313 = vld [vmem:[%s2 + $0x220] sm:$0xff]
      %v314 = vld [vmem:[%s2 + $0x228] sm:$0xff]
      %v315 = vld [vmem:[%s2 + $0x230] sm:$0xff]
      %v316 = vld [vmem:[%s2 + $0x238] sm:$0xff]
      %v317 = vld [vmem:[%s2 + $0x240] sm:$0xff]
      %v318 = vld [vmem:[%s2 + $0x248] sm:$0xff]
      %v319 = vld [vmem:[%s2 + $0x250] sm:$0xff]
      %v320 = vld [vmem:[%s2 + $0x258] sm:$0xff]
      %v321 = vld [vmem:[%s2 + $0x260] sm:$0xff]
      %v322 = vld [vmem:[%s2 + $0x268] sm:$0xff]
      %v323 = vld [vmem:[%s2 + $0x270] sm:$0xff]
      %v324 = vld [vmem:[%s2 + $0x278] sm:$0xff]
      %v325 = vld [vmem:[%s2 + $0x280] sm:$0xff]
      %v326 = vld [vmem:[%s2 + $0x288] sm:$0xff]
      %v327 = vld [vmem:[%s2 + $0x290] sm:$0xff]
      %v328 = vld [vmem:[%s2 + $0x298] sm:$0xff]
      %v329 = vld [vmem:[%s2 + $0x2a0] sm:$0xff]
      %v330 = vld [vmem:[%s2 + $0x2a8] sm:$0xff]
      %v331 = vld [vmem:[%s2 + $0x2b0] sm:$0xff]
      %v332 = vld [vmem:[%s2 + $0x2b8] sm:$0xff]
      %v333 = vld [vmem:[%s2 + $0x2c0] sm:$0xff]
      %v334 = vld [vmem:[%s2 + $0x2c8] sm:$0xff]
      %v335 = vld [vmem:[%s2 + $0x2d0] sm:$0xff]
      %v336 = vld [vmem:[%s2 + $0x2d8] sm:$0xff]
      %v337 = vld [vmem:[%s2 + $0x2e0] sm:$0xff]
      %v338 = vld [vmem:[%s2 + $0x2e8] sm:$0xff]
      %v339 = vld [vmem:[%s2 + $0x2f0] sm:$0xff]
      %v340 = vld [vmem:[%s2 + $0x2f8] sm:$0xff]
      %v341 = vld [vmem:[%s2 + $0x300] sm:$0xff]
      %v342 = vld [vmem:[%s2 + $0x308] sm:$0xff]
      %v343 = vld [vmem:[%s2 + $0x310] sm:$0xff]
      %v344 = vld [vmem:[%s2 + $0x318] sm:$0xff]
      %v345 = vld [vmem:[%s2 + $0x320] sm:$0xff]
      %v346 = vld [vmem:[%s2 + $0x328] sm:$0xff]
      %v347 = vld [vmem:[%s2 + $0x330] sm:$0xff]
      %v348 = vld [vmem:[%s2 + $0x338] sm:$0xff]
      %v349 = vld [vmem:[%s2 + $0x340] sm:$0xff]
      %v350 = vld [vmem:[%s2 + $0x348] sm:$0xff]
      %v351 = vld [vmem:[%s2 + $0x350] sm:$0xff]
      %v352 = vld [vmem:[%s2 + $0x358] sm:$0xff]
      %v353 = vld [vmem:[%s2 + $0x360] sm:$0xff]
      %v354 = vld [vmem:[%s2 + $0x368] sm:$0xff]
      %v355 = vld [vmem:[%s2 + $0x370] sm:$0xff]
      %v356 = vld [vmem:[%s2 + $0x378] sm:$0xff]
      %v357 = vld [vmem:[%s2 + $0x380] sm:$0xff]
      %v358 = vld [vmem:[%s2 + $0x388] sm:$0xff]
      %v359 = vld [vmem:[%s2 + $0x390] sm:$0xff]
      %v360 = vld [vmem:[%s2 + $0x398] sm:$0xff]
      %v361 = vld [vmem:[%s2 + $0x3a0] sm:$0xff]
      %v362 = vld [vmem:[%s2 + $0x3a8] sm:$0xff]
      %v363 = vld [vmem:[%s2 + $0x3b0] sm:$0xff]
      %v364 = vld [vmem:[%s2 + $0x3b8] sm:$0xff]
      %v365 = vld [vmem:[%s2 + $0x3c0] sm:$0xff]
      %v366 = vld [vmem:[%s2 + $0x3c8] sm:$0xff]
      %v367 = vld [vmem:[%s2 + $0x3d0] sm:$0xff]
      %v368 = vld [vmem:[%s2 + $0x3d8] sm:$0xff]
      %v369 = vld [vmem:[%s2 + $0x3e0] sm:$0xff]
      %v370 = vld [vmem:[%s2 + $0x3e8] sm:$0xff]
      %v371 = vld [vmem:[%s2 + $0x3f0] sm:$0xff]
      %v372 = vld [vmem:[%s2 + $0x3f8] sm:$0xff]
      %v373 = vld [vmem:[%s221] sm:$0xff]
      %v374 = vld [vmem:[%s221 + $0x8] sm:$0xff]
      %v375 = vld [vmem:[%s221 + $0x10] sm:$0xff]
      %v376 = vld [vmem:[%s221 + $0x18] sm:$0xff]
      %v377 = vld [vmem:[%s221 + $0x20] sm:$0xff]
      %v378 = vld [vmem:[%s221 + $0x28] sm:$0xff]
      %v379 = vld [vmem:[%s221 + $0x30] sm:$0xff]
      %v380 = vld [vmem:[%s221 + $0x38] sm:$0xff]
      %v381 = vld [vmem:[%s221 + $0x40] sm:$0xff]
      %v382 = vld [vmem:[%s221 + $0x48] sm:$0xff]
      %v383 = vld [vmem:[%s221 + $0x50] sm:$0xff]
      %v384 = vld [vmem:[%s221 + $0x58] sm:$0xff]
      %v385 = vld [vmem:[%s221 + $0x60] sm:$0xff]
      %v386 = vld [vmem:[%s221 + $0x68] sm:$0xff]
      %v387 = vld [vmem:[%s221 + $0x70] sm:$0xff]
      %v388 = vld [vmem:[%s221 + $0x78] sm:$0xff]
      %s389 = scalar_lea.vmem %s2, 1024
      %v390 = vld [vmem:[%s389] sm:$0xff]
      %v391 = vld [vmem:[%s389 + $0x8] sm:$0xff]
      %v392 = vld [vmem:[%s389 + $0x10] sm:$0xff]
      %v393 = vld [vmem:[%s389 + $0x18] sm:$0xff]
      %v394 = vld [vmem:[%s389 + $0x20] sm:$0xff]
      %v395 = vld [vmem:[%s389 + $0x28] sm:$0xff]
      %v396 = vld [vmem:[%s389 + $0x30] sm:$0xff]
      %v397 = vld [vmem:[%s389 + $0x38] sm:$0xff]
      %v398 = vld [vmem:[%s389 + $0x40] sm:$0xff]
      %v399 = vld [vmem:[%s389 + $0x48] sm:$0xff]
      %v400 = vld [vmem:[%s389 + $0x50] sm:$0xff]
      %v401 = vld [vmem:[%s389 + $0x58] sm:$0xff]
      %v402 = vld [vmem:[%s389 + $0x60] sm:$0xff]
      %v403 = vld [vmem:[%s389 + $0x68] sm:$0xff]
      %v404 = vld [vmem:[%s389 + $0x70] sm:$0xff]
      %v405 = vld [vmem:[%s389 + $0x78] sm:$0xff]
      %v406 = vld [vmem:[%s389 + $0x80] sm:$0xff]
      %v407 = vld [vmem:[%s389 + $0x88] sm:$0xff]
      %v408 = vld [vmem:[%s389 + $0x90] sm:$0xff]
      %v409 = vld [vmem:[%s389 + $0x98] sm:$0xff]
      %v410 = vld [vmem:[%s389 + $0xa0] sm:$0xff]
      %v411 = vld [vmem:[%s389 + $0xa8] sm:$0xff]
      %v412 = vld [vmem:[%s389 + $0xb0] sm:$0xff]
      %v413 = vld [vmem:[%s389 + $0xb8] sm:$0xff]
      %v414 = vld [vmem:[%s389 + $0xc0] sm:$0xff]
      %v415 = vld [vmem:[%s389 + $0xc8] sm:$0xff]
      %v416 = vld [vmem:[%s389 + $0xd0] sm:$0xff]
      %v417 = vld [vmem:[%s389 + $0xd8] sm:$0xff]
      %v418 = vld [vmem:[%s389 + $0xe0] sm:$0xff]
      %v419 = vld [vmem:[%s389 + $0xe8] sm:$0xff]
      %v420 = vld [vmem:[%s389 + $0xf0] sm:$0xff]
      %v421 = vld [vmem:[%s389 + $0xf8] sm:$0xff]
      %v422 = vld [vmem:[%s389 + $0x100] sm:$0xff]
      %v423 = vld [vmem:[%s389 + $0x108] sm:$0xff]
      %v424 = vld [vmem:[%s389 + $0x110] sm:$0xff]
      %v425 = vld [vmem:[%s389 + $0x118] sm:$0xff]
      %v426 = vld [vmem:[%s389 + $0x120] sm:$0xff]
      %v427 = vld [vmem:[%s389 + $0x128] sm:$0xff]
      %v428 = vld [vmem:[%s389 + $0x130] sm:$0xff]
      %v429 = vld [vmem:[%s389 + $0x138] sm:$0xff]
      %v430 = vld [vmem:[%s389 + $0x140] sm:$0xff]
      %v431 = vld [vmem:[%s389 + $0x148] sm:$0xff]
      %v432 = vld [vmem:[%s389 + $0x150] sm:$0xff]
      %v433 = vld [vmem:[%s389 + $0x158] sm:$0xff]
      %v434 = vld [vmem:[%s389 + $0x160] sm:$0xff]
      %v435 = vld [vmem:[%s389 + $0x168] sm:$0xff]
      %v436 = vld [vmem:[%s389 + $0x170] sm:$0xff]
      %v437 = vld [vmem:[%s389 + $0x178] sm:$0xff]
      %v438 = vld [vmem:[%s389 + $0x180] sm:$0xff]
      %v439 = vld [vmem:[%s389 + $0x188] sm:$0xff]
      %v440 = vld [vmem:[%s389 + $0x190] sm:$0xff]
      %v441 = vld [vmem:[%s389 + $0x198] sm:$0xff]
      %v442 = vld [vmem:[%s389 + $0x1a0] sm:$0xff]
      %v443 = vld [vmem:[%s389 + $0x1a8] sm:$0xff]
      %v444 = vld [vmem:[%s389 + $0x1b0] sm:$0xff]
      %v445 = vld [vmem:[%s389 + $0x1b8] sm:$0xff]
      %v446 = vld [vmem:[%s389 + $0x1c0] sm:$0xff]
      %v447 = vld [vmem:[%s389 + $0x1c8] sm:$0xff]
      %v448 = vld [vmem:[%s389 + $0x1d0] sm:$0xff]
      %v449 = vld [vmem:[%s389 + $0x1d8] sm:$0xff]
      %v450 = vld [vmem:[%s389 + $0x1e0] sm:$0xff]
      %v451 = vld [vmem:[%s389 + $0x1e8] sm:$0xff]
      %v452 = vld [vmem:[%s389 + $0x1f0] sm:$0xff]
      %v453 = vld [vmem:[%s389 + $0x1f8] sm:$0xff]
      %v454 = vld [vmem:[%s389 + $0x200] sm:$0xff]
      %v455 = vld [vmem:[%s389 + $0x208] sm:$0xff]
      %v456 = vld [vmem:[%s389 + $0x210] sm:$0xff]
      %v457 = vld [vmem:[%s389 + $0x218] sm:$0xff]
      %v458 = vld [vmem:[%s389 + $0x220] sm:$0xff]
      %v459 = vld [vmem:[%s389 + $0x228] sm:$0xff]
      %v460 = vld [vmem:[%s389 + $0x230] sm:$0xff]
      %v461 = vld [vmem:[%s389 + $0x238] sm:$0xff]
      %v462 = vld [vmem:[%s389 + $0x240] sm:$0xff]
      %v463 = vld [vmem:[%s389 + $0x248] sm:$0xff]
      %v464 = vld [vmem:[%s389 + $0x250] sm:$0xff]
      %v465 = vld [vmem:[%s389 + $0x258] sm:$0xff]
      %v466 = vld [vmem:[%s389 + $0x260] sm:$0xff]
      %v467 = vld [vmem:[%s389 + $0x268] sm:$0xff]
      %v468 = vld [vmem:[%s389 + $0x270] sm:$0xff]
      %v469 = vld [vmem:[%s389 + $0x278] sm:$0xff]
      %v470 = vld [vmem:[%s389 + $0x280] sm:$0xff]
      %v471 = vld [vmem:[%s389 + $0x288] sm:$0xff]
      %v472 = vld [vmem:[%s389 + $0x290] sm:$0xff]
      %v473 = vld [vmem:[%s389 + $0x298] sm:$0xff]
      %v474 = vld [vmem:[%s389 + $0x2a0] sm:$0xff]
      %v475 = vld [vmem:[%s389 + $0x2a8] sm:$0xff]
      %v476 = vld [vmem:[%s389 + $0x2b0] sm:$0xff]
      %v477 = vld [vmem:[%s389 + $0x2b8] sm:$0xff]
      %v478 = vld [vmem:[%s389 + $0x2c0] sm:$0xff]
      %v479 = vld [vmem:[%s389 + $0x2c8] sm:$0xff]
      %v480 = vld [vmem:[%s389 + $0x2d0] sm:$0xff]
      %v481 = vld [vmem:[%s389 + $0x2d8] sm:$0xff]
      %v482 = vld [vmem:[%s389 + $0x2e0] sm:$0xff]
      %v483 = vld [vmem:[%s389 + $0x2e8] sm:$0xff]
      %v484 = vld [vmem:[%s389 + $0x2f0] sm:$0xff]
      %v485 = vld [vmem:[%s389 + $0x2f8] sm:$0xff]
      %v486 = vld [vmem:[%s389 + $0x300] sm:$0xff]
      %v487 = vld [vmem:[%s389 + $0x308] sm:$0xff]
      %v488 = vld [vmem:[%s389 + $0x310] sm:$0xff]
      %v489 = vld [vmem:[%s389 + $0x318] sm:$0xff]
      %v490 = vld [vmem:[%s389 + $0x320] sm:$0xff]
      %v491 = vld [vmem:[%s389 + $0x328] sm:$0xff]
      %v492 = vld [vmem:[%s389 + $0x330] sm:$0xff]
      %v493 = vld [vmem:[%s389 + $0x338] sm:$0xff]
      %v494 = vld [vmem:[%s389 + $0x340] sm:$0xff]
      %v495 = vld [vmem:[%s389 + $0x348] sm:$0xff]
      %v496 = vld [vmem:[%s389 + $0x350] sm:$0xff]
      %v497 = vld [vmem:[%s389 + $0x358] sm:$0xff]
      %v498 = vld [vmem:[%s389 + $0x360] sm:$0xff]
      %v499 = vld [vmem:[%s389 + $0x368] sm:$0xff]
      %v500 = vld [vmem:[%s389 + $0x370] sm:$0xff]
      %v501 = vld [vmem:[%s389 + $0x378] sm:$0xff]
      %v502 = vld [vmem:[%s389 + $0x380] sm:$0xff]
      %v503 = vld [vmem:[%s389 + $0x388] sm:$0xff]
      %v504 = vld [vmem:[%s389 + $0x390] sm:$0xff]
      %v505 = vld [vmem:[%s389 + $0x398] sm:$0xff]
      %v506 = vld [vmem:[%s389 + $0x3a0] sm:$0xff]
      %v507 = vld [vmem:[%s389 + $0x3a8] sm:$0xff]
      %v508 = vld [vmem:[%s389 + $0x3b0] sm:$0xff]
      %v509 = vld [vmem:[%s389 + $0x3b8] sm:$0xff]
      %v510 = vld [vmem:[%s389 + $0x3c0] sm:$0xff]
      %v511 = vld [vmem:[%s389 + $0x3c8] sm:$0xff]
      %v512 = vld [vmem:[%s389 + $0x3d0] sm:$0xff]
      %v513 = vld [vmem:[%s389 + $0x3d8] sm:$0xff]
      %v514 = vld [vmem:[%s389 + $0x3e0] sm:$0xff]
      %v515 = vld [vmem:[%s389 + $0x3e8] sm:$0xff]
      %v516 = vld [vmem:[%s389 + $0x3f0] sm:$0xff]
      %v517 = vld [vmem:[%s389 + $0x3f8] sm:$0xff]
      %518 = vmatprep.subr.mxu0 %v391
      %519 = vmatpush1.msra.mxu0 %v390
      %520 = vmatprep.subr.mxu0 %v395
      %521 = vmatpush1.msra.mxu0 %v394
      %522 = vmatprep.subr.mxu0 %v399
      %523 = vmatpush1.msra.mxu0 %v398
      %524 = vmatprep.subr.mxu0 %v403
      %525 = vmatpush1.msra.mxu0 %v402
      %526 = vmatprep.subr.mxu0 %v407
      %527 = vmatpush1.msra.mxu0 %v406
      %528 = vmatprep.subr.mxu0 %v411
      %529 = vmatpush1.msra.mxu0 %v410
      %530 = vmatprep.subr.mxu0 %v415
      %531 = vmatpush1.msra.mxu0 %v414
      %532 = vmatprep.subr.mxu0 %v419
      %533 = vmatpush1.msra.mxu0 %v418
      %534 = vmatprep.subr.mxu0 %v423
      %535 = vmatpush1.msra.mxu0 %v422
      %536 = vmatprep.subr.mxu0 %v427
      %537 = vmatpush1.msra.mxu0 %v426
      %538 = vmatprep.subr.mxu0 %v431
      %539 = vmatpush1.msra.mxu0 %v430
      %540 = vmatprep.subr.mxu0 %v435
      %541 = vmatpush1.msra.mxu0 %v434
      %542 = vmatprep.subr.mxu0 %v439
      %543 = vmatpush1.msra.mxu0 %v438
      %544 = vmatprep.subr.mxu0 %v443
      %545 = vmatpush1.msra.mxu0 %v442
      %546 = vmatprep.subr.mxu0 %v447
      %547 = vmatpush1.msra.mxu0 %v446
      %548 = vmatprep.subr.mxu0 %v451
      %549 = vmatpush1.msra.mxu0 %v450
      %550 = vmatprep.subr.mxu0 %v455
      %551 = vmatpush1.msra.mxu0 %v454
      %552 = vmatprep.subr.mxu0 %v459
      %553 = vmatpush1.msra.mxu0 %v458
      %554 = vmatprep.subr.mxu0 %v463
      %555 = vmatpush1.msra.mxu0 %v462
      %556 = vmatprep.subr.mxu0 %v467
      %557 = vmatpush1.msra.mxu0 %v466
      %558 = vmatprep.subr.mxu0 %v471
      %559 = vmatpush1.msra.mxu0 %v470
      %560 = vmatprep.subr.mxu0 %v475
      %561 = vmatpush1.msra.mxu0 %v474
      %562 = vmatprep.subr.mxu0 %v479
      %563 = vmatpush1.msra.mxu0 %v478
      %564 = vmatprep.subr.mxu0 %v483
      %565 = vmatpush1.msra.mxu0 %v482
      %566 = vmatprep.subr.mxu0 %v487
      %567 = vmatpush1.msra.mxu0 %v486
      %568 = vmatprep.subr.mxu0 %v491
      %569 = vmatpush1.msra.mxu0 %v490
      %570 = vmatprep.subr.mxu0 %v495
      %571 = vmatpush1.msra.mxu0 %v494
      %572 = vmatprep.subr.mxu0 %v499
      %573 = vmatpush1.msra.mxu0 %v498
      %574 = vmatprep.subr.mxu0 %v503
      %575 = vmatpush1.msra.mxu0 %v502
      %576 = vmatprep.subr.mxu0 %v507
      %577 = vmatpush1.msra.mxu0 %v506
      %578 = vmatprep.subr.mxu0 %v511
      %579 = vmatpush1.msra.mxu0 %v510
      %580 = vmatprep.subr.mxu0 %v515
      %581 = vmatpush1.msra.mxu0 %v514
      %582 = vmatprep.mubr.f32.mxu0 %v374
      %583 = vmatmul.mubr.f32.gmra.mrb[0].mxu0 %v373
      %v584 = vpop.f32.mrb[0].mxu0
      %v585 = vadd.f32 0.0, %v584
      %v586 = vpop.f32.mrb[0].mxu0
      %v587 = vadd.f32 0.0, %v586
      %588 = vmatprep.mubr.f32.mxu0 %v376
      %589 = vmatmul.mubr.f32.gmra.mrb[0].mxu0 %v375
      %v590 = vpop.f32.mrb[0].mxu0
      %v591 = vadd.f32 0.0, %v590
      %v592 = vpop.f32.mrb[0].mxu0
      %v593 = vadd.f32 0.0, %v592
      %594 = vmatprep.mubr.f32.mxu0 %v378
      %595 = vmatmul.mubr.f32.gmra.mrb[0].mxu0 %v377
      %v596 = vpop.f32.mrb[0].mxu0
      %v597 = vadd.f32 0.0, %v596
      %v598 = vpop.f32.mrb[0].mxu0
      %v599 = vadd.f32 0.0, %v598
      %600 = vmatprep.mubr.f32.mxu0 %v380
      %601 = vmatmul.mubr.f32.gmra.mrb[0].mxu0 %v379
      %v602 = vpop.f32.mrb[0].mxu0
      %v603 = vadd.f32 0.0, %v602
      %v604 = vpop.f32.mrb[0].mxu0
      %v605 = vadd.f32 0.0, %v604
      %606 = vmatprep.mubr.f32.mxu0 %v382
      %607 = vmatmul.mubr.f32.gmra.mrb[0].mxu0 %v381
      %v608 = vpop.f32.mrb[0].mxu0
      %v609 = vadd.f32 0.0, %v608
      %v610 = vpop.f32.mrb[0].mxu0
      %v611 = vadd.f32 0.0, %v610
      %612 = vmatprep.mubr.f32.mxu0 %v384
      %613 = vmatmul.mubr.f32.gmra.mrb[0].mxu0 %v383
      %v614 = vpop.f32.mrb[0].mxu0
      %v615 = vadd.f32 0.0, %v614
      %v616 = vpop.f32.mrb[0].mxu0
      %v617 = vadd.f32 0.0, %v616
      %618 = vmatprep.mubr.f32.mxu0 %v386
      %619 = vmatmul.mubr.f32.gmra.mrb[0].mxu0 %v385
      %v620 = vpop.f32.mrb[0].mxu0
      %v621 = vadd.f32 0.0, %v620
      %v622 = vpop.f32.mrb[0].mxu0
      %v623 = vadd.f32 0.0, %v622
      %624 = vmatprep.mubr.f32.mxu0 %v388
      %625 = vmatmul.mubr.f32.gmra.mrb[0].mxu0 %v387
      %v626 = vpop.f32.mrb[0].mxu0
      %v627 = vadd.f32 0.0, %v626
      %v628 = vpop.f32.mrb[0].mxu0
      %v629 = vadd.f32 0.0, %v628
      %630 = vdwg.mxu0
      %631 = vmatprep.subr.mxu0 %v393
      %632 = vmatpush1.msra.mxu0 %v392
      %633 = vmatprep.subr.mxu0 %v397
      %634 = vmatpush1.msra.mxu0 %v396
      %635 = vmatprep.subr.mxu0 %v401
      %636 = vmatpush1.msra.mxu0 %v400
      %637 = vmatprep.subr.mxu0 %v405
      %638 = vmatpush1.msra.mxu0 %v404
      %639 = vmatprep.subr.mxu0 %v409
      %640 = vmatpush1.msra.mxu0 %v408
      %641 = vmatprep.subr.mxu0 %v413
      %642 = vmatpush1.msra.mxu0 %v412
      %643 = vmatprep.subr.mxu0 %v417
      %644 = vmatpush1.msra.mxu0 %v416
      %645 = vmatprep.subr.mxu0 %v421
      %646 = vmatpush1.msra.mxu0 %v420
      %647 = vmatprep.subr.mxu0 %v425
      %648 = vmatpush1.msra.mxu0 %v424
      %649 = vmatprep.subr.mxu0 %v429
      %650 = vmatpush1.msra.mxu0 %v428
      %651 = vmatprep.subr.mxu0 %v433
      %652 = vmatpush1.msra.mxu0 %v432
      %653 = vmatprep.subr.mxu0 %v437
      %654 = vmatpush1.msra.mxu0 %v436
      %655 = vmatprep.subr.mxu0 %v441
      %656 = vmatpush1.msra.mxu0 %v440
      %657 = vmatprep.subr.mxu0 %v445
      %658 = vmatpush1.msra.mxu0 %v444
      %659 = vmatprep.subr.mxu0 %v449
      %660 = vmatpush1.msra.mxu0 %v448
      %661 = vmatprep.subr.mxu0 %v453
      %662 = vmatpush1.msra.mxu0 %v452
      %663 = vmatprep.subr.mxu0 %v457
      %664 = vmatpush1.msra.mxu0 %v456
      %665 = vmatprep.subr.mxu0 %v461
      %666 = vmatpush1.msra.mxu0 %v460
      %667 = vmatprep.subr.mxu0 %v465
      %668 = vmatpush1.msra.mxu0 %v464
      %669 = vmatprep.subr.mxu0 %v469
      %670 = vmatpush1.msra.mxu0 %v468
      %671 = vmatprep.subr.mxu0 %v473
      %672 = vmatpush1.msra.mxu0 %v472
      %673 = vmatprep.subr.mxu0 %v477
      %674 = vmatpush1.msra.mxu0 %v476
      %675 = vmatprep.subr.mxu0 %v481
      %676 = vmatpush1.msra.mxu0 %v480
      %677 = vmatprep.subr.mxu0 %v485
      %678 = vmatpush1.msra.mxu0 %v484
      %679 = vmatprep.subr.mxu0 %v489
      %680 = vmatpush1.msra.mxu0 %v488
      %681 = vmatprep.subr.mxu0 %v493
      %682 = vmatpush1.msra.mxu0 %v492
      %683 = vmatprep.subr.mxu0 %v497
      %684 = vmatpush1.msra.mxu0 %v496
      %685 = vmatprep.subr.mxu0 %v501
      %686 = vmatpush1.msra.mxu0 %v500
      %687 = vmatprep.subr.mxu0 %v505
      %688 = vmatpush1.msra.mxu0 %v504
      %689 = vmatprep.subr.mxu0 %v509
      %690 = vmatpush1.msra.mxu0 %v508
      %691 = vmatprep.subr.mxu0 %v513
      %692 = vmatpush1.msra.mxu0 %v512
      %693 = vmatprep.subr.mxu0 %v517
      %694 = vmatpush1.msra.mxu0 %v516
      %695 = vmatprep.mubr.f32.mxu0 %v374
      %696 = vmatmul.mubr.f32.gmra.mrb[0].mxu0 %v373
      %v697 = vpop.f32.mrb[0].mxu0
      %v698 = vadd.f32 0.0, %v697
      %v699 = vpop.f32.mrb[0].mxu0
      %v700 = vadd.f32 0.0, %v699
      %701 = vmatprep.mubr.f32.mxu0 %v376
      %702 = vmatmul.mubr.f32.gmra.mrb[0].mxu0 %v375
      %v703 = vpop.f32.mrb[0].mxu0
      %v704 = vadd.f32 0.0, %v703
      %v705 = vpop.f32.mrb[0].mxu0
      %v706 = vadd.f32 0.0, %v705
      %707 = vmatprep.mubr.f32.mxu0 %v378
      %708 = vmatmul.mubr.f32.gmra.mrb[0].mxu0 %v377
      %v709 = vpop.f32.mrb[0].mxu0
      %v710 = vadd.f32 0.0, %v709
      %v711 = vpop.f32.mrb[0].mxu0
      %v712 = vadd.f32 0.0, %v711
      %713 = vmatprep.mubr.f32.mxu0 %v380
      %714 = vmatmul.mubr.f32.gmra.mrb[0].mxu0 %v379
      %v715 = vpop.f32.mrb[0].mxu0
      %v716 = vadd.f32 0.0, %v715
      %v717 = vpop.f32.mrb[0].mxu0
      %v718 = vadd.f32 0.0, %v717
      %719 = vmatprep.mubr.f32.mxu0 %v382
      %720 = vmatmul.mubr.f32.gmra.mrb[0].mxu0 %v381
      %v721 = vpop.f32.mrb[0].mxu0
      %v722 = vadd.f32 0.0, %v721
      %v723 = vpop.f32.mrb[0].mxu0
      %v724 = vadd.f32 0.0, %v723
      %725 = vmatprep.mubr.f32.mxu0 %v384
      %726 = vmatmul.mubr.f32.gmra.mrb[0].mxu0 %v383
      %v727 = vpop.f32.mrb[0].mxu0
      %v728 = vadd.f32 0.0, %v727
      %v729 = vpop.f32.mrb[0].mxu0
      %v730 = vadd.f32 0.0, %v729
      %731 = vmatprep.mubr.f32.mxu0 %v386
      %732 = vmatmul.mubr.f32.gmra.mrb[0].mxu0 %v385
      %v733 = vpop.f32.mrb[0].mxu0
      %v734 = vadd.f32 0.0, %v733
      %v735 = vpop.f32.mrb[0].mxu0
      %v736 = vadd.f32 0.0, %v735
      %737 = vmatprep.mubr.f32.mxu0 %v388
      %738 = vmatmul.mubr.f32.gmra.mrb[0].mxu0 %v387
      %v739 = vpop.f32.mrb[0].mxu0
      %v740 = vadd.f32 0.0, %v739
      %v741 = vpop.f32.mrb[0].mxu0
      %v742 = vadd.f32 0.0, %v741
      %743 = vdwg.mxu0
      %744 = vmatprep.subr.mxu0 %v246
      %745 = vmatpush1.msra.mxu0 %v245
      %746 = vmatprep.subr.mxu0 %v250
      %747 = vmatpush1.msra.mxu0 %v249
      %748 = vmatprep.subr.mxu0 %v254
      %749 = vmatpush1.msra.mxu0 %v253
      %750 = vmatprep.subr.mxu0 %v258
      %751 = vmatpush1.msra.mxu0 %v257
      %752 = vmatprep.subr.mxu0 %v262
      %753 = vmatpush1.msra.mxu0 %v261
      %754 = vmatprep.subr.mxu0 %v266
      %755 = vmatpush1.msra.mxu0 %v265
      %756 = vmatprep.subr.mxu0 %v270
      %757 = vmatpush1.msra.mxu0 %v269
      %758 = vmatprep.subr.mxu0 %v274
      %759 = vmatpush1.msra.mxu0 %v273
      %760 = vmatprep.subr.mxu0 %v278
      %761 = vmatpush1.msra.mxu0 %v277
      %762 = vmatprep.subr.mxu0 %v282
      %763 = vmatpush1.msra.mxu0 %v281
      %764 = vmatprep.subr.mxu0 %v286
      %765 = vmatpush1.msra.mxu0 %v285
      %766 = vmatprep.subr.mxu0 %v290
      %767 = vmatpush1.msra.mxu0 %v289
      %768 = vmatprep.subr.mxu0 %v294
      %769 = vmatpush1.msra.mxu0 %v293
      %770 = vmatprep.subr.mxu0 %v298
      %771 = vmatpush1.msra.mxu0 %v297
      %772 = vmatprep.subr.mxu0 %v302
      %773 = vmatpush1.msra.mxu0 %v301
      %774 = vmatprep.subr.mxu0 %v306
      %775 = vmatpush1.msra.mxu0 %v305
      %776 = vmatprep.subr.mxu0 %v310
      %777 = vmatpush1.msra.mxu0 %v309
      %778 = vmatprep.subr.mxu0 %v314
      %779 = vmatpush1.msra.mxu0 %v313
      %780 = vmatprep.subr.mxu0 %v318
      %781 = vmatpush1.msra.mxu0 %v317
      %782 = vmatprep.subr.mxu0 %v322
      %783 = vmatpush1.msra.mxu0 %v321
      %784 = vmatprep.subr.mxu0 %v326
      %785 = vmatpush1.msra.mxu0 %v325
      %786 = vmatprep.subr.mxu0 %v330
      %787 = vmatpush1.msra.mxu0 %v329
      %788 = vmatprep.subr.mxu0 %v334
      %789 = vmatpush1.msra.mxu0 %v333
      %790 = vmatprep.subr.mxu0 %v338
      %791 = vmatpush1.msra.mxu0 %v337
      %792 = vmatprep.subr.mxu0 %v342
      %793 = vmatpush1.msra.mxu0 %v341
      %794 = vmatprep.subr.mxu0 %v346
      %795 = vmatpush1.msra.mxu0 %v345
      %796 = vmatprep.subr.mxu0 %v350
      %797 = vmatpush1.msra.mxu0 %v349
      %798 = vmatprep.subr.mxu0 %v354
      %799 = vmatpush1.msra.mxu0 %v353
      %800 = vmatprep.subr.mxu0 %v358
      %801 = vmatpush1.msra.mxu0 %v357
      %802 = vmatprep.subr.mxu0 %v362
      %803 = vmatpush1.msra.mxu0 %v361
      %804 = vmatprep.subr.mxu0 %v366
      %805 = vmatpush1.msra.mxu0 %v365
      %806 = vmatprep.subr.mxu0 %v370
      %807 = vmatpush1.msra.mxu0 %v369
      %808 = vmatprep.mubr.f32.mxu0 %v230
      %809 = vmatmul.mubr.f32.gmra.mrb[0].mxu0 %v229
      %v810 = vpop.f32.mrb[0].mxu0
      %v811 = vadd.f32 %v585, %v810
      %v812 = vpop.f32.mrb[0].mxu0
      %v813 = vadd.f32 %v587, %v812
      %814 = vmatprep.mubr.f32.mxu0 %v232
      %815 = vmatmul.mubr.f32.gmra.mrb[0].mxu0 %v231
      %v816 = vpop.f32.mrb[0].mxu0
      %v817 = vadd.f32 %v591, %v816
      %v818 = vpop.f32.mrb[0].mxu0
      %v819 = vadd.f32 %v593, %v818
      %820 = vmatprep.mubr.f32.mxu0 %v234
      %821 = vmatmul.mubr.f32.gmra.mrb[0].mxu0 %v233
      %v822 = vpop.f32.mrb[0].mxu0
      %v823 = vadd.f32 %v597, %v822
      %v824 = vpop.f32.mrb[0].mxu0
      %v825 = vadd.f32 %v599, %v824
      %826 = vmatprep.mubr.f32.mxu0 %v236
      %827 = vmatmul.mubr.f32.gmra.mrb[0].mxu0 %v235
      %v828 = vpop.f32.mrb[0].mxu0
      %v829 = vadd.f32 %v603, %v828
      %v830 = vpop.f32.mrb[0].mxu0
      %v831 = vadd.f32 %v605, %v830
      %832 = vmatprep.mubr.f32.mxu0 %v238
      %833 = vmatmul.mubr.f32.gmra.mrb[0].mxu0 %v237
      %v834 = vpop.f32.mrb[0].mxu0
      %v835 = vadd.f32 %v609, %v834
      %v836 = vpop.f32.mrb[0].mxu0
      %v837 = vadd.f32 %v611, %v836
      %838 = vmatprep.mubr.f32.mxu0 %v240
      %839 = vmatmul.mubr.f32.gmra.mrb[0].mxu0 %v239
      %v840 = vpop.f32.mrb[0].mxu0
      %v841 = vadd.f32 %v615, %v840
      %v842 = vpop.f32.mrb[0].mxu0
      %v843 = vadd.f32 %v617, %v842
      %844 = vmatprep.mubr.f32.mxu0 %v242
      %845 = vmatmul.mubr.f32.gmra.mrb[0].mxu0 %v241
      %v846 = vpop.f32.mrb[0].mxu0
      %v847 = vadd.f32 %v621, %v846
      %v848 = vpop.f32.mrb[0].mxu0
      %v849 = vadd.f32 %v623, %v848
      %850 = vmatprep.mubr.f32.mxu0 %v244
      %851 = vmatmul.mubr.f32.gmra.mrb[0].mxu0 %v243
      %v852 = vpop.f32.mrb[0].mxu0
      %v853 = vadd.f32 %v627, %v852
      %v854 = vpop.f32.mrb[0].mxu0
      %v855 = vadd.f32 %v629, %v854
      %856 = vdwg.mxu0
      %857 = vmatprep.subr.mxu0 %v248
      %858 = vmatpush1.msra.mxu0 %v247
      %859 = vmatprep.subr.mxu0 %v252
      %860 = vmatpush1.msra.mxu0 %v251
      %861 = vmatprep.subr.mxu0 %v256
      %862 = vmatpush1.msra.mxu0 %v255
      %863 = vmatprep.subr.mxu0 %v260
      %864 = vmatpush1.msra.mxu0 %v259
      %865 = vmatprep.subr.mxu0 %v264
      %866 = vmatpush1.msra.mxu0 %v263
      %867 = vmatprep.subr.mxu0 %v268
      %868 = vmatpush1.msra.mxu0 %v267
      %869 = vmatprep.subr.mxu0 %v272
      %870 = vmatpush1.msra.mxu0 %v271
      %871 = vmatprep.subr.mxu0 %v276
      %872 = vmatpush1.msra.mxu0 %v275
      %873 = vmatprep.subr.mxu0 %v280
      %874 = vmatpush1.msra.mxu0 %v279
      %875 = vmatprep.subr.mxu0 %v284
      %876 = vmatpush1.msra.mxu0 %v283
      %877 = vmatprep.subr.mxu0 %v288
      %878 = vmatpush1.msra.mxu0 %v287
      %879 = vmatprep.subr.mxu0 %v292
      %880 = vmatpush1.msra.mxu0 %v291
      %881 = vmatprep.subr.mxu0 %v296
      %882 = vmatpush1.msra.mxu0 %v295
      %883 = vmatprep.subr.mxu0 %v300
      %884 = vmatpush1.msra.mxu0 %v299
      %885 = vmatprep.subr.mxu0 %v304
      %886 = vmatpush1.msra.mxu0 %v303
      %887 = vmatprep.subr.mxu0 %v308
      %888 = vmatpush1.msra.mxu0 %v307
      %889 = vmatprep.subr.mxu0 %v312
      %890 = vmatpush1.msra.mxu0 %v311
      %891 = vmatprep.subr.mxu0 %v316
      %892 = vmatpush1.msra.mxu0 %v315
      %893 = vmatprep.subr.mxu0 %v320
      %894 = vmatpush1.msra.mxu0 %v319
      %895 = vmatprep.subr.mxu0 %v324
      %896 = vmatpush1.msra.mxu0 %v323
      %897 = vmatprep.subr.mxu0 %v328
      %898 = vmatpush1.msra.mxu0 %v327
      %899 = vmatprep.subr.mxu0 %v332
      %900 = vmatpush1.msra.mxu0 %v331
      %901 = vmatprep.subr.mxu0 %v336
      %902 = vmatpush1.msra.mxu0 %v335
      %903 = vmatprep.subr.mxu0 %v340
      %904 = vmatpush1.msra.mxu0 %v339
      %905 = vmatprep.subr.mxu0 %v344
      %906 = vmatpush1.msra.mxu0 %v343
      %907 = vmatprep.subr.mxu0 %v348
      %908 = vmatpush1.msra.mxu0 %v347
      %909 = vmatprep.subr.mxu0 %v352
      %910 = vmatpush1.msra.mxu0 %v351
      %911 = vmatprep.subr.mxu0 %v356
      %912 = vmatpush1.msra.mxu0 %v355
      %913 = vmatprep.subr.mxu0 %v360
      %914 = vmatpush1.msra.mxu0 %v359
      %915 = vmatprep.subr.mxu0 %v364
      %916 = vmatpush1.msra.mxu0 %v363
      %917 = vmatprep.subr.mxu0 %v368
      %918 = vmatpush1.msra.mxu0 %v367
      %919 = vmatprep.subr.mxu0 %v372
      %920 = vmatpush1.msra.mxu0 %v371
      %921 = vmatprep.mubr.f32.mxu0 %v230
      %922 = vmatmul.mubr.f32.gmra.mrb[0].mxu0 %v229
      %v923 = vpop.f32.mrb[0].mxu0
      %v924 = vadd.f32 %v698, %v923
      %v925 = vpop.f32.mrb[0].mxu0
      %v926 = vadd.f32 %v700, %v925
      %927 = vmatprep.mubr.f32.mxu0 %v232
      %928 = vmatmul.mubr.f32.gmra.mrb[0].mxu0 %v231
      %v929 = vpop.f32.mrb[0].mxu0
      %v930 = vadd.f32 %v704, %v929
      %v931 = vpop.f32.mrb[0].mxu0
      %v932 = vadd.f32 %v706, %v931
      %933 = vmatprep.mubr.f32.mxu0 %v234
      %934 = vmatmul.mubr.f32.gmra.mrb[0].mxu0 %v233
      %v935 = vpop.f32.mrb[0].mxu0
      %v936 = vadd.f32 %v710, %v935
      %v937 = vpop.f32.mrb[0].mxu0
      %v938 = vadd.f32 %v712, %v937
      %939 = vmatprep.mubr.f32.mxu0 %v236
      %940 = vmatmul.mubr.f32.gmra.mrb[0].mxu0 %v235
      %v941 = vpop.f32.mrb[0].mxu0
      %v942 = vadd.f32 %v716, %v941
      %v943 = vpop.f32.mrb[0].mxu0
      %v944 = vadd.f32 %v718, %v943
      %945 = vmatprep.mubr.f32.mxu0 %v238
      %946 = vmatmul.mubr.f32.gmra.mrb[0].mxu0 %v237
      %v947 = vpop.f32.mrb[0].mxu0
      %v948 = vadd.f32 %v722, %v947
      %v949 = vpop.f32.mrb[0].mxu0
      %v950 = vadd.f32 %v724, %v949
      %951 = vmatprep.mubr.f32.mxu0 %v240
      %952 = vmatmul.mubr.f32.gmra.mrb[0].mxu0 %v239
      %v953 = vpop.f32.mrb[0].mxu0
      %v954 = vadd.f32 %v728, %v953
      %v955 = vpop.f32.mrb[0].mxu0
      %v956 = vadd.f32 %v730, %v955
      %957 = vmatprep.mubr.f32.mxu0 %v242
      %958 = vmatmul.mubr.f32.gmra.mrb[0].mxu0 %v241
      %v959 = vpop.f32.mrb[0].mxu0
      %v960 = vadd.f32 %v734, %v959
      %v961 = vpop.f32.mrb[0].mxu0
      %v962 = vadd.f32 %v736, %v961
      %963 = vmatprep.mubr.f32.mxu0 %v244
      %964 = vmatmul.mubr.f32.gmra.mrb[0].mxu0 %v243
      %v965 = vpop.f32.mrb[0].mxu0
      %v966 = vadd.f32 %v740, %v965
      %v967 = vpop.f32.mrb[0].mxu0
      %v968 = vadd.f32 %v742, %v967
      %969 = vdwg.mxu0
      %v970 = vmax.f32 %v811, %v813
      %v971 = vmax.f32 %v817, %v819
      %v972 = vmax.f32 %v823, %v825
      %v973 = vmax.f32 %v829, %v831
      %v974 = vmax.f32 %v835, %v837
      %v975 = vmax.f32 %v841, %v843
      %v976 = vmax.f32 %v847, %v849
      %v977 = vmax.f32 %v853, %v855
      %v978 = vmax.f32 %v924, %v926
      %v979 = vmax.f32 %v930, %v932
      %v980 = vmax.f32 %v936, %v938
      %v981 = vmax.f32 %v942, %v944
      %v982 = vmax.f32 %v948, %v950
      %v983 = vmax.f32 %v954, %v956
      %v984 = vmax.f32 %v960, %v962
      %v985 = vmax.f32 %v966, %v968
      %v986 = vmax.f32 %v970, %v978
      %v987 = vmax.f32 %v971, %v979
      %v988 = vmax.f32 %v972, %v980
      %v989 = vmax.f32 %v973, %v981
      %v990 = vmax.f32 %v974, %v982
      %v991 = vmax.f32 %v975, %v983
      %v992 = vmax.f32 %v976, %v984
      %v993 = vmax.f32 %v977, %v985
      %v994 = vld [vmem:[%s3] sm:$0x1]
      %v996 = vlaneseq
      %v997 = vshrl.u32 %v996, 7
      %v998 = vsub.s32 0, %v997
      %v999 = vrot.slane %v994, %v998
      %v1001 = vadd.f32 %v986, %v999
      %v1002 = vadd.f32 %v987, %v999
      %v1003 = vadd.f32 %v988, %v999
      %v1004 = vadd.f32 %v989, %v999
      %v1005 = vadd.f32 %v990, %v999
      %v1006 = vadd.f32 %v991, %v999
      %v1007 = vadd.f32 %v992, %v999
      %v1008 = vadd.f32 %v993, %v999
      %v1009 = vmax.f32 %v1001, 0.0
      %v1010 = vmax.f32 %v1002, 0.0
      %v1011 = vmax.f32 %v1003, 0.0
      %v1012 = vmax.f32 %v1004, 0.0
      %v1013 = vmax.f32 %v1005, 0.0
      %v1014 = vmax.f32 %v1006, 0.0
      %v1015 = vmax.f32 %v1007, 0.0
      %v1016 = vmax.f32 %v1008, 0.0
      %1017 = vst [vmem:[%s227] sm:$0xff] %v1009
      %1018 = vst [vmem:[%s227 + $0x8] sm:$0xff] %v1010
      %1019 = vst [vmem:[%s227 + $0x10] sm:$0xff] %v1011
      %1020 = vst [vmem:[%s227 + $0x18] sm:$0xff] %v1012
      %1021 = vst [vmem:[%s227 + $0x20] sm:$0xff] %v1013
      %1022 = vst [vmem:[%s227 + $0x28] sm:$0xff] %v1014
      %1023 = vst [vmem:[%s227 + $0x30] sm:$0xff] %v1015
      %1024 = vst [vmem:[%s227 + $0x38] sm:$0xff] %v1016
      %s1025 = smul.u32 8, %s15
      %p1026 = scmp.lt.s32.totalorder %s1025, 15
      %s1027 = scalar_select %p1026, %s1025, 15
      %s1028 = smul.addr %s1027, 8
      %s1029 = scalar_lea.vmem %s4, %s1028
      // Predicated region
      $region37: #{mnist_cnn_forward.4} parent=35 // pred_check
        %p1030 = pneg %p127
      $region38: #{mnist_cnn_forward.4} parent=35 // pred_check_branch
        %1032 = sbr.rel (%p1030) target = $region40
      $region39: #{mnist_cnn_forward.4} parent=35 // pred_region
        %s1033 = smul.u32 8, %s15
      $region40: #{mnist_cnn_forward.4} parent=35 // pred_fallthru
        _
    $region36: #{mnist_cnn_forward.4} parent=5 // pred_fallthru
      _
    %p1034 = scmp.le.s32.totalorder 2, %s10
    // Predicated region
    $region41: #{mnist_cnn_forward.4} parent=5 // pred_check
      %p1035 = pneg %p1034
    $region42: #{mnist_cnn_forward.4} parent=5 // pred_check_branch
      %1037 = sbr.rel (%p1035) target = $region44
    $region43: #{mnist_cnn_forward.4} parent=5 // pred_region
      %s1038 = ssub.s32 %s10, 2
      // Predicated region
      $region45: #{mnist_cnn_forward.4} parent=43 // pred_check
        %p1039 = pneg %p133
      $region46: #{mnist_cnn_forward.4} parent=43 // pred_check_branch
        %1041 = sbr.rel (%p1039) target = $region48
      $region47: #{mnist_cnn_forward.4} parent=43 // pred_region
        %s1042 = smul.u32 8, %s16
        %p1043 = scmp.lt.s32.totalorder %s1042, 15
        %s1044 = scalar_select %p1043, %s1042, 15
        %s1045 = smul.addr %s1044, 8
        %s1046 = scalar_lea.vmem %s4, %s1045
      $region48: #{mnist_cnn_forward.4} parent=43 // pred_fallthru
        _
    $region44: #{mnist_cnn_forward.4} parent=5 // pred_fallthru
      _
  $region6: #{mnist_cnn_forward.4} parent=0 // loop_footer
    %s14 = sadd.s32 1, %s10
  $region7: #{mnist_cnn_forward.4} parent=0 // loop_footer_branch
    %9 = sbr.rel target = $region3
  $region8: #{mnist_cnn_forward.4} parent=0 // loop_exit
    _

// kernel: mnist_cnn_forward.5
$region0: #{mnist_cnn_forward.5}
  #allocation0 [shape = 'u32[]', space=smem, size = 0x4, offset = 0x4, fixed_abs, tag = 'smem constant byte address 0x4 - core index']
  #allocation1 [shape = 'u32[144,128]{1,0:T(1,128)}', space=vmem, size = 0x12000, scoped, tag = 'internal scratch']
  %s0 = inlined_call_operand.vmem [shape: f32[8,3136], index: 0, kind: input, shape index: {}]
  %s1 = inlined_call_operand.vmem [shape: f32[3136,128], index: 1, kind: input, shape index: {}]
  %s2 = inlined_call_operand.vmem [shape: f32[1,128], index: 2, kind: input, shape index: {}]
  %s3 = inlined_call_operand.vmem [shape: f32[128,128], index: 3, kind: input, shape index: {}]
  %s4 = inlined_call_operand.vmem [shape: f32[1,128], index: 4, kind: input, shape index: {}]
  %s5 = inlined_call_operand.vmem [shape: f32[8,128], index: 5, kind: output, shape index: {}]
  %s6 = sld [smem:[#allocation0]]
  $region30: #{mnist_cnn_forward.5} parent=0
    _
  %s8 = ssub.s32 1, %s6
  %s9 = scalar_select 0, %s8, %s6
  // Predicated region
  $region2: #{mnist_cnn_forward.5} parent=0 // pred_check
    _
  $region3: #{mnist_cnn_forward.5} parent=0 // pred_check_branch
    %11 = sbr.rel (0) target = $region5
  $region4: #{mnist_cnn_forward.5} parent=0 // pred_region
    _
  $region5: #{mnist_cnn_forward.5} parent=0 // pred_fallthru
    _
  // Predicated region
  $region6: #{mnist_cnn_forward.5} parent=0 // pred_check
    _
  $region7: #{mnist_cnn_forward.5} parent=0 // pred_check_branch
    %13 = sbr.rel (0) target = $region9
  $region8: #{mnist_cnn_forward.5} parent=0 // pred_region
    _
  $region9: #{mnist_cnn_forward.5} parent=0 // pred_fallthru
    _
  // Predicated region
  $region10: #{mnist_cnn_forward.5} parent=0 // pred_check
    _
  $region11: #{mnist_cnn_forward.5} parent=0 // pred_check_branch
    %15 = sbr.rel (0) target = $region13
  $region12: #{mnist_cnn_forward.5} parent=0 // pred_region
    _
  $region13: #{mnist_cnn_forward.5} parent=0 // pred_fallthru
    _
  // Predicated region
  $region14: #{mnist_cnn_forward.5} parent=0 // pred_check
    _
  $region15: #{mnist_cnn_forward.5} parent=0 // pred_check_branch
    %17 = sbr.rel (0) target = $region17
  $region16: #{mnist_cnn_forward.5} parent=0 // pred_region
    _
  $region17: #{mnist_cnn_forward.5} parent=0 // pred_fallthru
    _
  // Predicated region
  $region18: #{mnist_cnn_forward.5} parent=0 // pred_check
    _
  $region19: #{mnist_cnn_forward.5} parent=0 // pred_check_branch
    %19 = sbr.rel (0) target = $region21
  $region20: #{mnist_cnn_forward.5} parent=0 // pred_region
    _
  $region21: #{mnist_cnn_forward.5} parent=0 // pred_fallthru
    _
  %v20 = vld [vmem:[%s0] sm:$0xff]
  %v21 = vld [vmem:[%s0 + $0x8] sm:$0xff]
  %v22 = vld [vmem:[%s0 + $0x10] sm:$0xff]
  %v23 = vld [vmem:[%s0 + $0x18] sm:$0xff]
  %v24 = vld [vmem:[%s0 + $0x20] sm:$0xff]
  %v25 = vld [vmem:[%s0 + $0x28] sm:$0xff]
  %v26 = vld [vmem:[%s0 + $0x30] sm:$0xff]
  %v27 = vld [vmem:[%s0 + $0x38] sm:$0xff]
  %v28 = vld [vmem:[%s0 + $0x40] sm:$0xff]
  %v29 = vld [vmem:[%s0 + $0x48] sm:$0xff]
  %v30 = vld [vmem:[%s0 + $0x50] sm:$0xff]
  %v31 = vld [vmem:[%s0 + $0x58] sm:$0xff]
  %v32 = vld [vmem:[%s0 + $0x60] sm:$0xff]
  %v33 = vld [vmem:[%s0 + $0x68] sm:$0xff]
  %v34 = vld [vmem:[%s0 + $0x70] sm:$0xff]
  %v35 = vld [vmem:[%s0 + $0x78] sm:$0xff]
  %v36 = vld [vmem:[%s0 + $0x80] sm:$0xff]
  %v37 = vld [vmem:[%s0 + $0x88] sm:$0xff]
  %v38 = vld [vmem:[%s0 + $0x90] sm:$0xff]
  %v39 = vld [vmem:[%s0 + $0x98] sm:$0xff]
  %v40 = vld [vmem:[%s0 + $0xa0] sm:$0xff]
  %v41 = vld [vmem:[%s0 + $0xa8] sm:$0xff]
  %v42 = vld [vmem:[%s0 + $0xb0] sm:$0xff]
  %v43 = vld [vmem:[%s0 + $0xb8] sm:$0xff]
  %v44 = vld [vmem:[%s0 + $0xc0] sm:$0xff]
  %v45 = vld [vmem:[%s1] sm:$0xff]
  %v46 = vld [vmem:[%s1 + $0x8] sm:$0xff]
  %v47 = vld [vmem:[%s1 + $0x10] sm:$0xff]
  %v48 = vld [vmem:[%s1 + $0x18] sm:$0xff]
  %v49 = vld [vmem:[%s1 + $0x20] sm:$0xff]
  %v50 = vld [vmem:[%s1 + $0x28] sm:$0xff]
  %v51 = vld [vmem:[%s1 + $0x30] sm:$0xff]
  %v52 = vld [vmem:[%s1 + $0x38] sm:$0xff]
  %v53 = vld [vmem:[%s1 + $0x40] sm:$0xff]
  %v54 = vld [vmem:[%s1 + $0x48] sm:$0xff]
  %v55 = vld [vmem:[%s1 + $0x50] sm:$0xff]
  %v56 = vld [vmem:[%s1 + $0x58] sm:$0xff]
  %v57 = vld [vmem:[%s1 + $0x60] sm:$0xff]
  %v58 = vld [vmem:[%s1 + $0x68] sm:$0xff]
  %v59 = vld [vmem:[%s1 + $0x70] sm:$0xff]
  %v60 = vld [vmem:[%s1 + $0x78] sm:$0xff]
  %v61 = vld [vmem:[%s1 + $0x80] sm:$0xff]
  %v62 = vld [vmem:[%s1 + $0x88] sm:$0xff]
  %v63 = vld [vmem:[%s1 + $0x90] sm:$0xff]
  %v64 = vld [vmem:[%s1 + $0x98] sm:$0xff]
  %v65 = vld [vmem:[%s1 + $0xa0] sm:$0xff]
  %v66 = vld [vmem:[%s1 + $0xa8] sm:$0xff]
  %v67 = vld [vmem:[%s1 + $0xb0] sm:$0xff]
  %v68 = vld [vmem:[%s1 + $0xb8] sm:$0xff]
  %v69 = vld [vmem:[%s1 + $0xc0] sm:$0xff]
  %v70 = vld [vmem:[%s1 + $0xc8] sm:$0xff]
  %v71 = vld [vmem:[%s1 + $0xd0] sm:$0xff]
  %v72 = vld [vmem:[%s1 + $0xd8] sm:$0xff]
  %v73 = vld [vmem:[%s1 + $0xe0] sm:$0xff]
  %v74 = vld [vmem:[%s1 + $0xe8] sm:$0xff]
  %v75 = vld [vmem:[%s1 + $0xf0] sm:$0xff]
  %v76 = vld [vmem:[%s1 + $0xf8] sm:$0xff]
  %v77 = vld [vmem:[%s1 + $0x100] sm:$0xff]
  %v78 = vld [vmem:[%s1 + $0x108] sm:$0xff]
  %v79 = vld [vmem:[%s1 + $0x110] sm:$0xff]
  %v80 = vld [vmem:[%s1 + $0x118] sm:$0xff]
  %v81 = vld [vmem:[%s1 + $0x120] sm:$0xff]
  %v82 = vld [vmem:[%s1 + $0x128] sm:$0xff]
  %v83 = vld [vmem:[%s1 + $0x130] sm:$0xff]
  %v84 = vld [vmem:[%s1 + $0x138] sm:$0xff]
  %v85 = vld [vmem:[%s1 + $0x140] sm:$0xff]
  %v86 = vld [vmem:[%s1 + $0x148] sm:$0xff]
  %v87 = vld [vmem:[%s1 + $0x150] sm:$0xff]
  %v88 = vld [vmem:[%s1 + $0x158] sm:$0xff]
  %v89 = vld [vmem:[%s1 + $0x160] sm:$0xff]
  %v90 = vld [vmem:[%s1 + $0x168] sm:$0xff]
  %v91 = vld [vmem:[%s1 + $0x170] sm:$0xff]
  %v92 = vld [vmem:[%s1 + $0x178] sm:$0xff]
  %v93 = vld [vmem:[%s1 + $0x180] sm:$0xff]
  %v94 = vld [vmem:[%s1 + $0x188] sm:$0xff]
  %v95 = vld [vmem:[%s1 + $0x190] sm:$0xff]
  %v96 = vld [vmem:[%s1 + $0x198] sm:$0xff]
  %v97 = vld [vmem:[%s1 + $0x1a0] sm:$0xff]
  %v98 = vld [vmem:[%s1 + $0x1a8] sm:$0xff]
  %v99 = vld [vmem:[%s1 + $0x1b0] sm:$0xff]
  %v100 = vld [vmem:[%s1 + $0x1b8] sm:$0xff]
  %v101 = vld [vmem:[%s1 + $0x1c0] sm:$0xff]
  %v102 = vld [vmem:[%s1 + $0x1c8] sm:$0xff]
  %v103 = vld [vmem:[%s1 + $0x1d0] sm:$0xff]
  %v104 = vld [vmem:[%s1 + $0x1d8] sm:$0xff]
  %v105 = vld [vmem:[%s1 + $0x1e0] sm:$0xff]
  %v106 = vld [vmem:[%s1 + $0x1e8] sm:$0xff]
  %v107 = vld [vmem:[%s1 + $0x1f0] sm:$0xff]
  %v108 = vld [vmem:[%s1 + $0x1f8] sm:$0xff]
  %v109 = vld [vmem:[%s1 + $0x200] sm:$0xff]
  %v110 = vld [vmem:[%s1 + $0x208] sm:$0xff]
  %v111 = vld [vmem:[%s1 + $0x210] sm:$0xff]
  %v112 = vld [vmem:[%s1 + $0x218] sm:$0xff]
  %v113 = vld [vmem:[%s1 + $0x220] sm:$0xff]
  %v114 = vld [vmem:[%s1 + $0x228] sm:$0xff]
  %v115 = vld [vmem:[%s1 + $0x230] sm:$0xff]
  %v116 = vld [vmem:[%s1 + $0x238] sm:$0xff]
  %v117 = vld [vmem:[%s1 + $0x240] sm:$0xff]
  %v118 = vld [vmem:[%s1 + $0x248] sm:$0xff]
  %v119 = vld [vmem:[%s1 + $0x250] sm:$0xff]
  %v120 = vld [vmem:[%s1 + $0x258] sm:$0xff]
  %v121 = vld [vmem:[%s1 + $0x260] sm:$0xff]
  %v122 = vld [vmem:[%s1 + $0x268] sm:$0xff]
  %v123 = vld [vmem:[%s1 + $0x270] sm:$0xff]
  %v124 = vld [vmem:[%s1 + $0x278] sm:$0xff]
  %v125 = vld [vmem:[%s1 + $0x280] sm:$0xff]
  %v126 = vld [vmem:[%s1 + $0x288] sm:$0xff]
  %v127 = vld [vmem:[%s1 + $0x290] sm:$0xff]
  %v128 = vld [vmem:[%s1 + $0x298] sm:$0xff]
  %v129 = vld [vmem:[%s1 + $0x2a0] sm:$0xff]
  %v130 = vld [vmem:[%s1 + $0x2a8] sm:$0xff]
  %v131 = vld [vmem:[%s1 + $0x2b0] sm:$0xff]
  %v132 = vld [vmem:[%s1 + $0x2b8] sm:$0xff]
  %v133 = vld [vmem:[%s1 + $0x2c0] sm:$0xff]
  %v134 = vld [vmem:[%s1 + $0x2c8] sm:$0xff]
  %v135 = vld [vmem:[%s1 + $0x2d0] sm:$0xff]
  %v136 = vld [vmem:[%s1 + $0x2d8] sm:$0xff]
  %v137 = vld [vmem:[%s1 + $0x2e0] sm:$0xff]
  %v138 = vld [vmem:[%s1 + $0x2e8] sm:$0xff]
  %v139 = vld [vmem:[%s1 + $0x2f0] sm:$0xff]
  %v140 = vld [vmem:[%s1 + $0x2f8] sm:$0xff]
  %v141 = vld [vmem:[%s1 + $0x300] sm:$0xff]
  %v142 = vld [vmem:[%s1 + $0x308] sm:$0xff]
  %v143 = vld [vmem:[%s1 + $0x310] sm:$0xff]
  %v144 = vld [vmem:[%s1 + $0x318] sm:$0xff]
  %v145 = vld [vmem:[%s1 + $0x320] sm:$0xff]
  %v146 = vld [vmem:[%s1 + $0x328] sm:$0xff]
  %v147 = vld [vmem:[%s1 + $0x330] sm:$0xff]
  %v148 = vld [vmem:[%s1 + $0x338] sm:$0xff]
  %v149 = vld [vmem:[%s1 + $0x340] sm:$0xff]
  %v150 = vld [vmem:[%s1 + $0x348] sm:$0xff]
  %v151 = vld [vmem:[%s1 + $0x350] sm:$0xff]
  %v152 = vld [vmem:[%s1 + $0x358] sm:$0xff]
  %v153 = vld [vmem:[%s1 + $0x360] sm:$0xff]
  %v154 = vld [vmem:[%s1 + $0x368] sm:$0xff]
  %v155 = vld [vmem:[%s1 + $0x370] sm:$0xff]
  %v156 = vld [vmem:[%s1 + $0x378] sm:$0xff]
  %v157 = vld [vmem:[%s1 + $0x380] sm:$0xff]
  %v158 = vld [vmem:[%s1 + $0x388] sm:$0xff]
  %v159 = vld [vmem:[%s1 + $0x390] sm:$0xff]
  %v160 = vld [vmem:[%s1 + $0x398] sm:$0xff]
  %v161 = vld [vmem:[%s1 + $0x3a0] sm:$0xff]
  %v162 = vld [vmem:[%s1 + $0x3a8] sm:$0xff]
  %v163 = vld [vmem:[%s1 + $0x3b0] sm:$0xff]
  %v164 = vld [vmem:[%s1 + $0x3b8] sm:$0xff]
  %v165 = vld [vmem:[%s1 + $0x3c0] sm:$0xff]
  %v166 = vld [vmem:[%s1 + $0x3c8] sm:$0xff]
  %v167 = vld [vmem:[%s1 + $0x3d0] sm:$0xff]
  %v168 = vld [vmem:[%s1 + $0x3d8] sm:$0xff]
  %v169 = vld [vmem:[%s1 + $0x3e0] sm:$0xff]
  %v170 = vld [vmem:[%s1 + $0x3e8] sm:$0xff]
  %v171 = vld [vmem:[%s1 + $0x3f0] sm:$0xff]
  %v172 = vld [vmem:[%s1 + $0x3f8] sm:$0xff]
  %v173 = vld [vmem:[%s1 + $0x400] sm:$0xff]
  %v174 = vld [vmem:[%s1 + $0x408] sm:$0xff]
  %v175 = vld [vmem:[%s1 + $0x410] sm:$0xff]
  %v176 = vld [vmem:[%s1 + $0x418] sm:$0xff]
  %v177 = vld [vmem:[%s1 + $0x420] sm:$0xff]
  %v178 = vld [vmem:[%s1 + $0x428] sm:$0xff]
  %v179 = vld [vmem:[%s1 + $0x430] sm:$0xff]
  %v180 = vld [vmem:[%s1 + $0x438] sm:$0xff]
  %v181 = vld [vmem:[%s1 + $0x440] sm:$0xff]
  %v182 = vld [vmem:[%s1 + $0x448] sm:$0xff]
  %v183 = vld [vmem:[%s1 + $0x450] sm:$0xff]
  %v184 = vld [vmem:[%s1 + $0x458] sm:$0xff]
  %v185 = vld [vmem:[%s1 + $0x460] sm:$0xff]
  %v186 = vld [vmem:[%s1 + $0x468] sm:$0xff]
  %v187 = vld [vmem:[%s1 + $0x470] sm:$0xff]
  %v188 = vld [vmem:[%s1 + $0x478] sm:$0xff]
  %v189 = vld [vmem:[%s1 + $0x480] sm:$0xff]
  %v190 = vld [vmem:[%s1 + $0x488] sm:$0xff]
  %v191 = vld [vmem:[%s1 + $0x490] sm:$0xff]
  %v192 = vld [vmem:[%s1 + $0x498] sm:$0xff]
  %v193 = vld [vmem:[%s1 + $0x4a0] sm:$0xff]
  %v194 = vld [vmem:[%s1 + $0x4a8] sm:$0xff]
  %v195 = vld [vmem:[%s1 + $0x4b0] sm:$0xff]
  %v196 = vld [vmem:[%s1 + $0x4b8] sm:$0xff]
  %v197 = vld [vmem:[%s1 + $0x4c0] sm:$0xff]
  %v198 = vld [vmem:[%s1 + $0x4c8] sm:$0xff]
  %v199 = vld [vmem:[%s1 + $0x4d0] sm:$0xff]
  %v200 = vld [vmem:[%s1 + $0x4d8] sm:$0xff]
  %v201 = vld [vmem:[%s1 + $0x4e0] sm:$0xff]
  %v202 = vld [vmem:[%s1 + $0x4e8] sm:$0xff]
  %v203 = vld [vmem:[%s1 + $0x4f0] sm:$0xff]
  %v204 = vld [vmem:[%s1 + $0x4f8] sm:$0xff]
  %v205 = vld [vmem:[%s1 + $0x500] sm:$0xff]
  %v206 = vld [vmem:[%s1 + $0x508] sm:$0xff]
  %v207 = vld [vmem:[%s1 + $0x510] sm:$0xff]
  %v208 = vld [vmem:[%s1 + $0x518] sm:$0xff]
  %v209 = vld [vmem:[%s1 + $0x520] sm:$0xff]
  %v210 = vld [vmem:[%s1 + $0x528] sm:$0xff]
  %v211 = vld [vmem:[%s1 + $0x530] sm:$0xff]
  %v212 = vld [vmem:[%s1 + $0x538] sm:$0xff]
  %v213 = vld [vmem:[%s1 + $0x540] sm:$0xff]
  %v214 = vld [vmem:[%s1 + $0x548] sm:$0xff]
  %v215 = vld [vmem:[%s1 + $0x550] sm:$0xff]
  %v216 = vld [vmem:[%s1 + $0x558] sm:$0xff]
  %v217 = vld [vmem:[%s1 + $0x560] sm:$0xff]
  %v218 = vld [vmem:[%s1 + $0x568] sm:$0xff]
  %v219 = vld [vmem:[%s1 + $0x570] sm:$0xff]
  %v220 = vld [vmem:[%s1 + $0x578] sm:$0xff]
  %v221 = vld [vmem:[%s1 + $0x580] sm:$0xff]
  %v222 = vld [vmem:[%s1 + $0x588] sm:$0xff]
  %v223 = vld [vmem:[%s1 + $0x590] sm:$0xff]
  %v224 = vld [vmem:[%s1 + $0x598] sm:$0xff]
  %v225 = vld [vmem:[%s1 + $0x5a0] sm:$0xff]
  %v226 = vld [vmem:[%s1 + $0x5a8] sm:$0xff]
  %v227 = vld [vmem:[%s1 + $0x5b0] sm:$0xff]
  %v228 = vld [vmem:[%s1 + $0x5b8] sm:$0xff]
  %v229 = vld [vmem:[%s1 + $0x5c0] sm:$0xff]
  %v230 = vld [vmem:[%s1 + $0x5c8] sm:$0xff]
  %v231 = vld [vmem:[%s1 + $0x5d0] sm:$0xff]
  %v232 = vld [vmem:[%s1 + $0x5d8] sm:$0xff]
  %v233 = vld [vmem:[%s1 + $0x5e0] sm:$0xff]
  %v234 = vld [vmem:[%s1 + $0x5e8] sm:$0xff]
  %v235 = vld [vmem:[%s1 + $0x5f0] sm:$0xff]
  %v236 = vld [vmem:[%s1 + $0x5f8] sm:$0xff]
  %v237 = vld [vmem:[%s1 + $0x600] sm:$0xff]
  %v238 = vld [vmem:[%s1 + $0x608] sm:$0xff]
  %v239 = vld [vmem:[%s1 + $0x610] sm:$0xff]
  %v240 = vld [vmem:[%s1 + $0x618] sm:$0xff]
  %v241 = vld [vmem:[%s1 + $0x620] sm:$0xff]
  %v242 = vld [vmem:[%s1 + $0x628] sm:$0xff]
  %v243 = vld [vmem:[%s1 + $0x630] sm:$0xff]
  %v244 = vld [vmem:[%s1 + $0x638] sm:$0xff]
  %v245 = vld [vmem:[%s1 + $0x640] sm:$0xff]
  %v246 = vld [vmem:[%s1 + $0x648] sm:$0xff]
  %v247 = vld [vmem:[%s1 + $0x650] sm:$0xff]
  %v248 = vld [vmem:[%s1 + $0x658] sm:$0xff]
  %v249 = vld [vmem:[%s1 + $0x660] sm:$0xff]
  %v250 = vld [vmem:[%s1 + $0x668] sm:$0xff]
  %v251 = vld [vmem:[%s1 + $0x670] sm:$0xff]
  %v252 = vld [vmem:[%s1 + $0x678] sm:$0xff]
  %v253 = vld [vmem:[%s1 + $0x680] sm:$0xff]
  %v254 = vld [vmem:[%s1 + $0x688] sm:$0xff]
  %v255 = vld [vmem:[%s1 + $0x690] sm:$0xff]
  %v256 = vld [vmem:[%s1 + $0x698] sm:$0xff]
  %v257 = vld [vmem:[%s1 + $0x6a0] sm:$0xff]
  %v258 = vld [vmem:[%s1 + $0x6a8] sm:$0xff]
  %v259 = vld [vmem:[%s1 + $0x6b0] sm:$0xff]
  %v260 = vld [vmem:[%s1 + $0x6b8] sm:$0xff]
  %v261 = vld [vmem:[%s1 + $0x6c0] sm:$0xff]
  %v262 = vld [vmem:[%s1 + $0x6c8] sm:$0xff]
  %v263 = vld [vmem:[%s1 + $0x6d0] sm:$0xff]
  %v264 = vld [vmem:[%s1 + $0x6d8] sm:$0xff]
  %v265 = vld [vmem:[%s1 + $0x6e0] sm:$0xff]
  %v266 = vld [vmem:[%s1 + $0x6e8] sm:$0xff]
  %v267 = vld [vmem:[%s1 + $0x6f0] sm:$0xff]
  %v268 = vld [vmem:[%s1 + $0x6f8] sm:$0xff]
  %v269 = vld [vmem:[%s1 + $0x700] sm:$0xff]
  %v270 = vld [vmem:[%s1 + $0x708] sm:$0xff]
  %v271 = vld [vmem:[%s1 + $0x710] sm:$0xff]
  %v272 = vld [vmem:[%s1 + $0x718] sm:$0xff]
  %v273 = vld [vmem:[%s1 + $0x720] sm:$0xff]
  %v274 = vld [vmem:[%s1 + $0x728] sm:$0xff]
  %v275 = vld [vmem:[%s1 + $0x730] sm:$0xff]
  %v276 = vld [vmem:[%s1 + $0x738] sm:$0xff]
  %v277 = vld [vmem:[%s1 + $0x740] sm:$0xff]
  %v278 = vld [vmem:[%s1 + $0x748] sm:$0xff]
  %v279 = vld [vmem:[%s1 + $0x750] sm:$0xff]
  %v280 = vld [vmem:[%s1 + $0x758] sm:$0xff]
  %v281 = vld [vmem:[%s1 + $0x760] sm:$0xff]
  %v282 = vld [vmem:[%s1 + $0x768] sm:$0xff]
  %v283 = vld [vmem:[%s1 + $0x770] sm:$0xff]
  %v284 = vld [vmem:[%s1 + $0x778] sm:$0xff]
  %v285 = vld [vmem:[%s1 + $0x780] sm:$0xff]
  %v286 = vld [vmem:[%s1 + $0x788] sm:$0xff]
  %v287 = vld [vmem:[%s1 + $0x790] sm:$0xff]
  %v288 = vld [vmem:[%s1 + $0x798] sm:$0xff]
  %v289 = vld [vmem:[%s1 + $0x7a0] sm:$0xff]
  %v290 = vld [vmem:[%s1 + $0x7a8] sm:$0xff]
  %v291 = vld [vmem:[%s1 + $0x7b0] sm:$0xff]
  %v292 = vld [vmem:[%s1 + $0x7b8] sm:$0xff]
  %v293 = vld [vmem:[%s1 + $0x7c0] sm:$0xff]
  %v294 = vld [vmem:[%s1 + $0x7c8] sm:$0xff]
  %v295 = vld [vmem:[%s1 + $0x7d0] sm:$0xff]
  %v296 = vld [vmem:[%s1 + $0x7d8] sm:$0xff]
  %v297 = vld [vmem:[%s1 + $0x7e0] sm:$0xff]
  %v298 = vld [vmem:[%s1 + $0x7e8] sm:$0xff]
  %v299 = vld [vmem:[%s1 + $0x7f0] sm:$0xff]
  %v300 = vld [vmem:[%s1 + $0x7f8] sm:$0xff]
  %v301 = vld [vmem:[%s1 + $0x800] sm:$0xff]
  %v302 = vld [vmem:[%s1 + $0x808] sm:$0xff]
  %v303 = vld [vmem:[%s1 + $0x810] sm:$0xff]
  %v304 = vld [vmem:[%s1 + $0x818] sm:$0xff]
  %v305 = vld [vmem:[%s1 + $0x820] sm:$0xff]
  %v306 = vld [vmem:[%s1 + $0x828] sm:$0xff]
  %v307 = vld [vmem:[%s1 + $0x830] sm:$0xff]
  %v308 = vld [vmem:[%s1 + $0x838] sm:$0xff]
  %v309 = vld [vmem:[%s1 + $0x840] sm:$0xff]
  %v310 = vld [vmem:[%s1 + $0x848] sm:$0xff]
  %v311 = vld [vmem:[%s1 + $0x850] sm:$0xff]
  %v312 = vld [vmem:[%s1 + $0x858] sm:$0xff]
  %v313 = vld [vmem:[%s1 + $0x860] sm:$0xff]
  %v314 = vld [vmem:[%s1 + $0x868] sm:$0xff]
  %v315 = vld [vmem:[%s1 + $0x870] sm:$0xff]
  %v316 = vld [vmem:[%s1 + $0x878] sm:$0xff]
  %v317 = vld [vmem:[%s1 + $0x880] sm:$0xff]
  %v318 = vld [vmem:[%s1 + $0x888] sm:$0xff]
  %v319 = vld [vmem:[%s1 + $0x890] sm:$0xff]
  %v320 = vld [vmem:[%s1 + $0x898] sm:$0xff]
  %v321 = vld [vmem:[%s1 + $0x8a0] sm:$0xff]
  %v322 = vld [vmem:[%s1 + $0x8a8] sm:$0xff]
  %v323 = vld [vmem:[%s1 + $0x8b0] sm:$0xff]
  %v324 = vld [vmem:[%s1 + $0x8b8] sm:$0xff]
  %v325 = vld [vmem:[%s1 + $0x8c0] sm:$0xff]
  %v326 = vld [vmem:[%s1 + $0x8c8] sm:$0xff]
  %v327 = vld [vmem:[%s1 + $0x8d0] sm:$0xff]
  %v328 = vld [vmem:[%s1 + $0x8d8] sm:$0xff]
  %v329 = vld [vmem:[%s1 + $0x8e0] sm:$0xff]
  %v330 = vld [vmem:[%s1 + $0x8e8] sm:$0xff]
  %v331 = vld [vmem:[%s1 + $0x8f0] sm:$0xff]
  %v332 = vld [vmem:[%s1 + $0x8f8] sm:$0xff]
  %v333 = vld [vmem:[%s1 + $0x900] sm:$0xff]
  %v334 = vld [vmem:[%s1 + $0x908] sm:$0xff]
  %v335 = vld [vmem:[%s1 + $0x910] sm:$0xff]
  %v336 = vld [vmem:[%s1 + $0x918] sm:$0xff]
  %v337 = vld [vmem:[%s1 + $0x920] sm:$0xff]
  %v338 = vld [vmem:[%s1 + $0x928] sm:$0xff]
  %v339 = vld [vmem:[%s1 + $0x930] sm:$0xff]
  %v340 = vld [vmem:[%s1 + $0x938] sm:$0xff]
  %v341 = vld [vmem:[%s1 + $0x940] sm:$0xff]
  %v342 = vld [vmem:[%s1 + $0x948] sm:$0xff]
  %v343 = vld [vmem:[%s1 + $0x950] sm:$0xff]
  %v344 = vld [vmem:[%s1 + $0x958] sm:$0xff]
  %v345 = vld [vmem:[%s1 + $0x960] sm:$0xff]
  %v346 = vld [vmem:[%s1 + $0x968] sm:$0xff]
  %v347 = vld [vmem:[%s1 + $0x970] sm:$0xff]
  %v348 = vld [vmem:[%s1 + $0x978] sm:$0xff]
  %v349 = vld [vmem:[%s1 + $0x980] sm:$0xff]
  %v350 = vld [vmem:[%s1 + $0x988] sm:$0xff]
  %v351 = vld [vmem:[%s1 + $0x990] sm:$0xff]
  %v352 = vld [vmem:[%s1 + $0x998] sm:$0xff]
  %v353 = vld [vmem:[%s1 + $0x9a0] sm:$0xff]
  %v354 = vld [vmem:[%s1 + $0x9a8] sm:$0xff]
  %v355 = vld [vmem:[%s1 + $0x9b0] sm:$0xff]
  %v356 = vld [vmem:[%s1 + $0x9b8] sm:$0xff]
  %v357 = vld [vmem:[%s1 + $0x9c0] sm:$0xff]
  %v358 = vld [vmem:[%s1 + $0x9c8] sm:$0xff]
  %v359 = vld [vmem:[%s1 + $0x9d0] sm:$0xff]
  %v360 = vld [vmem:[%s1 + $0x9d8] sm:$0xff]
  %v361 = vld [vmem:[%s1 + $0x9e0] sm:$0xff]
  %v362 = vld [vmem:[%s1 + $0x9e8] sm:$0xff]
  %v363 = vld [vmem:[%s1 + $0x9f0] sm:$0xff]
  %v364 = vld [vmem:[%s1 + $0x9f8] sm:$0xff]
  %v365 = vld [vmem:[%s1 + $0xa00] sm:$0xff]
  %v366 = vld [vmem:[%s1 + $0xa08] sm:$0xff]
  %v367 = vld [vmem:[%s1 + $0xa10] sm:$0xff]
  %v368 = vld [vmem:[%s1 + $0xa18] sm:$0xff]
  %v369 = vld [vmem:[%s1 + $0xa20] sm:$0xff]
  %v370 = vld [vmem:[%s1 + $0xa28] sm:$0xff]
  %v371 = vld [vmem:[%s1 + $0xa30] sm:$0xff]
  %v372 = vld [vmem:[%s1 + $0xa38] sm:$0xff]
  %v373 = vld [vmem:[%s1 + $0xa40] sm:$0xff]
  %v374 = vld [vmem:[%s1 + $0xa48] sm:$0xff]
  %v375 = vld [vmem:[%s1 + $0xa50] sm:$0xff]
  %v376 = vld [vmem:[%s1 + $0xa58] sm:$0xff]
  %v377 = vld [vmem:[%s1 + $0xa60] sm:$0xff]
  %v378 = vld [vmem:[%s1 + $0xa68] sm:$0xff]
  %v379 = vld [vmem:[%s1 + $0xa70] sm:$0xff]
  %v380 = vld [vmem:[%s1 + $0xa78] sm:$0xff]
  %v381 = vld [vmem:[%s1 + $0xa80] sm:$0xff]
  %v382 = vld [vmem:[%s1 + $0xa88] sm:$0xff]
  %v383 = vld [vmem:[%s1 + $0xa90] sm:$0xff]
  %v384 = vld [vmem:[%s1 + $0xa98] sm:$0xff]
  %v385 = vld [vmem:[%s1 + $0xaa0] sm:$0xff]
  %v386 = vld [vmem:[%s1 + $0xaa8] sm:$0xff]
  %v387 = vld [vmem:[%s1 + $0xab0] sm:$0xff]
  %v388 = vld [vmem:[%s1 + $0xab8] sm:$0xff]
  %v389 = vld [vmem:[%s1 + $0xac0] sm:$0xff]
  %v390 = vld [vmem:[%s1 + $0xac8] sm:$0xff]
  %v391 = vld [vmem:[%s1 + $0xad0] sm:$0xff]
  %v392 = vld [vmem:[%s1 + $0xad8] sm:$0xff]
  %v393 = vld [vmem:[%s1 + $0xae0] sm:$0xff]
  %v394 = vld [vmem:[%s1 + $0xae8] sm:$0xff]
  %v395 = vld [vmem:[%s1 + $0xaf0] sm:$0xff]
  %v396 = vld [vmem:[%s1 + $0xaf8] sm:$0xff]
  %v397 = vld [vmem:[%s1 + $0xb00] sm:$0xff]
  %v398 = vld [vmem:[%s1 + $0xb08] sm:$0xff]
  %v399 = vld [vmem:[%s1 + $0xb10] sm:$0xff]
  %v400 = vld [vmem:[%s1 + $0xb18] sm:$0xff]
  %v401 = vld [vmem:[%s1 + $0xb20] sm:$0xff]
  %v402 = vld [vmem:[%s1 + $0xb28] sm:$0xff]
  %v403 = vld [vmem:[%s1 + $0xb30] sm:$0xff]
  %v404 = vld [vmem:[%s1 + $0xb38] sm:$0xff]
  %v405 = vld [vmem:[%s1 + $0xb40] sm:$0xff]
  %v406 = vld [vmem:[%s1 + $0xb48] sm:$0xff]
  %v407 = vld [vmem:[%s1 + $0xb50] sm:$0xff]
  %v408 = vld [vmem:[%s1 + $0xb58] sm:$0xff]
  %v409 = vld [vmem:[%s1 + $0xb60] sm:$0xff]
  %v410 = vld [vmem:[%s1 + $0xb68] sm:$0xff]
  %v411 = vld [vmem:[%s1 + $0xb70] sm:$0xff]
  %v412 = vld [vmem:[%s1 + $0xb78] sm:$0xff]
  %v413 = vld [vmem:[%s1 + $0xb80] sm:$0xff]
  %v414 = vld [vmem:[%s1 + $0xb88] sm:$0xff]
  %v415 = vld [vmem:[%s1 + $0xb90] sm:$0xff]
  %v416 = vld [vmem:[%s1 + $0xb98] sm:$0xff]
  %v417 = vld [vmem:[%s1 + $0xba0] sm:$0xff]
  %v418 = vld [vmem:[%s1 + $0xba8] sm:$0xff]
  %v419 = vld [vmem:[%s1 + $0xbb0] sm:$0xff]
  %v420 = vld [vmem:[%s1 + $0xbb8] sm:$0xff]
  %v421 = vld [vmem:[%s1 + $0xbc0] sm:$0xff]
  %v422 = vld [vmem:[%s1 + $0xbc8] sm:$0xff]
  %v423 = vld [vmem:[%s1 + $0xbd0] sm:$0xff]
  %v424 = vld [vmem:[%s1 + $0xbd8] sm:$0xff]
  %v425 = vld [vmem:[%s1 + $0xbe0] sm:$0xff]
  %v426 = vld [vmem:[%s1 + $0xbe8] sm:$0xff]
  %v427 = vld [vmem:[%s1 + $0xbf0] sm:$0xff]
  %v428 = vld [vmem:[%s1 + $0xbf8] sm:$0xff]
  %v429 = vld [vmem:[%s1 + $0xc00] sm:$0xff]
  %v430 = vld [vmem:[%s1 + $0xc08] sm:$0xff]
  %v431 = vld [vmem:[%s1 + $0xc10] sm:$0xff]
  %v432 = vld [vmem:[%s1 + $0xc18] sm:$0xff]
  %v433 = vld [vmem:[%s1 + $0xc20] sm:$0xff]
  %v434 = vld [vmem:[%s1 + $0xc28] sm:$0xff]
  %v435 = vld [vmem:[%s1 + $0xc30] sm:$0xff]
  %v436 = vld [vmem:[%s1 + $0xc38] sm:$0xff]
  %v437 = vld [vmem:[%s2] sm:$0x1]
  %v439 = vlaneseq
  %v440 = vshrl.u32 %v439, 7
  %v441 = vsub.s32 0, %v440
  %v442 = vrot.slane %v437, %v441
  %vm444 = vcmask 523264
  %v446 = vsel %vm444, %v44, 0
  %448 = vmatprep.subr.mxu0 0.0
  %449 = vmatpush1.msra.mxu0 %v45
  %450 = vmatprep.subr.mxu0 0.0
  %451 = vmatpush1.msra.mxu0 %v46
  %452 = vmatprep.subr.mxu0 0.0
  %453 = vmatpush1.msra.mxu0 %v47
  %454 = vmatprep.subr.mxu0 0.0
  %455 = vmatpush1.msra.mxu0 %v48
  %456 = vmatprep.subr.mxu0 0.0
  %457 = vmatpush1.msra.mxu0 %v49
  %458 = vmatprep.subr.mxu0 0.0
  %459 = vmatpush1.msra.mxu0 %v50
  %460 = vmatprep.subr.mxu0 0.0
  %461 = vmatpush1.msra.mxu0 %v51
  %462 = vmatprep.subr.mxu0 0.0
  %463 = vmatpush1.msra.mxu0 %v52
  %464 = vmatprep.subr.mxu0 0.0
  %465 = vmatpush1.msra.mxu0 %v53
  %466 = vmatprep.subr.mxu0 0.0
  %467 = vmatpush1.msra.mxu0 %v54
  %468 = vmatprep.subr.mxu0 0.0
  %469 = vmatpush1.msra.mxu0 %v55
  %470 = vmatprep.subr.mxu0 0.0
  %471 = vmatpush1.msra.mxu0 %v56
  %472 = vmatprep.subr.mxu0 0.0
  %473 = vmatpush1.msra.mxu0 %v57
  %474 = vmatprep.subr.mxu0 0.0
  %475 = vmatpush1.msra.mxu0 %v58
  %476 = vmatprep.subr.mxu0 0.0
  %477 = vmatpush1.msra.mxu0 %v59
  %478 = vmatprep.subr.mxu0 0.0
  %479 = vmatpush1.msra.mxu0 %v60
  %480 = vmatprep.subr.mxu0 0.0
  %481 = vmatpush1.msra.mxu0 %v61
  %482 = vmatprep.subr.mxu0 0.0
  %483 = vmatpush1.msra.mxu0 %v62
  %484 = vmatprep.subr.mxu0 0.0
  %485 = vmatpush1.msra.mxu0 %v63
  %486 = vmatprep.subr.mxu0 0.0
  %487 = vmatpush1.msra.mxu0 %v64
  %488 = vmatprep.subr.mxu0 0.0
  %489 = vmatpush1.msra.mxu0 %v65
  %490 = vmatprep.subr.mxu0 0.0
  %491 = vmatpush1.msra.mxu0 %v66
  %492 = vmatprep.subr.mxu0 0.0
  %493 = vmatpush1.msra.mxu0 %v67
  %494 = vmatprep.subr.mxu0 0.0
  %495 = vmatpush1.msra.mxu0 %v68
  %496 = vmatprep.subr.mxu0 0.0
  %497 = vmatpush1.msra.mxu0 %v69
  %498 = vmatprep.subr.mxu0 0.0
  %499 = vmatpush1.msra.mxu0 %v70
  %500 = vmatprep.subr.mxu0 0.0
  %501 = vmatpush1.msra.mxu0 %v71
  %502 = vmatprep.subr.mxu0 0.0
  %503 = vmatpush1.msra.mxu0 %v72
  %504 = vmatprep.subr.mxu0 0.0
  %505 = vmatpush1.msra.mxu0 %v73
  %506 = vmatprep.subr.mxu0 0.0
  %507 = vmatpush1.msra.mxu0 %v74
  %508 = vmatprep.subr.mxu0 0.0
  %509 = vmatpush1.msra.mxu0 %v75
  %510 = vmatprep.subr.mxu0 0.0
  %511 = vmatpush1.msra.mxu0 %v76
  %512 = vmatprep.mubr.f32.mxu0 %v21
  %513 = vmatmul.mubr.f32.gmra.mrb[0].mxu0 %v20
  %v514 = vpop.f32.mrb[0].mxu0
  %v515 = vadd.f32 %v442, %v514
  %v516 = vpop.f32.mrb[0].mxu0
  %517 = vdwg.mxu0
  %518 = vmatprep.subr.mxu0 0.0
  %519 = vmatpush1.msra.mxu0 %v77
  %520 = vmatprep.subr.mxu0 0.0
  %521 = vmatpush1.msra.mxu0 %v78
  %522 = vmatprep.subr.mxu0 0.0
  %523 = vmatpush1.msra.mxu0 %v79
  %524 = vmatprep.subr.mxu0 0.0
  %525 = vmatpush1.msra.mxu0 %v80
  %526 = vmatprep.subr.mxu0 0.0
  %527 = vmatpush1.msra.mxu0 %v81
  %528 = vmatprep.subr.mxu0 0.0
  %529 = vmatpush1.msra.mxu0 %v82
  %530 = vmatprep.subr.mxu0 0.0
  %531 = vmatpush1.msra.mxu0 %v83
  %532 = vmatprep.subr.mxu0 0.0
  %533 = vmatpush1.msra.mxu0 %v84
  %534 = vmatprep.subr.mxu0 0.0
  %535 = vmatpush1.msra.mxu0 %v85
  %536 = vmatprep.subr.mxu0 0.0
  %537 = vmatpush1.msra.mxu0 %v86
  %538 = vmatprep.subr.mxu0 0.0
  %539 = vmatpush1.msra.mxu0 %v87
  %540 = vmatprep.subr.mxu0 0.0
  %541 = vmatpush1.msra.mxu0 %v88
  %542 = vmatprep.subr.mxu0 0.0
  %543 = vmatpush1.msra.mxu0 %v89
  %544 = vmatprep.subr.mxu0 0.0
  %545 = vmatpush1.msra.mxu0 %v90
  %546 = vmatprep.subr.mxu0 0.0
  %547 = vmatpush1.msra.mxu0 %v91
  %548 = vmatprep.subr.mxu0 0.0
  %549 = vmatpush1.msra.mxu0 %v92
  %550 = vmatprep.subr.mxu0 0.0
  %551 = vmatpush1.msra.mxu0 %v93
  %552 = vmatprep.subr.mxu0 0.0
  %553 = vmatpush1.msra.mxu0 %v94
  %554 = vmatprep.subr.mxu0 0.0
  %555 = vmatpush1.msra.mxu0 %v95
  %556 = vmatprep.subr.mxu0 0.0
  %557 = vmatpush1.msra.mxu0 %v96
  %558 = vmatprep.subr.mxu0 0.0
  %559 = vmatpush1.msra.mxu0 %v97
  %560 = vmatprep.subr.mxu0 0.0
  %561 = vmatpush1.msra.mxu0 %v98
  %562 = vmatprep.subr.mxu0 0.0
  %563 = vmatpush1.msra.mxu0 %v99
  %564 = vmatprep.subr.mxu0 0.0
  %565 = vmatpush1.msra.mxu0 %v100
  %566 = vmatprep.subr.mxu0 0.0
  %567 = vmatpush1.msra.mxu0 %v101
  %568 = vmatprep.subr.mxu0 0.0
  %569 = vmatpush1.msra.mxu0 %v102
  %570 = vmatprep.subr.mxu0 0.0
  %571 = vmatpush1.msra.mxu0 %v103
  %572 = vmatprep.subr.mxu0 0.0
  %573 = vmatpush1.msra.mxu0 %v104
  %574 = vmatprep.subr.mxu0 0.0
  %575 = vmatpush1.msra.mxu0 %v105
  %576 = vmatprep.subr.mxu0 0.0
  %577 = vmatpush1.msra.mxu0 %v106
  %578 = vmatprep.subr.mxu0 0.0
  %579 = vmatpush1.msra.mxu0 %v107
  %580 = vmatprep.subr.mxu0 0.0
  %581 = vmatpush1.msra.mxu0 %v108
  %582 = vmatprep.mubr.f32.mxu0 %v23
  %583 = vmatmul.mubr.f32.gmra.mrb[0].mxu0 %v22
  %v584 = vpop.f32.mrb[0].mxu0
  %v585 = vadd.f32 %v515, %v584
  %v586 = vpop.f32.mrb[0].mxu0
  %587 = vdwg.mxu0
  %588 = vmatprep.subr.mxu0 0.0
  %589 = vmatpush1.msra.mxu0 %v109
  %590 = vmatprep.subr.mxu0 0.0
  %591 = vmatpush1.msra.mxu0 %v110
  %592 = vmatprep.subr.mxu0 0.0
  %593 = vmatpush1.msra.mxu0 %v111
  %594 = vmatprep.subr.mxu0 0.0
  %595 = vmatpush1.msra.mxu0 %v112
  %596 = vmatprep.subr.mxu0 0.0
  %597 = vmatpush1.msra.mxu0 %v113
  %598 = vmatprep.subr.mxu0 0.0
  %599 = vmatpush1.msra.mxu0 %v114
  %600 = vmatprep.subr.mxu0 0.0
  %601 = vmatpush1.msra.mxu0 %v115
  %602 = vmatprep.subr.mxu0 0.0
  %603 = vmatpush1.msra.mxu0 %v116
  %604 = vmatprep.subr.mxu0 0.0
  %605 = vmatpush1.msra.mxu0 %v117
  %606 = vmatprep.subr.mxu0 0.0
  %607 = vmatpush1.msra.mxu0 %v118
  %608 = vmatprep.subr.mxu0 0.0
  %609 = vmatpush1.msra.mxu0 %v119
  %610 = vmatprep.subr.mxu0 0.0
  %611 = vmatpush1.msra.mxu0 %v120
  %612 = vmatprep.subr.mxu0 0.0
  %613 = vmatpush1.msra.mxu0 %v121
  %614 = vmatprep.subr.mxu0 0.0
  %615 = vmatpush1.msra.mxu0 %v122
  %616 = vmatprep.subr.mxu0 0.0
  %617 = vmatpush1.msra.mxu0 %v123
  %618 = vmatprep.subr.mxu0 0.0
  %619 = vmatpush1.msra.mxu0 %v124
  %620 = vmatprep.subr.mxu0 0.0
  %621 = vmatpush1.msra.mxu0 %v125
  %622 = vmatprep.subr.mxu0 0.0
  %623 = vmatpush1.msra.mxu0 %v126
  %624 = vmatprep.subr.mxu0 0.0
  %625 = vmatpush1.msra.mxu0 %v127
  %626 = vmatprep.subr.mxu0 0.0
  %627 = vmatpush1.msra.mxu0 %v128
  %628 = vmatprep.subr.mxu0 0.0
  %629 = vmatpush1.msra.mxu0 %v129
  %630 = vmatprep.subr.mxu0 0.0
  %631 = vmatpush1.msra.mxu0 %v130
  %632 = vmatprep.subr.mxu0 0.0
  %633 = vmatpush1.msra.mxu0 %v131
  %634 = vmatprep.subr.mxu0 0.0
  %635 = vmatpush1.msra.mxu0 %v132
  %636 = vmatprep.subr.mxu0 0.0
  %637 = vmatpush1.msra.mxu0 %v133
  %638 = vmatprep.subr.mxu0 0.0
  %639 = vmatpush1.msra.mxu0 %v134
  %640 = vmatprep.subr.mxu0 0.0
  %641 = vmatpush1.msra.mxu0 %v135
  %642 = vmatprep.subr.mxu0 0.0
  %643 = vmatpush1.msra.mxu0 %v136
  %644 = vmatprep.subr.mxu0 0.0
  %645 = vmatpush1.msra.mxu0 %v137
  %646 = vmatprep.subr.mxu0 0.0
  %647 = vmatpush1.msra.mxu0 %v138
  %648 = vmatprep.subr.mxu0 0.0
  %649 = vmatpush1.msra.mxu0 %v139
  %650 = vmatprep.subr.mxu0 0.0
  %651 = vmatpush1.msra.mxu0 %v140
  %652 = vmatprep.mubr.f32.mxu0 %v25
  %653 = vmatmul.mubr.f32.gmra.mrb[0].mxu0 %v24
  %v654 = vpop.f32.mrb[0].mxu0
  %v655 = vadd.f32 %v585, %v654
  %v656 = vpop.f32.mrb[0].mxu0
  %657 = vdwg.mxu0
  %658 = vmatprep.subr.mxu0 0.0
  %659 = vmatpush1.msra.mxu0 %v141
  %660 = vmatprep.subr.mxu0 0.0
  %661 = vmatpush1.msra.mxu0 %v142
  %662 = vmatprep.subr.mxu0 0.0
  %663 = vmatpush1.msra.mxu0 %v143
  %664 = vmatprep.subr.mxu0 0.0
  %665 = vmatpush1.msra.mxu0 %v144
  %666 = vmatprep.subr.mxu0 0.0
  %667 = vmatpush1.msra.mxu0 %v145
  %668 = vmatprep.subr.mxu0 0.0
  %669 = vmatpush1.msra.mxu0 %v146
  %670 = vmatprep.subr.mxu0 0.0
  %671 = vmatpush1.msra.mxu0 %v147
  %672 = vmatprep.subr.mxu0 0.0
  %673 = vmatpush1.msra.mxu0 %v148
  %674 = vmatprep.subr.mxu0 0.0
  %675 = vmatpush1.msra.mxu0 %v149
  %676 = vmatprep.subr.mxu0 0.0
  %677 = vmatpush1.msra.mxu0 %v150
  %678 = vmatprep.subr.mxu0 0.0
  %679 = vmatpush1.msra.mxu0 %v151
  %680 = vmatprep.subr.mxu0 0.0
  %681 = vmatpush1.msra.mxu0 %v152
  %682 = vmatprep.subr.mxu0 0.0
  %683 = vmatpush1.msra.mxu0 %v153
  %684 = vmatprep.subr.mxu0 0.0
  %685 = vmatpush1.msra.mxu0 %v154
  %686 = vmatprep.subr.mxu0 0.0
  %687 = vmatpush1.msra.mxu0 %v155
  %688 = vmatprep.subr.mxu0 0.0
  %689 = vmatpush1.msra.mxu0 %v156
  %690 = vmatprep.subr.mxu0 0.0
  %691 = vmatpush1.msra.mxu0 %v157
  %692 = vmatprep.subr.mxu0 0.0
  %693 = vmatpush1.msra.mxu0 %v158
  %694 = vmatprep.subr.mxu0 0.0
  %695 = vmatpush1.msra.mxu0 %v159
  %696 = vmatprep.subr.mxu0 0.0
  %697 = vmatpush1.msra.mxu0 %v160
  %698 = vmatprep.subr.mxu0 0.0
  %699 = vmatpush1.msra.mxu0 %v161
  %700 = vmatprep.subr.mxu0 0.0
  %701 = vmatpush1.msra.mxu0 %v162
  %702 = vmatprep.subr.mxu0 0.0
  %703 = vmatpush1.msra.mxu0 %v163
  %704 = vmatprep.subr.mxu0 0.0
  %705 = vmatpush1.msra.mxu0 %v164
  %706 = vmatprep.subr.mxu0 0.0
  %707 = vmatpush1.msra.mxu0 %v165
  %708 = vmatprep.subr.mxu0 0.0
  %709 = vmatpush1.msra.mxu0 %v166
  %710 = vmatprep.subr.mxu0 0.0
  %711 = vmatpush1.msra.mxu0 %v167
  %712 = vmatprep.subr.mxu0 0.0
  %713 = vmatpush1.msra.mxu0 %v168
  %714 = vmatprep.subr.mxu0 0.0
  %715 = vmatpush1.msra.mxu0 %v169
  %716 = vmatprep.subr.mxu0 0.0
  %717 = vmatpush1.msra.mxu0 %v170
  %718 = vmatprep.subr.mxu0 0.0
  %719 = vmatpush1.msra.mxu0 %v171
  %720 = vmatprep.subr.mxu0 0.0
  %721 = vmatpush1.msra.mxu0 %v172
  %722 = vmatprep.mubr.f32.mxu0 %v27
  %723 = vmatmul.mubr.f32.gmra.mrb[0].mxu0 %v26
  %v724 = vpop.f32.mrb[0].mxu0
  %v725 = vadd.f32 %v655, %v724
  %v726 = vpop.f32.mrb[0].mxu0
  %727 = vdwg.mxu0
  %728 = vmatprep.subr.mxu0 0.0
  %729 = vmatpush1.msra.mxu0 %v173
  %730 = vmatprep.subr.mxu0 0.0
  %731 = vmatpush1.msra.mxu0 %v174
  %732 = vmatprep.subr.mxu0 0.0
  %733 = vmatpush1.msra.mxu0 %v175
  %734 = vmatprep.subr.mxu0 0.0
  %735 = vmatpush1.msra.mxu0 %v176
  %736 = vmatprep.subr.mxu0 0.0
  %737 = vmatpush1.msra.mxu0 %v177
  %738 = vmatprep.subr.mxu0 0.0
  %739 = vmatpush1.msra.mxu0 %v178
  %740 = vmatprep.subr.mxu0 0.0
  %741 = vmatpush1.msra.mxu0 %v179
  %742 = vmatprep.subr.mxu0 0.0
  %743 = vmatpush1.msra.mxu0 %v180
  %744 = vmatprep.subr.mxu0 0.0
  %745 = vmatpush1.msra.mxu0 %v181
  %746 = vmatprep.subr.mxu0 0.0
  %747 = vmatpush1.msra.mxu0 %v182
  %748 = vmatprep.subr.mxu0 0.0
  %749 = vmatpush1.msra.mxu0 %v183
  %750 = vmatprep.subr.mxu0 0.0
  %751 = vmatpush1.msra.mxu0 %v184
  %752 = vmatprep.subr.mxu0 0.0
  %753 = vmatpush1.msra.mxu0 %v185
  %754 = vmatprep.subr.mxu0 0.0
  %755 = vmatpush1.msra.mxu0 %v186
  %756 = vmatprep.subr.mxu0 0.0
  %757 = vmatpush1.msra.mxu0 %v187
  %758 = vmatprep.subr.mxu0 0.0
  %759 = vmatpush1.msra.mxu0 %v188
  %760 = vmatprep.subr.mxu0 0.0
  %761 = vmatpush1.msra.mxu0 %v189
  %762 = vmatprep.subr.mxu0 0.0
  %763 = vmatpush1.msra.mxu0 %v190
  %764 = vmatprep.subr.mxu0 0.0
  %765 = vmatpush1.msra.mxu0 %v191
  %766 = vmatprep.subr.mxu0 0.0
  %767 = vmatpush1.msra.mxu0 %v192
  %768 = vmatprep.subr.mxu0 0.0
  %769 = vmatpush1.msra.mxu0 %v193
  %770 = vmatprep.subr.mxu0 0.0
  %771 = vmatpush1.msra.mxu0 %v194
  %772 = vmatprep.subr.mxu0 0.0
  %773 = vmatpush1.msra.mxu0 %v195
  %774 = vmatprep.subr.mxu0 0.0
  %775 = vmatpush1.msra.mxu0 %v196
  %776 = vmatprep.subr.mxu0 0.0
  %777 = vmatpush1.msra.mxu0 %v197
  %778 = vmatprep.subr.mxu0 0.0
  %779 = vmatpush1.msra.mxu0 %v198
  %780 = vmatprep.subr.mxu0 0.0
  %781 = vmatpush1.msra.mxu0 %v199
  %782 = vmatprep.subr.mxu0 0.0
  %783 = vmatpush1.msra.mxu0 %v200
  %784 = vmatprep.subr.mxu0 0.0
  %785 = vmatpush1.msra.mxu0 %v201
  %786 = vmatprep.subr.mxu0 0.0
  %787 = vmatpush1.msra.mxu0 %v202
  %788 = vmatprep.subr.mxu0 0.0
  %789 = vmatpush1.msra.mxu0 %v203
  %790 = vmatprep.subr.mxu0 0.0
  %791 = vmatpush1.msra.mxu0 %v204
  %792 = vmatprep.mubr.f32.mxu0 %v29
  %793 = vmatmul.mubr.f32.gmra.mrb[0].mxu0 %v28
  %v794 = vpop.f32.mrb[0].mxu0
  %v795 = vadd.f32 %v725, %v794
  %v796 = vpop.f32.mrb[0].mxu0
  %797 = vdwg.mxu0
  %798 = vmatprep.subr.mxu0 0.0
  %799 = vmatpush1.msra.mxu0 %v205
  %800 = vmatprep.subr.mxu0 0.0
  %801 = vmatpush1.msra.mxu0 %v206
  %802 = vmatprep.subr.mxu0 0.0
  %803 = vmatpush1.msra.mxu0 %v207
  %804 = vmatprep.subr.mxu0 0.0
  %805 = vmatpush1.msra.mxu0 %v208
  %806 = vmatprep.subr.mxu0 0.0
  %807 = vmatpush1.msra.mxu0 %v209
  %808 = vmatprep.subr.mxu0 0.0
  %809 = vmatpush1.msra.mxu0 %v210
  %810 = vmatprep.subr.mxu0 0.0
  %811 = vmatpush1.msra.mxu0 %v211
  %812 = vmatprep.subr.mxu0 0.0
  %813 = vmatpush1.msra.mxu0 %v212
  %814 = vmatprep.subr.mxu0 0.0
  %815 = vmatpush1.msra.mxu0 %v213
  %816 = vmatprep.subr.mxu0 0.0
  %817 = vmatpush1.msra.mxu0 %v214
  %818 = vmatprep.subr.mxu0 0.0
  %819 = vmatpush1.msra.mxu0 %v215
  %820 = vmatprep.subr.mxu0 0.0
  %821 = vmatpush1.msra.mxu0 %v216
  %822 = vmatprep.subr.mxu0 0.0
  %823 = vmatpush1.msra.mxu0 %v217
  %824 = vmatprep.subr.mxu0 0.0
  %825 = vmatpush1.msra.mxu0 %v218
  %826 = vmatprep.subr.mxu0 0.0
  %827 = vmatpush1.msra.mxu0 %v219
  %828 = vmatprep.subr.mxu0 0.0
  %829 = vmatpush1.msra.mxu0 %v220
  %830 = vmatprep.subr.mxu0 0.0
  %831 = vmatpush1.msra.mxu0 %v221
  %832 = vmatprep.subr.mxu0 0.0
  %833 = vmatpush1.msra.mxu0 %v222
  %834 = vmatprep.subr.mxu0 0.0
  %835 = vmatpush1.msra.mxu0 %v223
  %836 = vmatprep.subr.mxu0 0.0
  %837 = vmatpush1.msra.mxu0 %v224
  %838 = vmatprep.subr.mxu0 0.0
  %839 = vmatpush1.msra.mxu0 %v225
  %840 = vmatprep.subr.mxu0 0.0
  %841 = vmatpush1.msra.mxu0 %v226
  %842 = vmatprep.subr.mxu0 0.0
  %843 = vmatpush1.msra.mxu0 %v227
  %844 = vmatprep.subr.mxu0 0.0
  %845 = vmatpush1.msra.mxu0 %v228
  %846 = vmatprep.subr.mxu0 0.0
  %847 = vmatpush1.msra.mxu0 %v229
  %848 = vmatprep.subr.mxu0 0.0
  %849 = vmatpush1.msra.mxu0 %v230
  %850 = vmatprep.subr.mxu0 0.0
  %851 = vmatpush1.msra.mxu0 %v231
  %852 = vmatprep.subr.mxu0 0.0
  %853 = vmatpush1.msra.mxu0 %v232
  %854 = vmatprep.subr.mxu0 0.0
  %855 = vmatpush1.msra.mxu0 %v233
  %856 = vmatprep.subr.mxu0 0.0
  %857 = vmatpush1.msra.mxu0 %v234
  %858 = vmatprep.subr.mxu0 0.0
  %859 = vmatpush1.msra.mxu0 %v235
  %860 = vmatprep.subr.mxu0 0.0
  %861 = vmatpush1.msra.mxu0 %v236
  %862 = vmatprep.mubr.f32.mxu0 %v31
  %863 = vmatmul.mubr.f32.gmra.mrb[0].mxu0 %v30
  %v864 = vpop.f32.mrb[0].mxu0
  %v865 = vadd.f32 %v795, %v864
  %v866 = vpop.f32.mrb[0].mxu0
  %867 = vdwg.mxu0
  %868 = vmatprep.subr.mxu0 0.0
  %869 = vmatpush1.msra.mxu0 %v237
  %870 = vmatprep.subr.mxu0 0.0
  %871 = vmatpush1.msra.mxu0 %v238
  %872 = vmatprep.subr.mxu0 0.0
  %873 = vmatpush1.msra.mxu0 %v239
  %874 = vmatprep.subr.mxu0 0.0
  %875 = vmatpush1.msra.mxu0 %v240
  %876 = vmatprep.subr.mxu0 0.0
  %877 = vmatpush1.msra.mxu0 %v241
  %878 = vmatprep.subr.mxu0 0.0
  %879 = vmatpush1.msra.mxu0 %v242
  %880 = vmatprep.subr.mxu0 0.0
  %881 = vmatpush1.msra.mxu0 %v243
  %882 = vmatprep.subr.mxu0 0.0
  %883 = vmatpush1.msra.mxu0 %v244
  %884 = vmatprep.subr.mxu0 0.0
  %885 = vmatpush1.msra.mxu0 %v245
  %886 = vmatprep.subr.mxu0 0.0
  %887 = vmatpush1.msra.mxu0 %v246
  %888 = vmatprep.subr.mxu0 0.0
  %889 = vmatpush1.msra.mxu0 %v247
  %890 = vmatprep.subr.mxu0 0.0
  %891 = vmatpush1.msra.mxu0 %v248
  %892 = vmatprep.subr.mxu0 0.0
  %893 = vmatpush1.msra.mxu0 %v249
  %894 = vmatprep.subr.mxu0 0.0
  %895 = vmatpush1.msra.mxu0 %v250
  %896 = vmatprep.subr.mxu0 0.0
  %897 = vmatpush1.msra.mxu0 %v251
  %898 = vmatprep.subr.mxu0 0.0
  %899 = vmatpush1.msra.mxu0 %v252
  %900 = vmatprep.subr.mxu0 0.0
  %901 = vmatpush1.msra.mxu0 %v253
  %902 = vmatprep.subr.mxu0 0.0
  %903 = vmatpush1.msra.mxu0 %v254
  %904 = vmatprep.subr.mxu0 0.0
  %905 = vmatpush1.msra.mxu0 %v255
  %906 = vmatprep.subr.mxu0 0.0
  %907 = vmatpush1.msra.mxu0 %v256
  %908 = vmatprep.subr.mxu0 0.0
  %909 = vmatpush1.msra.mxu0 %v257
  %910 = vmatprep.subr.mxu0 0.0
  %911 = vmatpush1.msra.mxu0 %v258
  %912 = vmatprep.subr.mxu0 0.0
  %913 = vmatpush1.msra.mxu0 %v259
  %914 = vmatprep.subr.mxu0 0.0
  %915 = vmatpush1.msra.mxu0 %v260
  %916 = vmatprep.subr.mxu0 0.0
  %917 = vmatpush1.msra.mxu0 %v261
  %918 = vmatprep.subr.mxu0 0.0
  %919 = vmatpush1.msra.mxu0 %v262
  %920 = vmatprep.subr.mxu0 0.0
  %921 = vmatpush1.msra.mxu0 %v263
  %922 = vmatprep.subr.mxu0 0.0
  %923 = vmatpush1.msra.mxu0 %v264
  %924 = vmatprep.subr.mxu0 0.0
  %925 = vmatpush1.msra.mxu0 %v265
  %926 = vmatprep.subr.mxu0 0.0
  %927 = vmatpush1.msra.mxu0 %v266
  %928 = vmatprep.subr.mxu0 0.0
  %929 = vmatpush1.msra.mxu0 %v267
  %930 = vmatprep.subr.mxu0 0.0
  %931 = vmatpush1.msra.mxu0 %v268
  %932 = vmatprep.mubr.f32.mxu0 %v33
  %933 = vmatmul.mubr.f32.gmra.mrb[0].mxu0 %v32
  %v934 = vpop.f32.mrb[0].mxu0
  %v935 = vadd.f32 %v865, %v934
  %v936 = vpop.f32.mrb[0].mxu0
  %937 = vdwg.mxu0
  %938 = vmatprep.subr.mxu0 0.0
  %939 = vmatpush1.msra.mxu0 %v269
  %940 = vmatprep.subr.mxu0 0.0
  %941 = vmatpush1.msra.mxu0 %v270
  %942 = vmatprep.subr.mxu0 0.0
  %943 = vmatpush1.msra.mxu0 %v271
  %944 = vmatprep.subr.mxu0 0.0
  %945 = vmatpush1.msra.mxu0 %v272
  %946 = vmatprep.subr.mxu0 0.0
  %947 = vmatpush1.msra.mxu0 %v273
  %948 = vmatprep.subr.mxu0 0.0
  %949 = vmatpush1.msra.mxu0 %v274
  %950 = vmatprep.subr.mxu0 0.0
  %951 = vmatpush1.msra.mxu0 %v275
  %952 = vmatprep.subr.mxu0 0.0
  %953 = vmatpush1.msra.mxu0 %v276
  %954 = vmatprep.subr.mxu0 0.0
  %955 = vmatpush1.msra.mxu0 %v277
  %956 = vmatprep.subr.mxu0 0.0
  %957 = vmatpush1.msra.mxu0 %v278
  %958 = vmatprep.subr.mxu0 0.0
  %959 = vmatpush1.msra.mxu0 %v279
  %960 = vmatprep.subr.mxu0 0.0
  %961 = vmatpush1.msra.mxu0 %v280
  %962 = vmatprep.subr.mxu0 0.0
  %963 = vmatpush1.msra.mxu0 %v281
  %964 = vmatprep.subr.mxu0 0.0
  %965 = vmatpush1.msra.mxu0 %v282
  %966 = vmatprep.subr.mxu0 0.0
  %967 = vmatpush1.msra.mxu0 %v283
  %968 = vmatprep.subr.mxu0 0.0
  %969 = vmatpush1.msra.mxu0 %v284
  %970 = vmatprep.subr.mxu0 0.0
  %971 = vmatpush1.msra.mxu0 %v285
  %972 = vmatprep.subr.mxu0 0.0
  %973 = vmatpush1.msra.mxu0 %v286
  %974 = vmatprep.subr.mxu0 0.0
  %975 = vmatpush1.msra.mxu0 %v287
  %976 = vmatprep.subr.mxu0 0.0
  %977 = vmatpush1.msra.mxu0 %v288
  %978 = vmatprep.subr.mxu0 0.0
  %979 = vmatpush1.msra.mxu0 %v289
  %980 = vmatprep.subr.mxu0 0.0
  %981 = vmatpush1.msra.mxu0 %v290
  %982 = vmatprep.subr.mxu0 0.0
  %983 = vmatpush1.msra.mxu0 %v291
  %984 = vmatprep.subr.mxu0 0.0
  %985 = vmatpush1.msra.mxu0 %v292
  %986 = vmatprep.subr.mxu0 0.0
  %987 = vmatpush1.msra.mxu0 %v293
  %988 = vmatprep.subr.mxu0 0.0
  %989 = vmatpush1.msra.mxu0 %v294
  %990 = vmatprep.subr.mxu0 0.0
  %991 = vmatpush1.msra.mxu0 %v295
  %992 = vmatprep.subr.mxu0 0.0
  %993 = vmatpush1.msra.mxu0 %v296
  %994 = vmatprep.subr.mxu0 0.0
  %995 = vmatpush1.msra.mxu0 %v297
  %996 = vmatprep.subr.mxu0 0.0
  %997 = vmatpush1.msra.mxu0 %v298
  %998 = vmatprep.subr.mxu0 0.0
  %999 = vmatpush1.msra.mxu0 %v299
  %1000 = vmatprep.subr.mxu0 0.0
  %1001 = vmatpush1.msra.mxu0 %v300
  %1002 = vmatprep.mubr.f32.mxu0 %v35
  %1003 = vmatmul.mubr.f32.gmra.mrb[0].mxu0 %v34
  %v1004 = vpop.f32.mrb[0].mxu0
  %v1005 = vadd.f32 %v935, %v1004
  %v1006 = vpop.f32.mrb[0].mxu0
  %1007 = vdwg.mxu0
  %1008 = vmatprep.subr.mxu0 0.0
  %1009 = vmatpush1.msra.mxu0 %v301
  %1010 = vmatprep.subr.mxu0 0.0
  %1011 = vmatpush1.msra.mxu0 %v302
  %1012 = vmatprep.subr.mxu0 0.0
  %1013 = vmatpush1.msra.mxu0 %v303
  %1014 = vmatprep.subr.mxu0 0.0
  %1015 = vmatpush1.msra.mxu0 %v304
  %1016 = vmatprep.subr.mxu0 0.0
  %1017 = vmatpush1.msra.mxu0 %v305
  %1018 = vmatprep.subr.mxu0 0.0
  %1019 = vmatpush1.msra.mxu0 %v306
  %1020 = vmatprep.subr.mxu0 0.0
  %1021 = vmatpush1.msra.mxu0 %v307
  %1022 = vmatprep.subr.mxu0 0.0
  %1023 = vmatpush1.msra.mxu0 %v308
  %1024 = vmatprep.subr.mxu0 0.0
  %1025 = vmatpush1.msra.mxu0 %v309
  %1026 = vmatprep.subr.mxu0 0.0
  %1027 = vmatpush1.msra.mxu0 %v310
  %1028 = vmatprep.subr.mxu0 0.0
  %1029 = vmatpush1.msra.mxu0 %v311
  %1030 = vmatprep.subr.mxu0 0.0
  %1031 = vmatpush1.msra.mxu0 %v312
  %1032 = vmatprep.subr.mxu0 0.0
  %1033 = vmatpush1.msra.mxu0 %v313
  %1034 = vmatprep.subr.mxu0 0.0
  %1035 = vmatpush1.msra.mxu0 %v314
  %1036 = vmatprep.subr.mxu0 0.0
  %1037 = vmatpush1.msra.mxu0 %v315
  %1038 = vmatprep.subr.mxu0 0.0
  %1039 = vmatpush1.msra.mxu0 %v316
  %1040 = vmatprep.subr.mxu0 0.0
  %1041 = vmatpush1.msra.mxu0 %v317
  %1042 = vmatprep.subr.mxu0 0.0
  %1043 = vmatpush1.msra.mxu0 %v318
  %1044 = vmatprep.subr.mxu0 0.0
  %1045 = vmatpush1.msra.mxu0 %v319
  %1046 = vmatprep.subr.mxu0 0.0
  %1047 = vmatpush1.msra.mxu0 %v320
  %1048 = vmatprep.subr.mxu0 0.0
  %1049 = vmatpush1.msra.mxu0 %v321
  %1050 = vmatprep.subr.mxu0 0.0
  %1051 = vmatpush1.msra.mxu0 %v322
  %1052 = vmatprep.subr.mxu0 0.0
  %1053 = vmatpush1.msra.mxu0 %v323
  %1054 = vmatprep.subr.mxu0 0.0
  %1055 = vmatpush1.msra.mxu0 %v324
  %1056 = vmatprep.subr.mxu0 0.0
  %1057 = vmatpush1.msra.mxu0 %v325
  %1058 = vmatprep.subr.mxu0 0.0
  %1059 = vmatpush1.msra.mxu0 %v326
  %1060 = vmatprep.subr.mxu0 0.0
  %1061 = vmatpush1.msra.mxu0 %v327
  %1062 = vmatprep.subr.mxu0 0.0
  %1063 = vmatpush1.msra.mxu0 %v328
  %1064 = vmatprep.subr.mxu0 0.0
  %1065 = vmatpush1.msra.mxu0 %v329
  %1066 = vmatprep.subr.mxu0 0.0
  %1067 = vmatpush1.msra.mxu0 %v330
  %1068 = vmatprep.subr.mxu0 0.0
  %1069 = vmatpush1.msra.mxu0 %v331
  %1070 = vmatprep.subr.mxu0 0.0
  %1071 = vmatpush1.msra.mxu0 %v332
  %1072 = vmatprep.mubr.f32.mxu0 %v37
  %1073 = vmatmul.mubr.f32.gmra.mrb[0].mxu0 %v36
  %v1074 = vpop.f32.mrb[0].mxu0
  %v1075 = vadd.f32 %v1005, %v1074
  %v1076 = vpop.f32.mrb[0].mxu0
  %1077 = vdwg.mxu0
  %1078 = vmatprep.subr.mxu0 0.0
  %1079 = vmatpush1.msra.mxu0 %v333
  %1080 = vmatprep.subr.mxu0 0.0
  %1081 = vmatpush1.msra.mxu0 %v334
  %1082 = vmatprep.subr.mxu0 0.0
  %1083 = vmatpush1.msra.mxu0 %v335
  %1084 = vmatprep.subr.mxu0 0.0
  %1085 = vmatpush1.msra.mxu0 %v336
  %1086 = vmatprep.subr.mxu0 0.0
  %1087 = vmatpush1.msra.mxu0 %v337
  %1088 = vmatprep.subr.mxu0 0.0
  %1089 = vmatpush1.msra.mxu0 %v338
  %1090 = vmatprep.subr.mxu0 0.0
  %1091 = vmatpush1.msra.mxu0 %v339
  %1092 = vmatprep.subr.mxu0 0.0
  %1093 = vmatpush1.msra.mxu0 %v340
  %1094 = vmatprep.subr.mxu0 0.0
  %1095 = vmatpush1.msra.mxu0 %v341
  %1096 = vmatprep.subr.mxu0 0.0
  %1097 = vmatpush1.msra.mxu0 %v342
  %1098 = vmatprep.subr.mxu0 0.0
  %1099 = vmatpush1.msra.mxu0 %v343
  %1100 = vmatprep.subr.mxu0 0.0
  %1101 = vmatpush1.msra.mxu0 %v344
  %1102 = vmatprep.subr.mxu0 0.0
  %1103 = vmatpush1.msra.mxu0 %v345
  %1104 = vmatprep.subr.mxu0 0.0
  %1105 = vmatpush1.msra.mxu0 %v346
  %1106 = vmatprep.subr.mxu0 0.0
  %1107 = vmatpush1.msra.mxu0 %v347
  %1108 = vmatprep.subr.mxu0 0.0
  %1109 = vmatpush1.msra.mxu0 %v348
  %1110 = vmatprep.subr.mxu0 0.0
  %1111 = vmatpush1.msra.mxu0 %v349
  %1112 = vmatprep.subr.mxu0 0.0
  %1113 = vmatpush1.msra.mxu0 %v350
  %1114 = vmatprep.subr.mxu0 0.0
  %1115 = vmatpush1.msra.mxu0 %v351
  %1116 = vmatprep.subr.mxu0 0.0
  %1117 = vmatpush1.msra.mxu0 %v352
  %1118 = vmatprep.subr.mxu0 0.0
  %1119 = vmatpush1.msra.mxu0 %v353
  %1120 = vmatprep.subr.mxu0 0.0
  %1121 = vmatpush1.msra.mxu0 %v354
  %1122 = vmatprep.subr.mxu0 0.0
  %1123 = vmatpush1.msra.mxu0 %v355
  %1124 = vmatprep.subr.mxu0 0.0
  %1125 = vmatpush1.msra.mxu0 %v356
  %1126 = vmatprep.subr.mxu0 0.0
  %1127 = vmatpush1.msra.mxu0 %v357
  %1128 = vmatprep.subr.mxu0 0.0
  %1129 = vmatpush1.msra.mxu0 %v358
  %1130 = vmatprep.subr.mxu0 0.0
  %1131 = vmatpush1.msra.mxu0 %v359
  %1132 = vmatprep.subr.mxu0 0.0
  %1133 = vmatpush1.msra.mxu0 %v360
  %1134 = vmatprep.subr.mxu0 0.0
  %1135 = vmatpush1.msra.mxu0 %v361
  %1136 = vmatprep.subr.mxu0 0.0
  %1137 = vmatpush1.msra.mxu0 %v362
  %1138 = vmatprep.subr.mxu0 0.0
  %1139 = vmatpush1.msra.mxu0 %v363
  %1140 = vmatprep.subr.mxu0 0.0
  %1141 = vmatpush1.msra.mxu0 %v364
  %1142 = vmatprep.mubr.f32.mxu0 %v39
  %1143 = vmatmul.mubr.f32.gmra.mrb[0].mxu0 %v38
  %v1144 = vpop.f32.mrb[0].mxu0
  %v1145 = vadd.f32 %v1075, %v1144
  %v1146 = vpop.f32.mrb[0].mxu0
  %1147 = vdwg.mxu0
  %1148 = vmatprep.subr.mxu0 0.0
  %1149 = vmatpush1.msra.mxu0 %v365
  %1150 = vmatprep.subr.mxu0 0.0
  %1151 = vmatpush1.msra.mxu0 %v366
  %1152 = vmatprep.subr.mxu0 0.0
  %1153 = vmatpush1.msra.mxu0 %v367
  %1154 = vmatprep.subr.mxu0 0.0
  %1155 = vmatpush1.msra.mxu0 %v368
  %1156 = vmatprep.subr.mxu0 0.0
  %1157 = vmatpush1.msra.mxu0 %v369
  %1158 = vmatprep.subr.mxu0 0.0
  %1159 = vmatpush1.msra.mxu0 %v370
  %1160 = vmatprep.subr.mxu0 0.0
  %1161 = vmatpush1.msra.mxu0 %v371
  %1162 = vmatprep.subr.mxu0 0.0
  %1163 = vmatpush1.msra.mxu0 %v372
  %1164 = vmatprep.subr.mxu0 0.0
  %1165 = vmatpush1.msra.mxu0 %v373
  %1166 = vmatprep.subr.mxu0 0.0
  %1167 = vmatpush1.msra.mxu0 %v374
  %1168 = vmatprep.subr.mxu0 0.0
  %1169 = vmatpush1.msra.mxu0 %v375
  %1170 = vmatprep.subr.mxu0 0.0
  %1171 = vmatpush1.msra.mxu0 %v376
  %1172 = vmatprep.subr.mxu0 0.0
  %1173 = vmatpush1.msra.mxu0 %v377
  %1174 = vmatprep.subr.mxu0 0.0
  %1175 = vmatpush1.msra.mxu0 %v378
  %1176 = vmatprep.subr.mxu0 0.0
  %1177 = vmatpush1.msra.mxu0 %v379
  %1178 = vmatprep.subr.mxu0 0.0
  %1179 = vmatpush1.msra.mxu0 %v380
  %1180 = vmatprep.subr.mxu0 0.0
  %1181 = vmatpush1.msra.mxu0 %v381
  %1182 = vmatprep.subr.mxu0 0.0
  %1183 = vmatpush1.msra.mxu0 %v382
  %1184 = vmatprep.subr.mxu0 0.0
  %1185 = vmatpush1.msra.mxu0 %v383
  %1186 = vmatprep.subr.mxu0 0.0
  %1187 = vmatpush1.msra.mxu0 %v384
  %1188 = vmatprep.subr.mxu0 0.0
  %1189 = vmatpush1.msra.mxu0 %v385
  %1190 = vmatprep.subr.mxu0 0.0
  %1191 = vmatpush1.msra.mxu0 %v386
  %1192 = vmatprep.subr.mxu0 0.0
  %1193 = vmatpush1.msra.mxu0 %v387
  %1194 = vmatprep.subr.mxu0 0.0
  %1195 = vmatpush1.msra.mxu0 %v388
  %1196 = vmatprep.subr.mxu0 0.0
  %1197 = vmatpush1.msra.mxu0 %v389
  %1198 = vmatprep.subr.mxu0 0.0
  %1199 = vmatpush1.msra.mxu0 %v390
  %1200 = vmatprep.subr.mxu0 0.0
  %1201 = vmatpush1.msra.mxu0 %v391
  %1202 = vmatprep.subr.mxu0 0.0
  %1203 = vmatpush1.msra.mxu0 %v392
  %1204 = vmatprep.subr.mxu0 0.0
  %1205 = vmatpush1.msra.mxu0 %v393
  %1206 = vmatprep.subr.mxu0 0.0
  %1207 = vmatpush1.msra.mxu0 %v394
  %1208 = vmatprep.subr.mxu0 0.0
  %1209 = vmatpush1.msra.mxu0 %v395
  %1210 = vmatprep.subr.mxu0 0.0
  %1211 = vmatpush1.msra.mxu0 %v396
  %1212 = vmatprep.mubr.f32.mxu0 %v41
  %1213 = vmatmul.mubr.f32.gmra.mrb[0].mxu0 %v40
  %v1214 = vpop.f32.mrb[0].mxu0
  %v1215 = vadd.f32 %v1145, %v1214
  %v1216 = vpop.f32.mrb[0].mxu0
  %1217 = vdwg.mxu0
  %1218 = vmatprep.subr.mxu0 0.0
  %1219 = vmatpush1.msra.mxu0 %v397
  %1220 = vmatprep.subr.mxu0 0.0
  %1221 = vmatpush1.msra.mxu0 %v398
  %1222 = vmatprep.subr.mxu0 0.0
  %1223 = vmatpush1.msra.mxu0 %v399
  %1224 = vmatprep.subr.mxu0 0.0
  %1225 = vmatpush1.msra.mxu0 %v400
  %1226 = vmatprep.subr.mxu0 0.0
  %1227 = vmatpush1.msra.mxu0 %v401
  %1228 = vmatprep.subr.mxu0 0.0
  %1229 = vmatpush1.msra.mxu0 %v402
  %1230 = vmatprep.subr.mxu0 0.0
  %1231 = vmatpush1.msra.mxu0 %v403
  %1232 = vmatprep.subr.mxu0 0.0
  %1233 = vmatpush1.msra.mxu0 %v404
  %1234 = vmatprep.subr.mxu0 0.0
  %1235 = vmatpush1.msra.mxu0 %v405
  %1236 = vmatprep.subr.mxu0 0.0
  %1237 = vmatpush1.msra.mxu0 %v406
  %1238 = vmatprep.subr.mxu0 0.0
  %1239 = vmatpush1.msra.mxu0 %v407
  %1240 = vmatprep.subr.mxu0 0.0
  %1241 = vmatpush1.msra.mxu0 %v408
  %1242 = vmatprep.subr.mxu0 0.0
  %1243 = vmatpush1.msra.mxu0 %v409
  %1244 = vmatprep.subr.mxu0 0.0
  %1245 = vmatpush1.msra.mxu0 %v410
  %1246 = vmatprep.subr.mxu0 0.0
  %1247 = vmatpush1.msra.mxu0 %v411
  %1248 = vmatprep.subr.mxu0 0.0
  %1249 = vmatpush1.msra.mxu0 %v412
  %1250 = vmatprep.subr.mxu0 0.0
  %1251 = vmatpush1.msra.mxu0 %v413
  %1252 = vmatprep.subr.mxu0 0.0
  %1253 = vmatpush1.msra.mxu0 %v414
  %1254 = vmatprep.subr.mxu0 0.0
  %1255 = vmatpush1.msra.mxu0 %v415
  %1256 = vmatprep.subr.mxu0 0.0
  %1257 = vmatpush1.msra.mxu0 %v416
  %1258 = vmatprep.subr.mxu0 0.0
  %1259 = vmatpush1.msra.mxu0 %v417
  %1260 = vmatprep.subr.mxu0 0.0
  %1261 = vmatpush1.msra.mxu0 %v418
  %1262 = vmatprep.subr.mxu0 0.0
  %1263 = vmatpush1.msra.mxu0 %v419
  %1264 = vmatprep.subr.mxu0 0.0
  %1265 = vmatpush1.msra.mxu0 %v420
  %1266 = vmatprep.subr.mxu0 0.0
  %1267 = vmatpush1.msra.mxu0 %v421
  %1268 = vmatprep.subr.mxu0 0.0
  %1269 = vmatpush1.msra.mxu0 %v422
  %1270 = vmatprep.subr.mxu0 0.0
  %1271 = vmatpush1.msra.mxu0 %v423
  %1272 = vmatprep.subr.mxu0 0.0
  %1273 = vmatpush1.msra.mxu0 %v424
  %1274 = vmatprep.subr.mxu0 0.0
  %1275 = vmatpush1.msra.mxu0 %v425
  %1276 = vmatprep.subr.mxu0 0.0
  %1277 = vmatpush1.msra.mxu0 %v426
  %1278 = vmatprep.subr.mxu0 0.0
  %1279 = vmatpush1.msra.mxu0 %v427
  %1280 = vmatprep.subr.mxu0 0.0
  %1281 = vmatpush1.msra.mxu0 %v428
  %1282 = vmatprep.mubr.f32.mxu0 %v43
  %1283 = vmatmul.mubr.f32.gmra.mrb[0].mxu0 %v42
  %v1284 = vpop.f32.mrb[0].mxu0
  %v1285 = vadd.f32 %v1215, %v1284
  %v1286 = vpop.f32.mrb[0].mxu0
  %1287 = vdwg.mxu0
  %1288 = vmatprep.subr.mxu0 0.0
  %1289 = vmatpush1.msra.mxu0 %v429
  %1290 = vmatprep.subr.mxu0 0.0
  %1291 = vmatpush1.msra.mxu0 %v430
  %1292 = vmatprep.subr.mxu0 0.0
  %1293 = vmatpush1.msra.mxu0 %v431
  %1294 = vmatprep.subr.mxu0 0.0
  %1295 = vmatpush1.msra.mxu0 %v432
  %1296 = vmatprep.subr.mxu0 0.0
  %1297 = vmatpush1.msra.mxu0 %v433
  %1298 = vmatprep.subr.mxu0 0.0
  %1299 = vmatpush1.msra.mxu0 %v434
  %1300 = vmatprep.subr.mxu0 0.0
  %1301 = vmatpush1.msra.mxu0 %v435
  %1302 = vmatprep.subr.mxu0 0.0
  %1303 = vmatpush1.msra.mxu0 %v436
  %1304 = vmatprep.subr.mxu0 0.0
  %1305 = vmatpush1.msra.mxu0 0.0
  %1306 = vmatprep.subr.mxu0 0.0
  %1307 = vmatpush1.msra.mxu0 0.0
  %1308 = vmatprep.subr.mxu0 0.0
  %1309 = vmatpush1.msra.mxu0 0.0
  %1310 = vmatprep.subr.mxu0 0.0
  %1311 = vmatpush1.msra.mxu0 0.0
  %1312 = vmatprep.subr.mxu0 0.0
  %1313 = vmatpush1.msra.mxu0 0.0
  %1314 = vmatprep.subr.mxu0 0.0
  %1315 = vmatpush1.msra.mxu0 0.0
  %1316 = vmatprep.subr.mxu0 0.0
  %1317 = vmatpush1.msra.mxu0 0.0
  %1318 = vmatprep.subr.mxu0 0.0
  %1319 = vmatpush1.msra.mxu0 0.0
  %1320 = vmatprep.subr.mxu0 0.0
  %1321 = vmatpush1.msra.mxu0 0.0
  %1322 = vmatprep.subr.mxu0 0.0
  %1323 = vmatpush1.msra.mxu0 0.0
  %1324 = vmatprep.subr.mxu0 0.0
  %1325 = vmatpush1.msra.mxu0 0.0
  %1326 = vmatprep.subr.mxu0 0.0
  %1327 = vmatpush1.msra.mxu0 0.0
  %1328 = vmatprep.subr.mxu0 0.0
  %1329 = vmatpush1.msra.mxu0 0.0
  %1330 = vmatprep.subr.mxu0 0.0
  %1331 = vmatpush1.msra.mxu0 0.0
  %1332 = vmatprep.subr.mxu0 0.0
  %1333 = vmatpush1.msra.mxu0 0.0
  %1334 = vmatprep.subr.mxu0 0.0
  %1335 = vmatpush1.msra.mxu0 0.0
  %1336 = vmatprep.subr.mxu0 0.0
  %1337 = vmatpush1.msra.mxu0 0.0
  %1338 = vmatprep.subr.mxu0 0.0
  %1339 = vmatpush1.msra.mxu0 0.0
  %1340 = vmatprep.subr.mxu0 0.0
  %1341 = vmatpush1.msra.mxu0 0.0
  %1342 = vmatprep.subr.mxu0 0.0
  %1343 = vmatpush1.msra.mxu0 0.0
  %1344 = vmatprep.subr.mxu0 0.0
  %1345 = vmatpush1.msra.mxu0 0.0
  %1346 = vmatprep.subr.mxu0 0.0
  %1347 = vmatpush1.msra.mxu0 0.0
  %1348 = vmatprep.subr.mxu0 0.0
  %1349 = vmatpush1.msra.mxu0 0.0
  %1350 = vmatprep.subr.mxu0 0.0
  %1351 = vmatpush1.msra.mxu0 0.0
  %1352 = vmatprep.mubr.f32.mxu0 0.0
  %1353 = vmatmul.mubr.f32.gmra.mrb[0].mxu0 %v446
  %v1354 = vpop.f32.mrb[0].mxu0
  %v1355 = vadd.f32 %v1285, %v1354
  %v1356 = vpop.f32.mrb[0].mxu0
  %1357 = vdwg.mxu0
  %v1358 = vmax.f32 %v1355, 0.0
  %v1359 = vld [vmem:[%s3] sm:$0xff]
  %v1360 = vld [vmem:[%s3 + $0x8] sm:$0xff]
  %v1361 = vld [vmem:[%s3 + $0x10] sm:$0xff]
  %v1362 = vld [vmem:[%s3 + $0x18] sm:$0xff]
  %v1363 = vld [vmem:[%s3 + $0x20] sm:$0xff]
  %v1364 = vld [vmem:[%s3 + $0x28] sm:$0xff]
  %v1365 = vld [vmem:[%s3 + $0x30] sm:$0xff]
  %v1366 = vld [vmem:[%s3 + $0x38] sm:$0xff]
  %v1367 = vld [vmem:[%s3 + $0x40] sm:$0xff]
  %v1368 = vld [vmem:[%s3 + $0x48] sm:$0xff]
  %v1369 = vld [vmem:[%s3 + $0x50] sm:$0xff]
  %v1370 = vld [vmem:[%s3 + $0x58] sm:$0xff]
  %v1371 = vld [vmem:[%s3 + $0x60] sm:$0xff]
  %v1372 = vld [vmem:[%s3 + $0x68] sm:$0xff]
  %v1373 = vld [vmem:[%s3 + $0x70] sm:$0xff]
  %v1374 = vld [vmem:[%s3 + $0x78] sm:$0xff]
  %v1375 = vld [vmem:[%s4] sm:$0x1]
  %v1377 = vlaneseq
  %v1378 = vshrl.u32 %v1377, 7
  %v1379 = vsub.s32 0, %v1378
  %v1380 = vrot.slane %v1375, %v1379
  %1382 = vmatprep.subr.mxu0 0.0
  %1383 = vmatpush1.msra.mxu0 %v1359
  %1384 = vmatprep.subr.mxu0 0.0
  %1385 = vmatpush1.msra.mxu0 %v1360
  %1386 = vmatprep.subr.mxu0 0.0
  %1387 = vmatpush1.msra.mxu0 %v1361
  %1388 = vmatprep.subr.mxu0 0.0
  %1389 = vmatpush1.msra.mxu0 %v1362
  %1390 = vmatprep.subr.mxu0 0.0
  %1391 = vmatpush1.msra.mxu0 %v1363
  %1392 = vmatprep.subr.mxu0 0.0
  %1393 = vmatpush1.msra.mxu0 %v1364
  %1394 = vmatprep.subr.mxu0 0.0
  %1395 = vmatpush1.msra.mxu0 %v1365
  %1396 = vmatprep.subr.mxu0 0.0
  %1397 = vmatpush1.msra.mxu0 %v1366
  %1398 = vmatprep.subr.mxu0 0.0
  %1399 = vmatpush1.msra.mxu0 %v1367
  %1400 = vmatprep.subr.mxu0 0.0
  %1401 = vmatpush1.msra.mxu0 %v1368
  %1402 = vmatprep.subr.mxu0 0.0
  %1403 = vmatpush1.msra.mxu0 %v1369
  %1404 = vmatprep.subr.mxu0 0.0
  %1405 = vmatpush1.msra.mxu0 %v1370
  %1406 = vmatprep.subr.mxu0 0.0
  %1407 = vmatpush1.msra.mxu0 %v1371
  %1408 = vmatprep.subr.mxu0 0.0
  %1409 = vmatpush1.msra.mxu0 %v1372
  %1410 = vmatprep.subr.mxu0 0.0
  %1411 = vmatpush1.msra.mxu0 %v1373
  %1412 = vmatprep.subr.mxu0 0.0
  %1413 = vmatpush1.msra.mxu0 %v1374
  %1414 = vmatprep.subr.mxu0 0.0
  %1415 = vmatpush1.msra.mxu0 0.0
  %1416 = vmatprep.subr.mxu0 0.0
  %1417 = vmatpush1.msra.mxu0 0.0
  %1418 = vmatprep.subr.mxu0 0.0
  %1419 = vmatpush1.msra.mxu0 0.0
  %1420 = vmatprep.subr.mxu0 0.0
  %1421 = vmatpush1.msra.mxu0 0.0
  %1422 = vmatprep.subr.mxu0 0.0
  %1423 = vmatpush1.msra.mxu0 0.0
  %1424 = vmatprep.subr.mxu0 0.0
  %1425 = vmatpush1.msra.mxu0 0.0
  %1426 = vmatprep.subr.mxu0 0.0
  %1427 = vmatpush1.msra.mxu0 0.0
  %1428 = vmatprep.subr.mxu0 0.0
  %1429 = vmatpush1.msra.mxu0 0.0
  %1430 = vmatprep.subr.mxu0 0.0
  %1431 = vmatpush1.msra.mxu0 0.0
  %1432 = vmatprep.subr.mxu0 0.0
  %1433 = vmatpush1.msra.mxu0 0.0
  %1434 = vmatprep.subr.mxu0 0.0
  %1435 = vmatpush1.msra.mxu0 0.0
  %1436 = vmatprep.subr.mxu0 0.0
  %1437 = vmatpush1.msra.mxu0 0.0
  %1438 = vmatprep.subr.mxu0 0.0
  %1439 = vmatpush1.msra.mxu0 0.0
  %1440 = vmatprep.subr.mxu0 0.0
  %1441 = vmatpush1.msra.mxu0 0.0
  %1442 = vmatprep.subr.mxu0 0.0
  %1443 = vmatpush1.msra.mxu0 0.0
  %1444 = vmatprep.subr.mxu0 0.0
  %1445 = vmatpush1.msra.mxu0 0.0
  %1446 = vmatprep.mubr.f32.mxu0 0.0
  %1447 = vmatmul.mubr.f32.gmra.mrb[0].mxu0 %v1358
  %v1448 = vpop.f32.mrb[0].mxu0
  %v1449 = vadd.f32 %v1380, %v1448
  %v1450 = vpop.f32.mrb[0].mxu0
  %1451 = vdwg.mxu0
  %1452 = vst [vmem:[%s5] sm:$0xff] %v1449
  // Predicated region
  $region22: #{mnist_cnn_forward.5} parent=0 // pred_check
    _
  $region23: #{mnist_cnn_forward.5} parent=0 // pred_check_branch
    %1454 = sbr.rel (0) target = $region25
  $region24: #{mnist_cnn_forward.5} parent=0 // pred_region
    _
  $region25: #{mnist_cnn_forward.5} parent=0 // pred_fallthru
    _
  // Predicated region
  $region26: #{mnist_cnn_forward.5} parent=0 // pred_check
    _
  $region27: #{mnist_cnn_forward.5} parent=0 // pred_check_branch
    %1456 = sbr.rel (0) target = $region29
  $region28: #{mnist_cnn_forward.5} parent=0 // pred_region
    _
  $region29: #{mnist_cnn_forward.5} parent=0 // pred_fallthru
    _

</llo_original>
